<compile_context>
chip_gen: v7x
topology: tpu7x:2x2x1
jax: 0.10.0
libtpu: 0.0.40
codegen_flags: <defaults>
</compile_context>

<pallas_src>
import math
import functools

import jax
import jax.numpy as jnp
from jax import lax
from jax.experimental import pallas as pl
from jax.experimental.pallas import tpu as pltpu


BF16 = jnp.bfloat16
F32 = jnp.float32
_MIB = 1024 * 1024


# ----------------------------- Pallas kernels ------------------------------

def _self_attn_core_kernel(H, Dh, scale, y_ref, m_ref, w_ref, b_ref, o_ref):
    """Fused QKV projection + self-attention with HEAD-axis softmax (PyTorch quirk).

    Blocks: y (1,S,D) f32, mask (S,S) f32, w (D,3D) bf16, b (1,3D) f32,
    out (1,H,S,Dh) bf16.  The (S,3D) QKV intermediate never leaves VMEM/vregs.
    """
    y = y_ref[0].astype(BF16)                                   # (S, D)
    # ONE wide MXU matmul for every head's Q, K and V (N = 3*D lanes).
    qkv = jnp.dot(y, w_ref[...], preferred_element_type=F32) + b_ref[...]   # (S, 3D) f32
    mask = m_ref[...]                                           # (S, S) f32

    scores = []
    for h in range(H):
        base = 3 * Dh * h
        # Fold 1/sqrt(Dh) into q before the bf16 cast (cheaper than scaling (S,S)).
        qh = (qkv[:, base:base + Dh] * scale).astype(BF16)
        kh = qkv[:, base + Dh:base + 2 * Dh].astype(BF16)
        s = lax.dot_general(qh, kh, (((1,), (1,)), ((), ())),
                            preferred_element_type=F32) + mask
        scores.append(s)

    # Softmax over the HEAD axis (dim=1 of the 4-D tensor in PyTorch).
    mx = functools.reduce(jnp.maximum, scores)
    exps = [jnp.exp(s - mx) for s in scores]
    denom = functools.reduce(lambda a, b: a + b, exps)
    inv = pl.reciprocal(denom, approx=True)

    outs = []
    for h in range(H):
        base = 3 * Dh * h
        vh = qkv[:, base + 2 * Dh:base + 3 * Dh].astype(BF16)
        attn_h = (exps[h] * inv).astype(BF16)
        outs.append(jnp.dot(attn_h, vh, preferred_element_type=F32))
    # Single stacked bf16 store instead of H separate sub-block stores.
    o_ref[0] = jnp.stack(outs, axis=0).astype(BF16)             # (H, S, Dh)


def _cross_attn_core_kernel(H, Dh, scale, x_ref, y_ref, kvw_ref, kvb_ref,
                            qw_ref, qb_ref, o_ref):
    """Fused KV/Q projections + cross-attention (no mask), head-axis softmax."""
    x = x_ref[0].astype(BF16)                                   # (S, D) -> K, V
    y = y_ref[0].astype(BF16)                                   # (S, D) -> Q
    kv = jnp.dot(x, kvw_ref[...], preferred_element_type=F32) + kvb_ref[...]   # (S, 2D)
    q = jnp.dot(y, qw_ref[...], preferred_element_type=F32) + qb_ref[...]      # (S, D)

    scores = []
    for h in range(H):
        kvb = 2 * Dh * h
        qh = (q[:, Dh * h:Dh * (h + 1)] * scale).astype(BF16)
        kh = kv[:, kvb:kvb + Dh].astype(BF16)
        s = lax.dot_general(qh, kh, (((1,), (1,)), ((), ())),
                            preferred_element_type=F32)
        scores.append(s)

    mx = functools.reduce(jnp.maximum, scores)
    exps = [jnp.exp(s - mx) for s in scores]
    denom = functools.reduce(lambda a, b: a + b, exps)
    inv = pl.reciprocal(denom, approx=True)

    outs = []
    for h in range(H):
        kvb = 2 * Dh * h
        vh = kv[:, kvb + Dh:kvb + 2 * Dh].astype(BF16)
        attn_h = (exps[h] * inv).astype(BF16)
        outs.append(jnp.dot(attn_h, vh, preferred_element_type=F32))
    o_ref[0] = jnp.stack(outs, axis=0).astype(BF16)             # (H, S, Dh)


def _proj_add_ln_kernel(eps, v_ref, r_ref, w_ref, b_ref, g_ref, be_ref, o_ref):
    """out = LayerNorm(values @ W + b + residual); dropout == identity.

    v_ref is bf16 (attention-core output); residual / LN path stays f32.
    """
    proj = jnp.dot(v_ref[...], w_ref[...],
                   preferred_element_type=F32) + b_ref[...]
    v = proj + r_ref[...]
    mean = jnp.mean(v, axis=-1, keepdims=True)
    var = jnp.mean((v - mean) ** 2, axis=-1, keepdims=True)
    yn = (v - mean) * lax.rsqrt(var + eps)
    o_ref[...] = g_ref[...] * yn + be_ref[...]


def _ffn_add_ln_kernel(eps, x_ref, w1_ref, b1_ref, w2_ref, b2_ref,
                       g_ref, be_ref, o_ref, acc_ref):
    """out = LayerNorm(relu(x@W1+b1)@W2+b2 + x); hidden dim K-tiled via grid axis 1.

    relu is elementwise over the hidden dim, so hidden chunks are independent:
      acc += relu(x @ W1[:, k] + b1[k]) @ W2[k, :]
    b2 / residual / LN are applied once at the last K step.
    """
    k = pl.program_id(1)

    @pl.when(k == 0)
    def _():
        acc_ref[...] = jnp.zeros_like(acc_ref)

    h = jnp.dot(x_ref[...].astype(BF16), w1_ref[...],
                preferred_element_type=F32) + b1_ref[...]
    h = jnp.maximum(h, 0.0)
    acc_ref[...] += jnp.dot(h.astype(BF16), w2_ref[...],
                            preferred_element_type=F32)

    @pl.when(k == pl.num_programs(1) - 1)
    def _():
        v = acc_ref[...] + b2_ref[...] + x_ref[...]
        mean = jnp.mean(v, axis=-1, keepdims=True)
        var = jnp.mean((v - mean) ** 2, axis=-1, keepdims=True)
        yn = (v - mean) * lax.rsqrt(var + eps)
        o_ref[...] = g_ref[...] * yn + be_ref[...]


# ------------------------------ Wrappers ------------------------------------

def _pick_tm(M, cap=256):
    """Largest M-tile <= cap that divides M (multiple of 8 or == M), preferring
    at least 2 grid programs so both TensorCores are used on dual-core parts."""
    def _best(limit):
        limit = max(1, min(M, limit))
        for tm in range(limit, 0, -1):
            if M % tm == 0 and (tm % 8 == 0 or tm == M):
                return tm
        return M
    tm = _best(cap)
    if M // tm < 2 and M >= 16:
        tm = _best(M // 2)
    return tm


def _pick_tk(Hh, cap=2048):
    """Hidden-dim tile for the FFN: full Hh if small, else the largest
    multiple-of-128 divisor <= cap (fall back to untiled)."""
    if Hh <= cap:
        return Hh
    for tk in range(cap - (cap % 128), 127, -128):
        if Hh % tk == 0:
            return tk
    return Hh


def _vmem_limit(block_bytes):
    """Scoped-VMEM budget: ~2x live block bytes (double buffering) + margin,
    clamped to a range safe on v5e/v6e/v7x."""
    return int(min(100 * _MIB, max(32 * _MIB, 2 * int(block_bytes) + 8 * _MIB)))


def pallas_self_attn_core(y3d, mask, w_bf, b, num_heads):
    B, S, D = y3d.shape
    Dh = D // num_heads
    kern = functools.partial(_self_attn_core_kernel, num_heads, Dh,
                             1.0 / math.sqrt(Dh))
    blk_bytes = (S * D * 4 + S * S * 4 + D * 3 * D * 2 + 3 * D * 4
                 + S * 3 * D * 4 + num_heads * S * S * 8 + num_heads * S * Dh * 2)
    return pl.pallas_call(
        kern,
        out_shape=jax.ShapeDtypeStruct((B, num_heads, S, Dh), BF16),
        grid=(B,),
        in_specs=[pl.BlockSpec((1, S, D), lambda i: (i, 0, 0)),
                  pl.BlockSpec((S, S), lambda i: (0, 0)),
                  pl.BlockSpec((D, 3 * D), lambda i: (0, 0)),
                  pl.BlockSpec((1, 3 * D), lambda i: (0, 0))],
        out_specs=pl.BlockSpec((1, num_heads, S, Dh), lambda i: (i, 0, 0, 0)),
        compiler_params=pltpu.CompilerParams(
            dimension_semantics=("parallel",),
            vmem_limit_bytes=_vmem_limit(blk_bytes)),
    )(y3d, mask, w_bf, b.reshape(1, 3 * D))


def pallas_cross_attn_core(x3d, y3d, kvw_bf, kvb, qw_bf, qb, num_heads):
    B, S, D = x3d.shape
    Dh = D // num_heads
    kern = functools.partial(_cross_attn_core_kernel, num_heads, Dh,
                             1.0 / math.sqrt(Dh))
    blk_bytes = (2 * S * D * 4 + D * 2 * D * 2 + D * D * 2 + 3 * D * 4
                 + S * 3 * D * 4 + num_heads * S * S * 8 + num_heads * S * Dh * 2)
    return pl.pallas_call(
        kern,
        out_shape=jax.ShapeDtypeStruct((B, num_heads, S, Dh), BF16),
        grid=(B,),
        in_specs=[pl.BlockSpec((1, S, D), lambda i: (i, 0, 0)),
                  pl.BlockSpec((1, S, D), lambda i: (i, 0, 0)),
                  pl.BlockSpec((D, 2 * D), lambda i: (0, 0)),
                  pl.BlockSpec((1, 2 * D), lambda i: (0, 0)),
                  pl.BlockSpec((D, D), lambda i: (0, 0)),
                  pl.BlockSpec((1, D), lambda i: (0, 0))],
        out_specs=pl.BlockSpec((1, num_heads, S, Dh), lambda i: (i, 0, 0, 0)),
        compiler_params=pltpu.CompilerParams(
            dimension_semantics=("parallel",),
            vmem_limit_bytes=_vmem_limit(blk_bytes)),
    )(x3d, y3d, kvw_bf, kvb.reshape(1, 2 * D), qw_bf, qb.reshape(1, D))


def pallas_proj_add_ln(vals2d, res2d, w_bf, b, gamma, beta, eps=1e-5):
    M, D = vals2d.shape
    tm = _pick_tm(M)
    kern = functools.partial(_proj_add_ln_kernel, eps)
    blk_bytes = tm * D * 2 + tm * D * 4 + D * D * 2 + 3 * D * 4 + tm * D * 4
    return pl.pallas_call(
        kern,
        out_shape=jax.ShapeDtypeStruct((M, D), F32),
        grid=(M // tm,),
        in_specs=[pl.BlockSpec((tm, D), lambda i: (i, 0)),
                  pl.BlockSpec((tm, D), lambda i: (i, 0)),
                  pl.BlockSpec((D, D), lambda i: (0, 0)),
                  pl.BlockSpec((1, D), lambda i: (0, 0)),
                  pl.BlockSpec((1, D), lambda i: (0, 0)),
                  pl.BlockSpec((1, D), lambda i: (0, 0))],
        out_specs=pl.BlockSpec((tm, D), lambda i: (i, 0)),
        compiler_params=pltpu.CompilerParams(
            dimension_semantics=("parallel",),
            vmem_limit_bytes=_vmem_limit(blk_bytes)),
    )(vals2d, res2d, w_bf, b.reshape(1, D), gamma.reshape(1, D),
      beta.reshape(1, D))


def pallas_ffn_add_ln(x2d, w1_bf, b1, w2_bf, b2, gamma, beta, eps=1e-5):
    M, D = x2d.shape
    Hh = w1_bf.shape[1]
    tm = _pick_tm(M)
    tkh = _pick_tk(Hh)
    kern = functools.partial(_ffn_add_ln_kernel, eps)
    blk_bytes = (tm * D * 4 + D * tkh * 2 + tkh * 4 + tkh * D * 2 + 3 * D * 4
                 + tm * tkh * 4 + tm * D * 4 + tm * D * 4)
    return pl.pallas_call(
        kern,
        out_shape=jax.ShapeDtypeStruct((M, D), F32),
        grid=(M // tm, Hh // tkh),
        in_specs=[pl.BlockSpec((tm, D), lambda i, k: (i, 0)),
                  pl.BlockSpec((D, tkh), lambda i, k: (0, k)),
                  pl.BlockSpec((1, tkh), lambda i, k: (0, k)),
                  pl.BlockSpec((tkh, D), lambda i, k: (k, 0)),
                  pl.BlockSpec((1, D), lambda i, k: (0, 0)),
                  pl.BlockSpec((1, D), lambda i, k: (0, 0)),
                  pl.BlockSpec((1, D), lambda i, k: (0, 0))],
        out_specs=pl.BlockSpec((tm, D), lambda i, k: (i, 0)),
        scratch_shapes=[pltpu.VMEM((tm, D), F32)],
        compiler_params=pltpu.CompilerParams(
            dimension_semantics=("parallel", "arbitrary"),
            vmem_limit_bytes=_vmem_limit(blk_bytes)),
    )(x2d, w1_bf, b1.reshape(1, Hh), w2_bf, b2.reshape(1, D),
      gamma.reshape(1, D), beta.reshape(1, D))


# ------------------------------ Parameters ---------------------------------

def init_layer_params(key, d_model, ffn_hidden):
    ks = jax.random.split(key, 8)
    n = lambda k, shape: 0.02 * jax.random.normal(k, shape, F32)
    z = lambda shape: jnp.zeros(shape, F32)
    o = lambda shape: jnp.ones(shape, F32)
    return dict(
        # self-attention (Multiheadattention)
        qkv_w=n(ks[0], (d_model, 3 * d_model)), qkv_b=z((3 * d_model,)),
        sa_w=n(ks[1], (d_model, d_model)),       sa_b=z((d_model,)),
        g1=o((d_model,)), b1=z((d_model,)),
        # cross-attention (MultiHeadCrossAttention)
        kv_w=n(ks[2], (d_model, 2 * d_model)),  kv_b=z((2 * d_model,)),
        q_w=n(ks[3], (d_model, d_model)),       q_b=z((d_model,)),
        ca_w=n(ks[4], (d_model, d_model)),      ca_b=z((d_model,)),
        g2=o((d_model,)), b2=z((d_model,)),
        # feed-forward
        w1=n(ks[5], (d_model, ffn_hidden)),     bb1=z((ffn_hidden,)),
        w2=n(ks[6], (ffn_hidden, d_model)),     bb2=z((d_model,)),
        g3=o((d_model,)), b3=z((d_model,)),
    )


_MATMUL_WEIGHTS = ('qkv_w', 'sa_w', 'kv_w', 'q_w', 'ca_w', 'w1', 'w2')


def prepare_params(layer_params):
    """Pre-cast MXU weight matrices to bf16 ONCE, OUTSIDE jit (halves the weight
    DMA and removes a per-forward f32->bf16 convert); biases / LN scales stay f32."""
    return [{k: (v.astype(BF16) if k in _MATMUL_WEIGHTS else v)
             for k, v in p.items()} for p in layer_params]


# -------------------------- Decoder forward (Pallas) ------------------------

def decoder_layer_forward(p, x, y, decoder_mask, num_heads):
    B, S, D = y.shape
    M = B * S
    y_flat = y.reshape(M, D)

    # --- self attention on y (masked, head-axis softmax) ---
    vals = pallas_self_attn_core(y, decoder_mask, p['qkv_w'], p['qkv_b'],
                                 num_heads)                     # (B,H,S,Dh) bf16
    vals2 = vals.reshape(M, D)   # PyTorch contiguous reshape (no transpose) -> free
    y1 = pallas_proj_add_ln(vals2, y_flat, p['sa_w'], p['sa_b'],
                            p['g1'], p['b1'])                   # (M,D) f32

    # --- encoder-decoder (cross) attention: kv from x, q from y1, no mask ---
    vals = pallas_cross_attn_core(x, y1.reshape(B, S, D),
                                  p['kv_w'], p['kv_b'], p['q_w'], p['q_b'],
                                  num_heads)                    # (B,H,S,Dh) bf16
    vals2 = vals.reshape(M, D)
    y2 = pallas_proj_add_ln(vals2, y1, p['ca_w'], p['ca_b'],
                            p['g2'], p['b2'])                   # (M,D) f32

    # --- position-wise feed-forward ---
    y3 = pallas_ffn_add_ln(y2, p['w1'], p['bb1'], p['w2'], p['bb2'],
                           p['g3'], p['b3'])                    # (M,D) f32
    return y3.reshape(B, S, D)


def decoder_forward(layer_params_bf16, x, y, decoder_mask, num_heads):
    """Decoder = SequentialDecoder over DecoderLayers (same x / mask each layer).
    Expects params pre-processed by `prepare_params` (bf16 matmul weights)."""
    for p in layer_params_bf16:
        y = decoder_layer_forward(p, x, y, decoder_mask, num_heads)
    return y


# ---------------------------- Pure-JAX reference ---------------------------

def _ref_layer(p, x, y, mask, num_heads):
    def linear(t, w, b):
        return t @ w + b

    def layernorm(t, g, be, eps=1e-5):
        mean = t.mean(-1, keepdims=True)
        var = ((t - mean) ** 2).mean(-1, keepdims=True)
        return g * (t - mean) / jnp.sqrt(var + eps) + be

    def attn(q, k, v, m):
        dh = q.shape[-1]
        s = jnp.einsum('bhqd,bhkd->bhqk', q, k) / math.sqrt(dh)
        if m is not None:
            s = s + m
        s = jax.nn.softmax(s, axis=1)          # head-axis softmax (PyTorch quirk)
        return jnp.einsum('bhqk,bhkd->bhqd', s, v)

    B, S, D = y.shape
    H = num_heads
    Dh = D // H

    qkv = linear(y, p['qkv_w'], p['qkv_b'])
    qkv = qkv.reshape(B, S, H, 3 * Dh).transpose(0, 2, 1, 3)
    q, k, v = jnp.split(qkv, 3, axis=-1)
    vals = attn(q, k, v, mask).reshape(B, S, D)
    y1 = layernorm(linear(vals, p['sa_w'], p['sa_b']) + y, p['g1'], p['b1'])

    kv = linear(x, p['kv_w'], p['kv_b']).reshape(B, S, H, 2 * Dh).transpose(0, 2, 1, 3)
    qq = linear(y1, p['q_w'], p['q_b']).reshape(B, S, H, Dh).transpose(0, 2, 1, 3)
    k, v = jnp.split(kv, 2, axis=-1)
    vals = attn(qq, k, v, None).reshape(B, S, D)
    y2 = layernorm(linear(vals, p['ca_w'], p['ca_b']) + y1, p['g2'], p['b2'])

    ff = linear(jnp.maximum(linear(y2, p['w1'], p['bb1']), 0.0),
                p['w2'], p['bb2'])
    y3 = layernorm(ff + y2, p['g3'], p['b3'])
    return y3


def ref_decoder_forward(layer_params, x, y, mask, num_heads):
    for p in layer_params:
        y = _ref_layer(p, x, y, mask, num_heads)
    return y


# --------------------------------- main -------------------------------------

if __name__ == "__main__":
    B, S, D, H, FFN, L = 2, 8, 32, 4, 64, 2

    key = jax.random.PRNGKey(0)
    keys = jax.random.split(key, L + 2)
    params = [init_layer_params(keys[i], D, FFN) for i in range(L)]
    x = jax.random.normal(keys[L], (B, S, D), F32)
    y = jax.random.normal(keys[L + 1], (B, S, D), F32)
    # Finite causal mask (S, S), broadcast over batch/heads.
    decoder_mask = jnp.where(jnp.triu(jnp.ones((S, S), bool), k=1),
                             -1e9, 0.0).astype(F32)

    # bf16 weight cast happens ONCE, outside jit.
    params_bf = prepare_params(params)

    fwd = jax.jit(decoder_forward, static_argnums=(4,))
    out = fwd(params_bf, x, y, decoder_mask, H)
    out = jax.block_until_ready(out)

    ref = ref_decoder_forward(params, x, y, decoder_mask, H)
    assert out.shape == (B, S, D)
    assert bool(jnp.all(jnp.isfinite(out)))
    # bf16 matmul operands with f32 accumulation: allow ~2e-2 tolerance.
    assert bool(jnp.allclose(out, ref, rtol=2e-2, atol=2e-2)), "mismatch vs reference"

    print("KERNEL_OK")
</pallas_src>

<mosaic_0001>
module attributes {stable_mosaic.version = 11 : i64} {
  func.func @_cross_attn_core_kernel(%arg0: i32, %arg1: memref<1x8x32xf32, #tpu.memory_space<vmem>>, %arg2: memref<1x8x32xf32, #tpu.memory_space<vmem>>, %arg3: memref<32x64xbf16, #tpu.memory_space<vmem>>, %arg4: memref<1x64xf32, #tpu.memory_space<vmem>>, %arg5: memref<32x32xbf16, #tpu.memory_space<vmem>>, %arg6: memref<1x32xf32, #tpu.memory_space<vmem>>, %arg7: memref<1x4x8x8xbf16, #tpu.memory_space<vmem>>) attributes {dimension_semantics = [#tpu.dimension_semantics<parallel>], iteration_bounds = array<i64: 2>, scalar_prefetch = 0 : i64, scratch_operands = 0 : i64, tpu.core_type = #tpu.core_type<tc>, window_params = [{transform_indices = @transform_0, window_bounds = array<i64: 1, 8, 32>}, {transform_indices = @transform_1, window_bounds = array<i64: 1, 8, 32>}, {pipeline_mode = #tpu.pipeline_mode<synchronous>, transform_indices = @transform_2, window_bounds = array<i64: 32, 64>}, {pipeline_mode = #tpu.pipeline_mode<synchronous>, transform_indices = @transform_3, window_bounds = array<i64: 1, 64>}, {pipeline_mode = #tpu.pipeline_mode<synchronous>, transform_indices = @transform_4, window_bounds = array<i64: 32, 32>}, {pipeline_mode = #tpu.pipeline_mode<synchronous>, transform_indices = @transform_5, window_bounds = array<i64: 1, 32>}, {transform_indices = @transform_6, window_bounds = array<i64: 1, 4, 8, 8>}]} {
    %c0 = arith.constant 0 : index
    %c0_0 = arith.constant 0 : index
    %c0_1 = arith.constant 0 : index
    %0 = vector.load %arg1[%c0, %c0_0, %c0_1] : memref<1x8x32xf32, #tpu.memory_space<vmem>>, vector<1x8x32xf32>
    %1 = vector.shape_cast %0 : vector<1x8x32xf32> to vector<8x32xf32>
    %2 = arith.truncf %1 : vector<8x32xf32> to vector<8x32xbf16>
    %c0_2 = arith.constant 0 : index
    %c0_3 = arith.constant 0 : index
    %c0_4 = arith.constant 0 : index
    %3 = vector.load %arg2[%c0_2, %c0_3, %c0_4] : memref<1x8x32xf32, #tpu.memory_space<vmem>>, vector<1x8x32xf32>
    %4 = vector.shape_cast %3 : vector<1x8x32xf32> to vector<8x32xf32>
    %5 = arith.truncf %4 : vector<8x32xf32> to vector<8x32xbf16>
    %c0_5 = arith.constant 0 : index
    %c0_6 = arith.constant 0 : index
    %6 = vector.load %arg3[%c0_5, %c0_6] : memref<32x64xbf16, #tpu.memory_space<vmem>>, vector<32x64xbf16>
    %cst = arith.constant dense<0.000000e+00> : vector<8x64xf32>
    %7 = tpu.matmul %2, %6, %cst {dimension_numbers = #tpu.dot_dimension_numbers<[1], [0], [0], [1], [0, 0, 1, 1], [], []>} : vector<8x32xbf16>, vector<32x64xbf16>, vector<8x64xf32> -> vector<8x64xf32>
    %c0_7 = arith.constant 0 : index
    %c0_8 = arith.constant 0 : index
    %8 = vector.load %arg4[%c0_7, %c0_8] : memref<1x64xf32, #tpu.memory_space<vmem>>, vector<1x64xf32>
    %9 = vector.broadcast %8 : vector<1x64xf32> to vector<8x64xf32>
    %10 = arith.addf %7, %9 : vector<8x64xf32>
    %c0_9 = arith.constant 0 : index
    %c0_10 = arith.constant 0 : index
    %11 = vector.load %arg5[%c0_9, %c0_10] : memref<32x32xbf16, #tpu.memory_space<vmem>>, vector<32x32xbf16>
    %cst_11 = arith.constant dense<0.000000e+00> : vector<8x32xf32>
    %12 = tpu.matmul %5, %11, %cst_11 {dimension_numbers = #tpu.dot_dimension_numbers<[1], [0], [0], [1], [0, 0, 1, 1], [], []>} : vector<8x32xbf16>, vector<32x32xbf16>, vector<8x32xf32> -> vector<8x32xf32>
    %c0_12 = arith.constant 0 : index
    %c0_13 = arith.constant 0 : index
    %13 = vector.load %arg6[%c0_12, %c0_13] : memref<1x32xf32, #tpu.memory_space<vmem>>, vector<1x32xf32>
    %14 = vector.broadcast %13 : vector<1x32xf32> to vector<8x32xf32>
    %15 = arith.addf %12, %14 : vector<8x32xf32>
    %16 = vector.extract_strided_slice %15 {offsets = [0, 0], sizes = [8, 8], strides = [1, 1]} : vector<8x32xf32> to vector<8x8xf32>
    %cst_14 = arith.constant 0.353553385 : f32
    %17 = vector.broadcast %cst_14 : f32 to vector<8x8xf32>
    %18 = arith.mulf %16, %17 : vector<8x8xf32>
    %19 = arith.truncf %18 : vector<8x8xf32> to vector<8x8xbf16>
    %20 = vector.extract_strided_slice %10 {offsets = [0, 0], sizes = [8, 8], strides = [1, 1]} : vector<8x64xf32> to vector<8x8xf32>
    %21 = arith.truncf %20 : vector<8x8xf32> to vector<8x8xbf16>
    %cst_15 = arith.constant dense<0.000000e+00> : vector<8x8xf32>
    %22 = tpu.matmul %19, %21, %cst_15 {dimension_numbers = #tpu.dot_dimension_numbers<[1], [1], [0], [0], [0, 0, 1, 0], [], []>} : vector<8x8xbf16>, vector<8x8xbf16>, vector<8x8xf32> -> vector<8x8xf32>
    %23 = vector.extract_strided_slice %15 {offsets = [0, 8], sizes = [8, 8], strides = [1, 1]} : vector<8x32xf32> to vector<8x8xf32>
    %cst_16 = arith.constant 0.353553385 : f32
    %24 = vector.broadcast %cst_16 : f32 to vector<8x8xf32>
    %25 = arith.mulf %23, %24 : vector<8x8xf32>
    %26 = arith.truncf %25 : vector<8x8xf32> to vector<8x8xbf16>
    %27 = vector.extract_strided_slice %10 {offsets = [0, 16], sizes = [8, 8], strides = [1, 1]} : vector<8x64xf32> to vector<8x8xf32>
    %28 = arith.truncf %27 : vector<8x8xf32> to vector<8x8xbf16>
    %cst_17 = arith.constant dense<0.000000e+00> : vector<8x8xf32>
    %29 = tpu.matmul %26, %28, %cst_17 {dimension_numbers = #tpu.dot_dimension_numbers<[1], [1], [0], [0], [0, 0, 1, 0], [], []>} : vector<8x8xbf16>, vector<8x8xbf16>, vector<8x8xf32> -> vector<8x8xf32>
    %30 = vector.extract_strided_slice %15 {offsets = [0, 16], sizes = [8, 8], strides = [1, 1]} : vector<8x32xf32> to vector<8x8xf32>
    %cst_18 = arith.constant 0.353553385 : f32
    %31 = vector.broadcast %cst_18 : f32 to vector<8x8xf32>
    %32 = arith.mulf %30, %31 : vector<8x8xf32>
    %33 = arith.truncf %32 : vector<8x8xf32> to vector<8x8xbf16>
    %34 = vector.extract_strided_slice %10 {offsets = [0, 32], sizes = [8, 8], strides = [1, 1]} : vector<8x64xf32> to vector<8x8xf32>
    %35 = arith.truncf %34 : vector<8x8xf32> to vector<8x8xbf16>
    %cst_19 = arith.constant dense<0.000000e+00> : vector<8x8xf32>
    %36 = tpu.matmul %33, %35, %cst_19 {dimension_numbers = #tpu.dot_dimension_numbers<[1], [1], [0], [0], [0, 0, 1, 0], [], []>} : vector<8x8xbf16>, vector<8x8xbf16>, vector<8x8xf32> -> vector<8x8xf32>
    %37 = vector.extract_strided_slice %15 {offsets = [0, 24], sizes = [8, 8], strides = [1, 1]} : vector<8x32xf32> to vector<8x8xf32>
    %cst_20 = arith.constant 0.353553385 : f32
    %38 = vector.broadcast %cst_20 : f32 to vector<8x8xf32>
    %39 = arith.mulf %37, %38 : vector<8x8xf32>
    %40 = arith.truncf %39 : vector<8x8xf32> to vector<8x8xbf16>
    %41 = vector.extract_strided_slice %10 {offsets = [0, 48], sizes = [8, 8], strides = [1, 1]} : vector<8x64xf32> to vector<8x8xf32>
    %42 = arith.truncf %41 : vector<8x8xf32> to vector<8x8xbf16>
    %cst_21 = arith.constant dense<0.000000e+00> : vector<8x8xf32>
    %43 = tpu.matmul %40, %42, %cst_21 {dimension_numbers = #tpu.dot_dimension_numbers<[1], [1], [0], [0], [0, 0, 1, 0], [], []>} : vector<8x8xbf16>, vector<8x8xbf16>, vector<8x8xf32> -> vector<8x8xf32>
    %44 = arith.maximumf %22, %29 : vector<8x8xf32>
    %45 = arith.maximumf %44, %36 : vector<8x8xf32>
    %46 = arith.maximumf %45, %43 : vector<8x8xf32>
    %47 = arith.subf %22, %46 : vector<8x8xf32>
    %48 = math.exp %47 : vector<8x8xf32>
    %49 = arith.subf %29, %46 : vector<8x8xf32>
    %50 = math.exp %49 : vector<8x8xf32>
    %51 = arith.subf %36, %46 : vector<8x8xf32>
    %52 = math.exp %51 : vector<8x8xf32>
    %53 = arith.subf %43, %46 : vector<8x8xf32>
    %54 = math.exp %53 : vector<8x8xf32>
    %55 = arith.addf %48, %50 : vector<8x8xf32>
    %56 = arith.addf %55, %52 : vector<8x8xf32>
    %57 = arith.addf %56, %54 : vector<8x8xf32>
    %58 = tpu.reciprocal %57 {approx = true} : vector<8x8xf32> -> vector<8x8xf32>
    %59 = vector.extract_strided_slice %10 {offsets = [0, 8], sizes = [8, 8], strides = [1, 1]} : vector<8x64xf32> to vector<8x8xf32>
    %60 = arith.truncf %59 : vector<8x8xf32> to vector<8x8xbf16>
    %61 = arith.mulf %48, %58 : vector<8x8xf32>
    %62 = arith.truncf %61 : vector<8x8xf32> to vector<8x8xbf16>
    %cst_22 = arith.constant dense<0.000000e+00> : vector<8x8xf32>
    %63 = tpu.matmul %62, %60, %cst_22 {dimension_numbers = #tpu.dot_dimension_numbers<[1], [0], [0], [1], [0, 0, 1, 1], [], []>} : vector<8x8xbf16>, vector<8x8xbf16>, vector<8x8xf32> -> vector<8x8xf32>
    %64 = vector.extract_strided_slice %10 {offsets = [0, 24], sizes = [8, 8], strides = [1, 1]} : vector<8x64xf32> to vector<8x8xf32>
    %65 = arith.truncf %64 : vector<8x8xf32> to vector<8x8xbf16>
    %66 = arith.mulf %50, %58 : vector<8x8xf32>
    %67 = arith.truncf %66 : vector<8x8xf32> to vector<8x8xbf16>
    %cst_23 = arith.constant dense<0.000000e+00> : vector<8x8xf32>
    %68 = tpu.matmul %67, %65, %cst_23 {dimension_numbers = #tpu.dot_dimension_numbers<[1], [0], [0], [1], [0, 0, 1, 1], [], []>} : vector<8x8xbf16>, vector<8x8xbf16>, vector<8x8xf32> -> vector<8x8xf32>
    %69 = vector.extract_strided_slice %10 {offsets = [0, 40], sizes = [8, 8], strides = [1, 1]} : vector<8x64xf32> to vector<8x8xf32>
    %70 = arith.truncf %69 : vector<8x8xf32> to vector<8x8xbf16>
    %71 = arith.mulf %52, %58 : vector<8x8xf32>
    %72 = arith.truncf %71 : vector<8x8xf32> to vector<8x8xbf16>
    %cst_24 = arith.constant dense<0.000000e+00> : vector<8x8xf32>
    %73 = tpu.matmul %72, %70, %cst_24 {dimension_numbers = #tpu.dot_dimension_numbers<[1], [0], [0], [1], [0, 0, 1, 1], [], []>} : vector<8x8xbf16>, vector<8x8xbf16>, vector<8x8xf32> -> vector<8x8xf32>
    %74 = vector.extract_strided_slice %10 {offsets = [0, 56], sizes = [8, 8], strides = [1, 1]} : vector<8x64xf32> to vector<8x8xf32>
    %75 = arith.truncf %74 : vector<8x8xf32> to vector<8x8xbf16>
    %76 = arith.mulf %54, %58 : vector<8x8xf32>
    %77 = arith.truncf %76 : vector<8x8xf32> to vector<8x8xbf16>
    %cst_25 = arith.constant dense<0.000000e+00> : vector<8x8xf32>
    %78 = tpu.matmul %77, %75, %cst_25 {dimension_numbers = #tpu.dot_dimension_numbers<[1], [0], [0], [1], [0, 0, 1, 1], [], []>} : vector<8x8xbf16>, vector<8x8xbf16>, vector<8x8xf32> -> vector<8x8xf32>
    %79 = vector.shape_cast %63 : vector<8x8xf32> to vector<1x8x8xf32>
    %80 = vector.shape_cast %68 : vector<8x8xf32> to vector<1x8x8xf32>
    %81 = vector.shape_cast %73 : vector<8x8xf32> to vector<1x8x8xf32>
    %82 = vector.shape_cast %78 : vector<8x8xf32> to vector<1x8x8xf32>
    %83 = tpu.concatenate %79, %80, %81, %82 in 0 : vector<1x8x8xf32>, vector<1x8x8xf32>, vector<1x8x8xf32>, vector<1x8x8xf32> -> vector<4x8x8xf32>
    %84 = arith.truncf %83 : vector<4x8x8xf32> to vector<4x8x8xbf16>
    %c0_26 = arith.constant 0 : index
    %c0_27 = arith.constant 0 : index
    %c0_28 = arith.constant 0 : index
    %c0_29 = arith.constant 0 : index
    %85 = vector.load %arg7[%c0_26, %c0_27, %c0_28, %c0_29] : memref<1x4x8x8xbf16, #tpu.memory_space<vmem>>, vector<1x4x8x8xbf16>
    %86 = vector.shape_cast %85 : vector<1x4x8x8xbf16> to vector<4x8x8xbf16>
    %87 = vector.shape_cast %84 : vector<4x8x8xbf16> to vector<1x4x8x8xbf16>
    tpu.vector_store %arg7[%c0_26, %c0_27, %c0_28, %c0_29], %87 {strides = array<i32>} : memref<1x4x8x8xbf16, #tpu.memory_space<vmem>>, vector<1x4x8x8xbf16>,
    return
  }
  func.func @transform_0(%arg0: i32) -> (i32, i32, i32) {
    %c0_i32 = arith.constant 0 : i32
    %c0_i32_0 = arith.constant 0 : i32
    %c0_i32_1 = arith.constant 0 : i32
    return %arg0, %c0_i32, %c0_i32_0 : i32, i32, i32
  }
  func.func @transform_1(%arg0: i32) -> (i32, i32, i32) {
    %c0_i32 = arith.constant 0 : i32
    %c0_i32_0 = arith.constant 0 : i32
    %c0_i32_1 = arith.constant 0 : i32
    return %arg0, %c0_i32, %c0_i32_0 : i32, i32, i32
  }
  func.func @transform_2(%arg0: i32) -> (i32, i32) {
    %c0_i32 = arith.constant 0 : i32
    %c0_i32_0 = arith.constant 0 : i32
    %c0_i32_1 = arith.constant 0 : i32
    return %c0_i32, %c0_i32_0 : i32, i32
  }
  func.func @transform_3(%arg0: i32) -> (i32, i32) {
    %c0_i32 = arith.constant 0 : i32
    %c0_i32_0 = arith.constant 0 : i32
    %c0_i32_1 = arith.constant 0 : i32
    return %c0_i32, %c0_i32_0 : i32, i32
  }
  func.func @transform_4(%arg0: i32) -> (i32, i32) {
    %c0_i32 = arith.constant 0 : i32
    %c0_i32_0 = arith.constant 0 : i32
    %c0_i32_1 = arith.constant 0 : i32
    return %c0_i32, %c0_i32_0 : i32, i32
  }
  func.func @transform_5(%arg0: i32) -> (i32, i32) {
    %c0_i32 = arith.constant 0 : i32
    %c0_i32_0 = arith.constant 0 : i32
    %c0_i32_1 = arith.constant 0 : i32
    return %c0_i32, %c0_i32_0 : i32, i32
  }
  func.func @transform_6(%arg0: i32) -> (i32, i32, i32, i32) {
    %c0_i32 = arith.constant 0 : i32
    %c0_i32_0 = arith.constant 0 : i32
    %c0_i32_1 = arith.constant 0 : i32
    %c0_i32_2 = arith.constant 0 : i32
    return %arg0, %c0_i32, %c0_i32_0, %c0_i32_1 : i32, i32, i32, i32
  }
}

module attributes {stable_mosaic.version = 11 : i64} {
  func.func @_self_attn_core_kernel(%arg0: i32, %arg1: memref<1x8x32xf32, #tpu.memory_space<vmem>>, %arg2: memref<8x8xf32, #tpu.memory_space<vmem>>, %arg3: memref<32x96xbf16, #tpu.memory_space<vmem>>, %arg4: memref<1x96xf32, #tpu.memory_space<vmem>>, %arg5: memref<1x4x8x8xbf16, #tpu.memory_space<vmem>>) attributes {dimension_semantics = [#tpu.dimension_semantics<parallel>], iteration_bounds = array<i64: 2>, scalar_prefetch = 0 : i64, scratch_operands = 0 : i64, tpu.core_type = #tpu.core_type<tc>, window_params = [{transform_indices = @transform_0, window_bounds = array<i64: 1, 8, 32>}, {pipeline_mode = #tpu.pipeline_mode<synchronous>, transform_indices = @transform_1, window_bounds = array<i64: 8, 8>}, {pipeline_mode = #tpu.pipeline_mode<synchronous>, transform_indices = @transform_2, window_bounds = array<i64: 32, 96>}, {pipeline_mode = #tpu.pipeline_mode<synchronous>, transform_indices = @transform_3, window_bounds = array<i64: 1, 96>}, {transform_indices = @transform_4, window_bounds = array<i64: 1, 4, 8, 8>}]} {
    %c0 = arith.constant 0 : index
    %c0_0 = arith.constant 0 : index
    %c0_1 = arith.constant 0 : index
    %0 = vector.load %arg1[%c0, %c0_0, %c0_1] : memref<1x8x32xf32, #tpu.memory_space<vmem>>, vector<1x8x32xf32>
    %1 = vector.shape_cast %0 : vector<1x8x32xf32> to vector<8x32xf32>
    %2 = arith.truncf %1 : vector<8x32xf32> to vector<8x32xbf16>
    %c0_2 = arith.constant 0 : index
    %c0_3 = arith.constant 0 : index
    %3 = vector.load %arg3[%c0_2, %c0_3] : memref<32x96xbf16, #tpu.memory_space<vmem>>, vector<32x96xbf16>
    %cst = arith.constant dense<0.000000e+00> : vector<8x96xf32>
    %4 = tpu.matmul %2, %3, %cst {dimension_numbers = #tpu.dot_dimension_numbers<[1], [0], [0], [1], [0, 0, 1, 1], [], []>} : vector<8x32xbf16>, vector<32x96xbf16>, vector<8x96xf32> -> vector<8x96xf32>
    %c0_4 = arith.constant 0 : index
    %c0_5 = arith.constant 0 : index
    %5 = vector.load %arg4[%c0_4, %c0_5] : memref<1x96xf32, #tpu.memory_space<vmem>>, vector<1x96xf32>
    %6 = vector.broadcast %5 : vector<1x96xf32> to vector<8x96xf32>
    %7 = arith.addf %4, %6 : vector<8x96xf32>
    %c0_6 = arith.constant 0 : index
    %c0_7 = arith.constant 0 : index
    %8 = vector.load %arg2[%c0_6, %c0_7] : memref<8x8xf32, #tpu.memory_space<vmem>>, vector<8x8xf32>
    %9 = vector.extract_strided_slice %7 {offsets = [0, 0], sizes = [8, 8], strides = [1, 1]} : vector<8x96xf32> to vector<8x8xf32>
    %cst_8 = arith.constant 0.353553385 : f32
    %10 = vector.broadcast %cst_8 : f32 to vector<8x8xf32>
    %11 = arith.mulf %9, %10 : vector<8x8xf32>
    %12 = arith.truncf %11 : vector<8x8xf32> to vector<8x8xbf16>
    %13 = vector.extract_strided_slice %7 {offsets = [0, 8], sizes = [8, 8], strides = [1, 1]} : vector<8x96xf32> to vector<8x8xf32>
    %14 = arith.truncf %13 : vector<8x8xf32> to vector<8x8xbf16>
    %cst_9 = arith.constant dense<0.000000e+00> : vector<8x8xf32>
    %15 = tpu.matmul %12, %14, %cst_9 {dimension_numbers = #tpu.dot_dimension_numbers<[1], [1], [0], [0], [0, 0, 1, 0], [], []>} : vector<8x8xbf16>, vector<8x8xbf16>, vector<8x8xf32> -> vector<8x8xf32>
    %16 = arith.addf %15, %8 : vector<8x8xf32>
    %17 = vector.extract_strided_slice %7 {offsets = [0, 24], sizes = [8, 8], strides = [1, 1]} : vector<8x96xf32> to vector<8x8xf32>
    %cst_10 = arith.constant 0.353553385 : f32
    %18 = vector.broadcast %cst_10 : f32 to vector<8x8xf32>
    %19 = arith.mulf %17, %18 : vector<8x8xf32>
    %20 = arith.truncf %19 : vector<8x8xf32> to vector<8x8xbf16>
    %21 = vector.extract_strided_slice %7 {offsets = [0, 32], sizes = [8, 8], strides = [1, 1]} : vector<8x96xf32> to vector<8x8xf32>
    %22 = arith.truncf %21 : vector<8x8xf32> to vector<8x8xbf16>
    %cst_11 = arith.constant dense<0.000000e+00> : vector<8x8xf32>
    %23 = tpu.matmul %20, %22, %cst_11 {dimension_numbers = #tpu.dot_dimension_numbers<[1], [1], [0], [0], [0, 0, 1, 0], [], []>} : vector<8x8xbf16>, vector<8x8xbf16>, vector<8x8xf32> -> vector<8x8xf32>
    %24 = arith.addf %23, %8 : vector<8x8xf32>
    %25 = vector.extract_strided_slice %7 {offsets = [0, 48], sizes = [8, 8], strides = [1, 1]} : vector<8x96xf32> to vector<8x8xf32>
    %cst_12 = arith.constant 0.353553385 : f32
    %26 = vector.broadcast %cst_12 : f32 to vector<8x8xf32>
    %27 = arith.mulf %25, %26 : vector<8x8xf32>
    %28 = arith.truncf %27 : vector<8x8xf32> to vector<8x8xbf16>
    %29 = vector.extract_strided_slice %7 {offsets = [0, 56], sizes = [8, 8], strides = [1, 1]} : vector<8x96xf32> to vector<8x8xf32>
    %30 = arith.truncf %29 : vector<8x8xf32> to vector<8x8xbf16>
    %cst_13 = arith.constant dense<0.000000e+00> : vector<8x8xf32>
    %31 = tpu.matmul %28, %30, %cst_13 {dimension_numbers = #tpu.dot_dimension_numbers<[1], [1], [0], [0], [0, 0, 1, 0], [], []>} : vector<8x8xbf16>, vector<8x8xbf16>, vector<8x8xf32> -> vector<8x8xf32>
    %32 = arith.addf %31, %8 : vector<8x8xf32>
    %33 = vector.extract_strided_slice %7 {offsets = [0, 72], sizes = [8, 8], strides = [1, 1]} : vector<8x96xf32> to vector<8x8xf32>
    %cst_14 = arith.constant 0.353553385 : f32
    %34 = vector.broadcast %cst_14 : f32 to vector<8x8xf32>
    %35 = arith.mulf %33, %34 : vector<8x8xf32>
    %36 = arith.truncf %35 : vector<8x8xf32> to vector<8x8xbf16>
    %37 = vector.extract_strided_slice %7 {offsets = [0, 80], sizes = [8, 8], strides = [1, 1]} : vector<8x96xf32> to vector<8x8xf32>
    %38 = arith.truncf %37 : vector<8x8xf32> to vector<8x8xbf16>
    %cst_15 = arith.constant dense<0.000000e+00> : vector<8x8xf32>
    %39 = tpu.matmul %36, %38, %cst_15 {dimension_numbers = #tpu.dot_dimension_numbers<[1], [1], [0], [0], [0, 0, 1, 0], [], []>} : vector<8x8xbf16>, vector<8x8xbf16>, vector<8x8xf32> -> vector<8x8xf32>
    %40 = arith.addf %39, %8 : vector<8x8xf32>
    %41 = arith.maximumf %16, %24 : vector<8x8xf32>
    %42 = arith.maximumf %41, %32 : vector<8x8xf32>
    %43 = arith.maximumf %42, %40 : vector<8x8xf32>
    %44 = arith.subf %16, %43 : vector<8x8xf32>
    %45 = math.exp %44 : vector<8x8xf32>
    %46 = arith.subf %24, %43 : vector<8x8xf32>
    %47 = math.exp %46 : vector<8x8xf32>
    %48 = arith.subf %32, %43 : vector<8x8xf32>
    %49 = math.exp %48 : vector<8x8xf32>
    %50 = arith.subf %40, %43 : vector<8x8xf32>
    %51 = math.exp %50 : vector<8x8xf32>
    %52 = arith.addf %45, %47 : vector<8x8xf32>
    %53 = arith.addf %52, %49 : vector<8x8xf32>
    %54 = arith.addf %53, %51 : vector<8x8xf32>
    %55 = tpu.reciprocal %54 {approx = true} : vector<8x8xf32> -> vector<8x8xf32>
    %56 = vector.extract_strided_slice %7 {offsets = [0, 16], sizes = [8, 8], strides = [1, 1]} : vector<8x96xf32> to vector<8x8xf32>
    %57 = arith.truncf %56 : vector<8x8xf32> to vector<8x8xbf16>
    %58 = arith.mulf %45, %55 : vector<8x8xf32>
    %59 = arith.truncf %58 : vector<8x8xf32> to vector<8x8xbf16>
    %cst_16 = arith.constant dense<0.000000e+00> : vector<8x8xf32>
    %60 = tpu.matmul %59, %57, %cst_16 {dimension_numbers = #tpu.dot_dimension_numbers<[1], [0], [0], [1], [0, 0, 1, 1], [], []>} : vector<8x8xbf16>, vector<8x8xbf16>, vector<8x8xf32> -> vector<8x8xf32>
    %61 = vector.extract_strided_slice %7 {offsets = [0, 40], sizes = [8, 8], strides = [1, 1]} : vector<8x96xf32> to vector<8x8xf32>
    %62 = arith.truncf %61 : vector<8x8xf32> to vector<8x8xbf16>
    %63 = arith.mulf %47, %55 : vector<8x8xf32>
    %64 = arith.truncf %63 : vector<8x8xf32> to vector<8x8xbf16>
    %cst_17 = arith.constant dense<0.000000e+00> : vector<8x8xf32>
    %65 = tpu.matmul %64, %62, %cst_17 {dimension_numbers = #tpu.dot_dimension_numbers<[1], [0], [0], [1], [0, 0, 1, 1], [], []>} : vector<8x8xbf16>, vector<8x8xbf16>, vector<8x8xf32> -> vector<8x8xf32>
    %66 = vector.extract_strided_slice %7 {offsets = [0, 64], sizes = [8, 8], strides = [1, 1]} : vector<8x96xf32> to vector<8x8xf32>
    %67 = arith.truncf %66 : vector<8x8xf32> to vector<8x8xbf16>
    %68 = arith.mulf %49, %55 : vector<8x8xf32>
    %69 = arith.truncf %68 : vector<8x8xf32> to vector<8x8xbf16>
    %cst_18 = arith.constant dense<0.000000e+00> : vector<8x8xf32>
    %70 = tpu.matmul %69, %67, %cst_18 {dimension_numbers = #tpu.dot_dimension_numbers<[1], [0], [0], [1], [0, 0, 1, 1], [], []>} : vector<8x8xbf16>, vector<8x8xbf16>, vector<8x8xf32> -> vector<8x8xf32>
    %71 = vector.extract_strided_slice %7 {offsets = [0, 88], sizes = [8, 8], strides = [1, 1]} : vector<8x96xf32> to vector<8x8xf32>
    %72 = arith.truncf %71 : vector<8x8xf32> to vector<8x8xbf16>
    %73 = arith.mulf %51, %55 : vector<8x8xf32>
    %74 = arith.truncf %73 : vector<8x8xf32> to vector<8x8xbf16>
    %cst_19 = arith.constant dense<0.000000e+00> : vector<8x8xf32>
    %75 = tpu.matmul %74, %72, %cst_19 {dimension_numbers = #tpu.dot_dimension_numbers<[1], [0], [0], [1], [0, 0, 1, 1], [], []>} : vector<8x8xbf16>, vector<8x8xbf16>, vector<8x8xf32> -> vector<8x8xf32>
    %76 = vector.shape_cast %60 : vector<8x8xf32> to vector<1x8x8xf32>
    %77 = vector.shape_cast %65 : vector<8x8xf32> to vector<1x8x8xf32>
    %78 = vector.shape_cast %70 : vector<8x8xf32> to vector<1x8x8xf32>
    %79 = vector.shape_cast %75 : vector<8x8xf32> to vector<1x8x8xf32>
    %80 = tpu.concatenate %76, %77, %78, %79 in 0 : vector<1x8x8xf32>, vector<1x8x8xf32>, vector<1x8x8xf32>, vector<1x8x8xf32> -> vector<4x8x8xf32>
    %81 = arith.truncf %80 : vector<4x8x8xf32> to vector<4x8x8xbf16>
    %c0_20 = arith.constant 0 : index
    %c0_21 = arith.constant 0 : index
    %c0_22 = arith.constant 0 : index
    %c0_23 = arith.constant 0 : index
    %82 = vector.load %arg5[%c0_20, %c0_21, %c0_22, %c0_23] : memref<1x4x8x8xbf16, #tpu.memory_space<vmem>>, vector<1x4x8x8xbf16>
    %83 = vector.shape_cast %82 : vector<1x4x8x8xbf16> to vector<4x8x8xbf16>
    %84 = vector.shape_cast %81 : vector<4x8x8xbf16> to vector<1x4x8x8xbf16>
    tpu.vector_store %arg5[%c0_20, %c0_21, %c0_22, %c0_23], %84 {strides = array<i32>} : memref<1x4x8x8xbf16, #tpu.memory_space<vmem>>, vector<1x4x8x8xbf16>,
    return
  }
  func.func @transform_0(%arg0: i32) -> (i32, i32, i32) {
    %c0_i32 = arith.constant 0 : i32
    %c0_i32_0 = arith.constant 0 : i32
    %c0_i32_1 = arith.constant 0 : i32
    return %arg0, %c0_i32, %c0_i32_0 : i32, i32, i32
  }
  func.func @transform_1(%arg0: i32) -> (i32, i32) {
    %c0_i32 = arith.constant 0 : i32
    %c0_i32_0 = arith.constant 0 : i32
    %c0_i32_1 = arith.constant 0 : i32
    return %c0_i32, %c0_i32_0 : i32, i32
  }
  func.func @transform_2(%arg0: i32) -> (i32, i32) {
    %c0_i32 = arith.constant 0 : i32
    %c0_i32_0 = arith.constant 0 : i32
    %c0_i32_1 = arith.constant 0 : i32
    return %c0_i32, %c0_i32_0 : i32, i32
  }
  func.func @transform_3(%arg0: i32) -> (i32, i32) {
    %c0_i32 = arith.constant 0 : i32
    %c0_i32_0 = arith.constant 0 : i32
    %c0_i32_1 = arith.constant 0 : i32
    return %c0_i32, %c0_i32_0 : i32, i32
  }
  func.func @transform_4(%arg0: i32) -> (i32, i32, i32, i32) {
    %c0_i32 = arith.constant 0 : i32
    %c0_i32_0 = arith.constant 0 : i32
    %c0_i32_1 = arith.constant 0 : i32
    %c0_i32_2 = arith.constant 0 : i32
    return %arg0, %c0_i32, %c0_i32_0, %c0_i32_1 : i32, i32, i32, i32
  }
}

module attributes {stable_mosaic.version = 11 : i64} {
  func.func @_proj_add_ln_kernel(%arg0: i32, %arg1: memref<8x32xbf16, #tpu.memory_space<vmem>>, %arg2: memref<8x32xf32, #tpu.memory_space<vmem>>, %arg3: memref<32x32xbf16, #tpu.memory_space<vmem>>, %arg4: memref<1x32xf32, #tpu.memory_space<vmem>>, %arg5: memref<1x32xf32, #tpu.memory_space<vmem>>, %arg6: memref<1x32xf32, #tpu.memory_space<vmem>>, %arg7: memref<8x32xf32, #tpu.memory_space<vmem>>) attributes {dimension_semantics = [#tpu.dimension_semantics<parallel>], iteration_bounds = array<i64: 2>, scalar_prefetch = 0 : i64, scratch_operands = 0 : i64, tpu.core_type = #tpu.core_type<tc>, window_params = [{transform_indices = @transform_0, window_bounds = array<i64: 8, 32>}, {transform_indices = @transform_1, window_bounds = array<i64: 8, 32>}, {pipeline_mode = #tpu.pipeline_mode<synchronous>, transform_indices = @transform_2, window_bounds = array<i64: 32, 32>}, {pipeline_mode = #tpu.pipeline_mode<synchronous>, transform_indices = @transform_3, window_bounds = array<i64: 1, 32>}, {pipeline_mode = #tpu.pipeline_mode<synchronous>, transform_indices = @transform_4, window_bounds = array<i64: 1, 32>}, {pipeline_mode = #tpu.pipeline_mode<synchronous>, transform_indices = @transform_5, window_bounds = array<i64: 1, 32>}, {transform_indices = @transform_6, window_bounds = array<i64: 8, 32>}]} {
    %c0 = arith.constant 0 : index
    %c0_0 = arith.constant 0 : index
    %0 = vector.load %arg1[%c0, %c0_0] : memref<8x32xbf16, #tpu.memory_space<vmem>>, vector<8x32xbf16>
    %c0_1 = arith.constant 0 : index
    %c0_2 = arith.constant 0 : index
    %1 = vector.load %arg3[%c0_1, %c0_2] : memref<32x32xbf16, #tpu.memory_space<vmem>>, vector<32x32xbf16>
    %cst = arith.constant dense<0.000000e+00> : vector<8x32xf32>
    %2 = tpu.matmul %0, %1, %cst {dimension_numbers = #tpu.dot_dimension_numbers<[1], [0], [0], [1], [0, 0, 1, 1], [], []>} : vector<8x32xbf16>, vector<32x32xbf16>, vector<8x32xf32> -> vector<8x32xf32>
    %c0_3 = arith.constant 0 : index
    %c0_4 = arith.constant 0 : index
    %3 = vector.load %arg4[%c0_3, %c0_4] : memref<1x32xf32, #tpu.memory_space<vmem>>, vector<1x32xf32>
    %4 = vector.broadcast %3 : vector<1x32xf32> to vector<8x32xf32>
    %5 = arith.addf %2, %4 : vector<8x32xf32>
    %c0_5 = arith.constant 0 : index
    %c0_6 = arith.constant 0 : index
    %6 = vector.load %arg2[%c0_5, %c0_6] : memref<8x32xf32, #tpu.memory_space<vmem>>, vector<8x32xf32>
    %7 = arith.addf %5, %6 : vector<8x32xf32>
    %cst_7 = arith.constant dense<0.000000e+00> : vector<8xf32>
    %8 = vector.multi_reduction <add>, %7, %cst_7 [1] : vector<8x32xf32> to vector<8xf32>
    %9 = vector.shape_cast %8 : vector<8xf32> to vector<8x1xf32>
    %cst_8 = arith.constant 3.200000e+01 : f32
    %10 = vector.broadcast %cst_8 : f32 to vector<8x1xf32>
    %11 = arith.divf %9, %10 : vector<8x1xf32>
    %12 = vector.broadcast %11 : vector<8x1xf32> to vector<8x32xf32>
    %13 = arith.subf %7, %12 : vector<8x32xf32>
    %14 = arith.mulf %13, %13 : vector<8x32xf32>
    %cst_9 = arith.constant dense<0.000000e+00> : vector<8xf32>
    %15 = vector.multi_reduction <add>, %14, %cst_9 [1] : vector<8x32xf32> to vector<8xf32>
    %16 = vector.shape_cast %15 : vector<8xf32> to vector<8x1xf32>
    %cst_10 = arith.constant 3.200000e+01 : f32
    %17 = vector.broadcast %cst_10 : f32 to vector<8x1xf32>
    %18 = arith.divf %16, %17 : vector<8x1xf32>
    %19 = vector.broadcast %11 : vector<8x1xf32> to vector<8x32xf32>
    %20 = arith.subf %7, %19 : vector<8x32xf32>
    %cst_11 = arith.constant 9.99999974E-6 : f32
    %21 = vector.broadcast %cst_11 : f32 to vector<8x1xf32>
    %22 = arith.addf %18, %21 : vector<8x1xf32>
    %23 = math.rsqrt %22 : vector<8x1xf32>
    %24 = vector.broadcast %23 : vector<8x1xf32> to vector<8x32xf32>
    %25 = arith.mulf %20, %24 : vector<8x32xf32>
    %c0_12 = arith.constant 0 : index
    %c0_13 = arith.constant 0 : index
    %26 = vector.load %arg5[%c0_12, %c0_13] : memref<1x32xf32, #tpu.memory_space<vmem>>, vector<1x32xf32>
    %27 = vector.broadcast %26 : vector<1x32xf32> to vector<8x32xf32>
    %28 = arith.mulf %27, %25 : vector<8x32xf32>
    %c0_14 = arith.constant 0 : index
    %c0_15 = arith.constant 0 : index
    %29 = vector.load %arg6[%c0_14, %c0_15] : memref<1x32xf32, #tpu.memory_space<vmem>>, vector<1x32xf32>
    %30 = vector.broadcast %29 : vector<1x32xf32> to vector<8x32xf32>
    %31 = arith.addf %28, %30 : vector<8x32xf32>
    %c0_16 = arith.constant 0 : index
    %c0_17 = arith.constant 0 : index
    %32 = vector.load %arg7[%c0_16, %c0_17] : memref<8x32xf32, #tpu.memory_space<vmem>>, vector<8x32xf32>
    tpu.vector_store %arg7[%c0_16, %c0_17], %31 {strides = array<i32>} : memref<8x32xf32, #tpu.memory_space<vmem>>, vector<8x32xf32>,
    return
  }
  func.func @transform_0(%arg0: i32) -> (i32, i32) {
    %c0_i32 = arith.constant 0 : i32
    %c0_i32_0 = arith.constant 0 : i32
    return %arg0, %c0_i32 : i32, i32
  }
  func.func @transform_1(%arg0: i32) -> (i32, i32) {
    %c0_i32 = arith.constant 0 : i32
    %c0_i32_0 = arith.constant 0 : i32
    return %arg0, %c0_i32 : i32, i32
  }
  func.func @transform_2(%arg0: i32) -> (i32, i32) {
    %c0_i32 = arith.constant 0 : i32
    %c0_i32_0 = arith.constant 0 : i32
    %c0_i32_1 = arith.constant 0 : i32
    return %c0_i32, %c0_i32_0 : i32, i32
  }
  func.func @transform_3(%arg0: i32) -> (i32, i32) {
    %c0_i32 = arith.constant 0 : i32
    %c0_i32_0 = arith.constant 0 : i32
    %c0_i32_1 = arith.constant 0 : i32
    return %c0_i32, %c0_i32_0 : i32, i32
  }
  func.func @transform_4(%arg0: i32) -> (i32, i32) {
    %c0_i32 = arith.constant 0 : i32
    %c0_i32_0 = arith.constant 0 : i32
    %c0_i32_1 = arith.constant 0 : i32
    return %c0_i32, %c0_i32_0 : i32, i32
  }
  func.func @transform_5(%arg0: i32) -> (i32, i32) {
    %c0_i32 = arith.constant 0 : i32
    %c0_i32_0 = arith.constant 0 : i32
    %c0_i32_1 = arith.constant 0 : i32
    return %c0_i32, %c0_i32_0 : i32, i32
  }
  func.func @transform_6(%arg0: i32) -> (i32, i32) {
    %c0_i32 = arith.constant 0 : i32
    %c0_i32_0 = arith.constant 0 : i32
    return %arg0, %c0_i32 : i32, i32
  }
}

module attributes {stable_mosaic.version = 11 : i64} {
  func.func @_ffn_add_ln_kernel(%arg0: i32, %arg1: i32, %arg2: memref<8x32xf32, #tpu.memory_space<vmem>>, %arg3: memref<32x64xbf16, #tpu.memory_space<vmem>>, %arg4: memref<1x64xf32, #tpu.memory_space<vmem>>, %arg5: memref<64x32xbf16, #tpu.memory_space<vmem>>, %arg6: memref<1x32xf32, #tpu.memory_space<vmem>>, %arg7: memref<1x32xf32, #tpu.memory_space<vmem>>, %arg8: memref<1x32xf32, #tpu.memory_space<vmem>>, %arg9: memref<8x32xf32, #tpu.memory_space<vmem>>, %arg10: memref<8x32xf32, #tpu.memory_space<vmem>>) attributes {dimension_semantics = [#tpu.dimension_semantics<parallel>, #tpu.dimension_semantics<arbitrary>], iteration_bounds = array<i64: 2, 1>, scalar_prefetch = 0 : i64, scratch_operands = 1 : i64, tpu.core_type = #tpu.core_type<tc>, window_params = [{transform_indices = @transform_0, window_bounds = array<i64: 8, 32>}, {transform_indices = @transform_1, window_bounds = array<i64: 32, 64>}, {transform_indices = @transform_2, window_bounds = array<i64: 1, 64>}, {transform_indices = @transform_3, window_bounds = array<i64: 64, 32>}, {pipeline_mode = #tpu.pipeline_mode<synchronous>, transform_indices = @transform_4, window_bounds = array<i64: 1, 32>}, {pipeline_mode = #tpu.pipeline_mode<synchronous>, transform_indices = @transform_5, window_bounds = array<i64: 1, 32>}, {pipeline_mode = #tpu.pipeline_mode<synchronous>, transform_indices = @transform_6, window_bounds = array<i64: 1, 32>}, {transform_indices = @transform_7, window_bounds = array<i64: 8, 32>}]} {
    %c0_i32 = arith.constant 0 : i32
    %0 = arith.cmpi eq, %arg1, %c0_i32 : i32
    %1 = arith.extui %0 : i1 to i32
    %c0_i32_0 = arith.constant 0 : i32
    %2 = arith.cmpi ne, %1, %c0_i32_0 : i32
    scf.if %2 {
      %cst_16 = arith.constant 0.000000e+00 : f32
      %21 = vector.broadcast %cst_16 : f32 to vector<8x32xf32>
      %c0_17 = arith.constant 0 : index
      %c0_18 = arith.constant 0 : index
      %22 = vector.load %arg10[%c0_17, %c0_18] : memref<8x32xf32, #tpu.memory_space<vmem>>, vector<8x32xf32>
      tpu.vector_store %arg10[%c0_17, %c0_18], %21 {strides = array<i32>} : memref<8x32xf32, #tpu.memory_space<vmem>>, vector<8x32xf32>,
    } else {
    }
    %c0 = arith.constant 0 : index
    %c0_1 = arith.constant 0 : index
    %3 = vector.load %arg2[%c0, %c0_1] : memref<8x32xf32, #tpu.memory_space<vmem>>, vector<8x32xf32>
    %4 = arith.truncf %3 : vector<8x32xf32> to vector<8x32xbf16>
    %c0_2 = arith.constant 0 : index
    %c0_3 = arith.constant 0 : index
    %5 = vector.load %arg3[%c0_2, %c0_3] : memref<32x64xbf16, #tpu.memory_space<vmem>>, vector<32x64xbf16>
    %cst = arith.constant dense<0.000000e+00> : vector<8x64xf32>
    %6 = tpu.matmul %4, %5, %cst {dimension_numbers = #tpu.dot_dimension_numbers<[1], [0], [0], [1], [0, 0, 1, 1], [], []>} : vector<8x32xbf16>, vector<32x64xbf16>, vector<8x64xf32> -> vector<8x64xf32>
    %c0_4 = arith.constant 0 : index
    %c0_5 = arith.constant 0 : index
    %7 = vector.load %arg4[%c0_4, %c0_5] : memref<1x64xf32, #tpu.memory_space<vmem>>, vector<1x64xf32>
    %8 = vector.broadcast %7 : vector<1x64xf32> to vector<8x64xf32>
    %9 = arith.addf %6, %8 : vector<8x64xf32>
    %cst_6 = arith.constant 0.000000e+00 : f32
    %10 = vector.broadcast %cst_6 : f32 to vector<8x64xf32>
    %11 = arith.maximumf %9, %10 : vector<8x64xf32>
    %c0_7 = arith.constant 0 : index
    %c0_8 = arith.constant 0 : index
    %12 = vector.load %arg10[%c0_7, %c0_8] : memref<8x32xf32, #tpu.memory_space<vmem>>, vector<8x32xf32>
    %13 = arith.truncf %11 : vector<8x64xf32> to vector<8x64xbf16>
    %c0_9 = arith.constant 0 : index
    %c0_10 = arith.constant 0 : index
    %14 = vector.load %arg5[%c0_9, %c0_10] : memref<64x32xbf16, #tpu.memory_space<vmem>>, vector<64x32xbf16>
    %cst_11 = arith.constant dense<0.000000e+00> : vector<8x32xf32>
    %15 = tpu.matmul %13, %14, %cst_11 {dimension_numbers = #tpu.dot_dimension_numbers<[1], [0], [0], [1], [0, 0, 1, 1], [], []>} : vector<8x64xbf16>, vector<64x32xbf16>, vector<8x32xf32> -> vector<8x32xf32>
    %16 = arith.addf %12, %15 : vector<8x32xf32>
    %c0_12 = arith.constant 0 : index
    %c0_13 = arith.constant 0 : index
    %17 = vector.load %arg10[%c0_12, %c0_13] : memref<8x32xf32, #tpu.memory_space<vmem>>, vector<8x32xf32>
    tpu.vector_store %arg10[%c0_12, %c0_13], %16 {strides = array<i32>} : memref<8x32xf32, #tpu.memory_space<vmem>>, vector<8x32xf32>,
    %c0_i32_14 = arith.constant 0 : i32
    %18 = arith.cmpi eq, %arg1, %c0_i32_14 : i32
    %19 = arith.extui %18 : i1 to i32
    %c0_i32_15 = arith.constant 0 : i32
    %20 = arith.cmpi ne, %19, %c0_i32_15 : i32
    scf.if %20 {
      %c0_16 = arith.constant 0 : index
      %c0_17 = arith.constant 0 : index
      %21 = vector.load %arg10[%c0_16, %c0_17] : memref<8x32xf32, #tpu.memory_space<vmem>>, vector<8x32xf32>
      %c0_18 = arith.constant 0 : index
      %c0_19 = arith.constant 0 : index
      %22 = vector.load %arg6[%c0_18, %c0_19] : memref<1x32xf32, #tpu.memory_space<vmem>>, vector<1x32xf32>
      %23 = vector.broadcast %22 : vector<1x32xf32> to vector<8x32xf32>
      %24 = arith.addf %21, %23 : vector<8x32xf32>
      %c0_20 = arith.constant 0 : index
      %c0_21 = arith.constant 0 : index
      %25 = vector.load %arg2[%c0_20, %c0_21] : memref<8x32xf32, #tpu.memory_space<vmem>>, vector<8x32xf32>
      %26 = arith.addf %24, %25 : vector<8x32xf32>
      %cst_22 = arith.constant dense<0.000000e+00> : vector<8xf32>
      %27 = vector.multi_reduction <add>, %26, %cst_22 [1] : vector<8x32xf32> to vector<8xf32>
      %28 = vector.shape_cast %27 : vector<8xf32> to vector<8x1xf32>
      %cst_23 = arith.constant 3.200000e+01 : f32
      %29 = vector.broadcast %cst_23 : f32 to vector<8x1xf32>
      %30 = arith.divf %28, %29 : vector<8x1xf32>
      %31 = vector.broadcast %30 : vector<8x1xf32> to vector<8x32xf32>
      %32 = arith.subf %26, %31 : vector<8x32xf32>
      %33 = arith.mulf %32, %32 : vector<8x32xf32>
      %cst_24 = arith.constant dense<0.000000e+00> : vector<8xf32>
      %34 = vector.multi_reduction <add>, %33, %cst_24 [1] : vector<8x32xf32> to vector<8xf32>
      %35 = vector.shape_cast %34 : vector<8xf32> to vector<8x1xf32>
      %cst_25 = arith.constant 3.200000e+01 : f32
      %36 = vector.broadcast %cst_25 : f32 to vector<8x1xf32>
      %37 = arith.divf %35, %36 : vector<8x1xf32>
      %38 = vector.broadcast %30 : vector<8x1xf32> to vector<8x32xf32>
      %39 = arith.subf %26, %38 : vector<8x32xf32>
      %cst_26 = arith.constant 9.99999974E-6 : f32
      %40 = vector.broadcast %cst_26 : f32 to vector<8x1xf32>
      %41 = arith.addf %37, %40 : vector<8x1xf32>
      %42 = math.rsqrt %41 : vector<8x1xf32>
      %43 = vector.broadcast %42 : vector<8x1xf32> to vector<8x32xf32>
      %44 = arith.mulf %39, %43 : vector<8x32xf32>
      %c0_27 = arith.constant 0 : index
      %c0_28 = arith.constant 0 : index
      %45 = vector.load %arg7[%c0_27, %c0_28] : memref<1x32xf32, #tpu.memory_space<vmem>>, vector<1x32xf32>
      %46 = vector.broadcast %45 : vector<1x32xf32> to vector<8x32xf32>
      %47 = arith.mulf %46, %44 : vector<8x32xf32>
      %c0_29 = arith.constant 0 : index
      %c0_30 = arith.constant 0 : index
      %48 = vector.load %arg8[%c0_29, %c0_30] : memref<1x32xf32, #tpu.memory_space<vmem>>, vector<1x32xf32>
      %49 = vector.broadcast %48 : vector<1x32xf32> to vector<8x32xf32>
      %50 = arith.addf %47, %49 : vector<8x32xf32>
      %c0_31 = arith.constant 0 : index
      %c0_32 = arith.constant 0 : index
      %51 = vector.load %arg9[%c0_31, %c0_32] : memref<8x32xf32, #tpu.memory_space<vmem>>, vector<8x32xf32>
      tpu.vector_store %arg9[%c0_31, %c0_32], %50 {strides = array<i32>} : memref<8x32xf32, #tpu.memory_space<vmem>>, vector<8x32xf32>,
    } else {
    }
    return
  }
  func.func @transform_0(%arg0: i32, %arg1: i32) -> (i32, i32) {
    %c0_i32 = arith.constant 0 : i32
    %c0_i32_0 = arith.constant 0 : i32
    return %arg0, %c0_i32 : i32, i32
  }
  func.func @transform_1(%arg0: i32, %arg1: i32) -> (i32, i32) {
    %c0_i32 = arith.constant 0 : i32
    %c0_i32_0 = arith.constant 0 : i32
    return %c0_i32, %arg1 : i32, i32
  }
  func.func @transform_2(%arg0: i32, %arg1: i32) -> (i32, i32) {
    %c0_i32 = arith.constant 0 : i32
    %c0_i32_0 = arith.constant 0 : i32
    return %c0_i32, %arg1 : i32, i32
  }
  func.func @transform_3(%arg0: i32, %arg1: i32) -> (i32, i32) {
    %c0_i32 = arith.constant 0 : i32
    %c0_i32_0 = arith.constant 0 : i32
    return %arg1, %c0_i32 : i32, i32
  }
  func.func @transform_4(%arg0: i32, %arg1: i32) -> (i32, i32) {
    %c0_i32 = arith.constant 0 : i32
    %c0_i32_0 = arith.constant 0 : i32
    %c0_i32_1 = arith.constant 0 : i32
    return %c0_i32, %c0_i32_0 : i32, i32
  }
  func.func @transform_5(%arg0: i32, %arg1: i32) -> (i32, i32) {
    %c0_i32 = arith.constant 0 : i32
    %c0_i32_0 = arith.constant 0 : i32
    %c0_i32_1 = arith.constant 0 : i32
    return %c0_i32, %c0_i32_0 : i32, i32
  }
  func.func @transform_6(%arg0: i32, %arg1: i32) -> (i32, i32) {
    %c0_i32 = arith.constant 0 : i32
    %c0_i32_0 = arith.constant 0 : i32
    %c0_i32_1 = arith.constant 0 : i32
    return %c0_i32, %c0_i32_0 : i32, i32
  }
  func.func @transform_7(%arg0: i32, %arg1: i32) -> (i32, i32) {
    %c0_i32 = arith.constant 0 : i32
    %c0_i32_0 = arith.constant 0 : i32
    return %arg0, %c0_i32 : i32, i32
  }
}

module attributes {stable_mosaic.version = 11 : i64} {
  func.func @_ffn_add_ln_kernel(%arg0: i32, %arg1: i32, %arg2: memref<8x32xf32, #tpu.memory_space<vmem>>, %arg3: memref<32x64xbf16, #tpu.memory_space<vmem>>, %arg4: memref<1x64xf32, #tpu.memory_space<vmem>>, %arg5: memref<64x32xbf16, #tpu.memory_space<vmem>>, %arg6: memref<1x32xf32, #tpu.memory_space<vmem>>, %arg7: memref<1x32xf32, #tpu.memory_space<vmem>>, %arg8: memref<1x32xf32, #tpu.memory_space<vmem>>, %arg9: memref<8x32xf32, #tpu.memory_space<vmem>>, %arg10: memref<8x32xf32, #tpu.memory_space<vmem>>) attributes {dimension_semantics = [#tpu.dimension_semantics<parallel>, #tpu.dimension_semantics<arbitrary>], iteration_bounds = array<i64: 2, 1>, scalar_prefetch = 0 : i64, scratch_operands = 1 : i64, tpu.core_type = #tpu.core_type<tc>, window_params = [{transform_indices = @transform_0, window_bounds = array<i64: 8, 32>}, {transform_indices = @transform_1, window_bounds = array<i64: 32, 64>}, {transform_indices = @transform_2, window_bounds = array<i64: 1, 64>}, {transform_indices = @transform_3, window_bounds = array<i64: 64, 32>}, {pipeline_mode = #tpu.pipeline_mode<synchronous>, transform_indices = @transform_4, window_bounds = array<i64: 1, 32>}, {pipeline_mode = #tpu.pipeline_mode<synchronous>, transform_indices = @transform_5, window_bounds = array<i64: 1, 32>}, {pipeline_mode = #tpu.pipeline_mode<synchronous>, transform_indices = @transform_6, window_bounds = array<i64: 1, 32>}, {transform_indices = @transform_7, window_bounds = array<i64: 8, 32>}]} {
    %c0_i32 = arith.constant 0 : i32
    %0 = arith.cmpi eq, %arg1, %c0_i32 : i32
    %1 = arith.extui %0 : i1 to i32
    %c0_i32_0 = arith.constant 0 : i32
    %2 = arith.cmpi ne, %1, %c0_i32_0 : i32
    scf.if %2 {
      %cst_16 = arith.constant 0.000000e+00 : f32
      %21 = vector.broadcast %cst_16 : f32 to vector<8x32xf32>
      %c0_17 = arith.constant 0 : index
      %c0_18 = arith.constant 0 : index
      %22 = vector.load %arg10[%c0_17, %c0_18] : memref<8x32xf32, #tpu.memory_space<vmem>>, vector<8x32xf32>
      tpu.vector_store %arg10[%c0_17, %c0_18], %21 {strides = array<i32>} : memref<8x32xf32, #tpu.memory_space<vmem>>, vector<8x32xf32>,
    } else {
    }
    %c0 = arith.constant 0 : index
    %c0_1 = arith.constant 0 : index
    %3 = vector.load %arg2[%c0, %c0_1] : memref<8x32xf32, #tpu.memory_space<vmem>>, vector<8x32xf32>
    %4 = arith.truncf %3 : vector<8x32xf32> to vector<8x32xbf16>
    %c0_2 = arith.constant 0 : index
    %c0_3 = arith.constant 0 : index
    %5 = vector.load %arg3[%c0_2, %c0_3] : memref<32x64xbf16, #tpu.memory_space<vmem>>, vector<32x64xbf16>
    %cst = arith.constant dense<0.000000e+00> : vector<8x64xf32>
    %6 = tpu.matmul %4, %5, %cst {dimension_numbers = #tpu.dot_dimension_numbers<[1], [0], [0], [1], [0, 0, 1, 1], [], []>} : vector<8x32xbf16>, vector<32x64xbf16>, vector<8x64xf32> -> vector<8x64xf32>
    %c0_4 = arith.constant 0 : index
    %c0_5 = arith.constant 0 : index
    %7 = vector.load %arg4[%c0_4, %c0_5] : memref<1x64xf32, #tpu.memory_space<vmem>>, vector<1x64xf32>
    %8 = vector.broadcast %7 : vector<1x64xf32> to vector<8x64xf32>
    %9 = arith.addf %6, %8 : vector<8x64xf32>
    %cst_6 = arith.constant 0.000000e+00 : f32
    %10 = vector.broadcast %cst_6 : f32 to vector<8x64xf32>
    %11 = arith.maximumf %9, %10 : vector<8x64xf32>
    %c0_7 = arith.constant 0 : index
    %c0_8 = arith.constant 0 : index
    %12 = vector.load %arg10[%c0_7, %c0_8] : memref<8x32xf32, #tpu.memory_space<vmem>>, vector<8x32xf32>
    %13 = arith.truncf %11 : vector<8x64xf32> to vector<8x64xbf16>
    %c0_9 = arith.constant 0 : index
    %c0_10 = arith.constant 0 : index
    %14 = vector.load %arg5[%c0_9, %c0_10] : memref<64x32xbf16, #tpu.memory_space<vmem>>, vector<64x32xbf16>
    %cst_11 = arith.constant dense<0.000000e+00> : vector<8x32xf32>
    %15 = tpu.matmul %13, %14, %cst_11 {dimension_numbers = #tpu.dot_dimension_numbers<[1], [0], [0], [1], [0, 0, 1, 1], [], []>} : vector<8x64xbf16>, vector<64x32xbf16>, vector<8x32xf32> -> vector<8x32xf32>
    %16 = arith.addf %12, %15 : vector<8x32xf32>
    %c0_12 = arith.constant 0 : index
    %c0_13 = arith.constant 0 : index
    %17 = vector.load %arg10[%c0_12, %c0_13] : memref<8x32xf32, #tpu.memory_space<vmem>>, vector<8x32xf32>
    tpu.vector_store %arg10[%c0_12, %c0_13], %16 {strides = array<i32>} : memref<8x32xf32, #tpu.memory_space<vmem>>, vector<8x32xf32>,
    %c0_i32_14 = arith.constant 0 : i32
    %18 = arith.cmpi eq, %arg1, %c0_i32_14 : i32
    %19 = arith.extui %18 : i1 to i32
    %c0_i32_15 = arith.constant 0 : i32
    %20 = arith.cmpi ne, %19, %c0_i32_15 : i32
    scf.if %20 {
      %c0_16 = arith.constant 0 : index
      %c0_17 = arith.constant 0 : index
      %21 = vector.load %arg10[%c0_16, %c0_17] : memref<8x32xf32, #tpu.memory_space<vmem>>, vector<8x32xf32>
      %c0_18 = arith.constant 0 : index
      %c0_19 = arith.constant 0 : index
      %22 = vector.load %arg6[%c0_18, %c0_19] : memref<1x32xf32, #tpu.memory_space<vmem>>, vector<1x32xf32>
      %23 = vector.broadcast %22 : vector<1x32xf32> to vector<8x32xf32>
      %24 = arith.addf %21, %23 : vector<8x32xf32>
      %c0_20 = arith.constant 0 : index
      %c0_21 = arith.constant 0 : index
      %25 = vector.load %arg2[%c0_20, %c0_21] : memref<8x32xf32, #tpu.memory_space<vmem>>, vector<8x32xf32>
      %26 = arith.addf %24, %25 : vector<8x32xf32>
      %cst_22 = arith.constant dense<0.000000e+00> : vector<8xf32>
      %27 = vector.multi_reduction <add>, %26, %cst_22 [1] : vector<8x32xf32> to vector<8xf32>
      %28 = vector.shape_cast %27 : vector<8xf32> to vector<8x1xf32>
      %cst_23 = arith.constant 3.200000e+01 : f32
      %29 = vector.broadcast %cst_23 : f32 to vector<8x1xf32>
      %30 = arith.divf %28, %29 : vector<8x1xf32>
      %31 = vector.broadcast %30 : vector<8x1xf32> to vector<8x32xf32>
      %32 = arith.subf %26, %31 : vector<8x32xf32>
      %33 = arith.mulf %32, %32 : vector<8x32xf32>
      %cst_24 = arith.constant dense<0.000000e+00> : vector<8xf32>
      %34 = vector.multi_reduction <add>, %33, %cst_24 [1] : vector<8x32xf32> to vector<8xf32>
      %35 = vector.shape_cast %34 : vector<8xf32> to vector<8x1xf32>
      %cst_25 = arith.constant 3.200000e+01 : f32
      %36 = vector.broadcast %cst_25 : f32 to vector<8x1xf32>
      %37 = arith.divf %35, %36 : vector<8x1xf32>
      %38 = vector.broadcast %30 : vector<8x1xf32> to vector<8x32xf32>
      %39 = arith.subf %26, %38 : vector<8x32xf32>
      %cst_26 = arith.constant 9.99999974E-6 : f32
      %40 = vector.broadcast %cst_26 : f32 to vector<8x1xf32>
      %41 = arith.addf %37, %40 : vector<8x1xf32>
      %42 = math.rsqrt %41 : vector<8x1xf32>
      %43 = vector.broadcast %42 : vector<8x1xf32> to vector<8x32xf32>
      %44 = arith.mulf %39, %43 : vector<8x32xf32>
      %c0_27 = arith.constant 0 : index
      %c0_28 = arith.constant 0 : index
      %45 = vector.load %arg7[%c0_27, %c0_28] : memref<1x32xf32, #tpu.memory_space<vmem>>, vector<1x32xf32>
      %46 = vector.broadcast %45 : vector<1x32xf32> to vector<8x32xf32>
      %47 = arith.mulf %46, %44 : vector<8x32xf32>
      %c0_29 = arith.constant 0 : index
      %c0_30 = arith.constant 0 : index
      %48 = vector.load %arg8[%c0_29, %c0_30] : memref<1x32xf32, #tpu.memory_space<vmem>>, vector<1x32xf32>
      %49 = vector.broadcast %48 : vector<1x32xf32> to vector<8x32xf32>
      %50 = arith.addf %47, %49 : vector<8x32xf32>
      %c0_31 = arith.constant 0 : index
      %c0_32 = arith.constant 0 : index
      %51 = vector.load %arg9[%c0_31, %c0_32] : memref<8x32xf32, #tpu.memory_space<vmem>>, vector<8x32xf32>
      tpu.vector_store %arg9[%c0_31, %c0_32], %50 {strides = array<i32>} : memref<8x32xf32, #tpu.memory_space<vmem>>, vector<8x32xf32>,
    } else {
    }
    return
  }
  func.func @transform_0(%arg0: i32, %arg1: i32) -> (i32, i32) {
    %c0_i32 = arith.constant 0 : i32
    %c0_i32_0 = arith.constant 0 : i32
    return %arg0, %c0_i32 : i32, i32
  }
  func.func @transform_1(%arg0: i32, %arg1: i32) -> (i32, i32) {
    %c0_i32 = arith.constant 0 : i32
    %c0_i32_0 = arith.constant 0 : i32
    return %c0_i32, %arg1 : i32, i32
  }
  func.func @transform_2(%arg0: i32, %arg1: i32) -> (i32, i32) {
    %c0_i32 = arith.constant 0 : i32
    %c0_i32_0 = arith.constant 0 : i32
    return %c0_i32, %arg1 : i32, i32
  }
  func.func @transform_3(%arg0: i32, %arg1: i32) -> (i32, i32) {
    %c0_i32 = arith.constant 0 : i32
    %c0_i32_0 = arith.constant 0 : i32
    return %arg1, %c0_i32 : i32, i32
  }
  func.func @transform_4(%arg0: i32, %arg1: i32) -> (i32, i32) {
    %c0_i32 = arith.constant 0 : i32
    %c0_i32_0 = arith.constant 0 : i32
    %c0_i32_1 = arith.constant 0 : i32
    return %c0_i32, %c0_i32_0 : i32, i32
  }
  func.func @transform_5(%arg0: i32, %arg1: i32) -> (i32, i32) {
    %c0_i32 = arith.constant 0 : i32
    %c0_i32_0 = arith.constant 0 : i32
    %c0_i32_1 = arith.constant 0 : i32
    return %c0_i32, %c0_i32_0 : i32, i32
  }
  func.func @transform_6(%arg0: i32, %arg1: i32) -> (i32, i32) {
    %c0_i32 = arith.constant 0 : i32
    %c0_i32_0 = arith.constant 0 : i32
    %c0_i32_1 = arith.constant 0 : i32
    return %c0_i32, %c0_i32_0 : i32, i32
  }
  func.func @transform_7(%arg0: i32, %arg1: i32) -> (i32, i32) {
    %c0_i32 = arith.constant 0 : i32
    %c0_i32_0 = arith.constant 0 : i32
    return %arg0, %c0_i32 : i32, i32
  }
}

</mosaic_0001>

<llo_original>
// kernel: decoder_forward.11
$region0: #{decoder_forward.11}
  #allocation0 [shape = 'u32[]', space=smem, size = 0x4, offset = 0x4, fixed_abs, tag = 'smem constant byte address 0x4 - core index']
  #allocation1 [shape = 'u32[144,128]{1,0:T(1,128)}', space=vmem, size = 0x12000, scoped, tag = 'internal scratch']
  %s0 = inlined_call_operand.vmem [shape: bf16[16,32], index: 0, kind: input, shape index: {}]
  %s1 = inlined_call_operand.vmem [shape: f32[16,32], index: 1, kind: input, shape index: {}]
  %s2 = inlined_call_operand.vmem [shape: bf16[32,32], index: 2, kind: input, shape index: {}]
  %s3 = inlined_call_operand.vmem [shape: f32[1,32], index: 3, kind: input, shape index: {}]
  %s4 = inlined_call_operand.vmem [shape: f32[1,32], index: 4, kind: input, shape index: {}]
  %s5 = inlined_call_operand.vmem [shape: f32[1,32], index: 5, kind: input, shape index: {}]
  %s6 = inlined_call_operand.vmem [shape: f32[16,32], index: 6, kind: output, shape index: {}]
  %s7 = sld [smem:[#allocation0]]
  $region57: #{decoder_forward.11} parent=0
    _
  %s9 = ssub.s32 1, %s7
  %s10 = scalar_select 0, %s9, %s7
  loop: start=0, step=1, limit=4
  $region2: #{decoder_forward.11} parent=0 // loop_pre_header
    _
  $region3: #{decoder_forward.11} parent=0 // loop_header
    %s12 = sphi 0, %s16
    %p13 = scmp.ge.s32.totalorder %s12, 4
    %s22 = sphi 0, %s24
    %s25 = sphi 0, %s22
    %s26 = sphi 0, %s25
    %s42 = sphi 0, %s26
    %s48 = sphi 0, %s50
    %s51 = sphi 0, %s48
    %s52 = sphi 0, %s51
    %s68 = sphi 0, %s52
    %s72 = sphi 0, %s72
    %s74 = sphi 0, %s72
    %s75 = sphi 0, %s74
    %s89 = sphi 0, %s75
    %s93 = sphi 0, %s93
    %s95 = sphi 0, %s93
    %s96 = sphi 0, %s95
    %s110 = sphi 0, %s96
    %s114 = sphi 0, %s114
    %s116 = sphi 0, %s114
    %s117 = sphi 0, %s116
    %s131 = sphi 0, %s117
    %s135 = sphi 0, %s135
    %s137 = sphi 0, %s135
    %s138 = sphi 0, %s137
    %s152 = sphi 0, %s138
    %s158 = sphi 0, %s160
    %s161 = sphi 0, %s158
    %s162 = sphi 0, %s161
    %s178 = sphi 0, %s162
  $region4: #{decoder_forward.11} parent=0 // loop_header_branch
    %15 = sbr.rel (%p13) target = $region8
  $region5: #{decoder_forward.11} parent=0 // loop_body
    %s17 = ssub.s32 %s12, 1
    %s18 = ssub.s32 %s12, 2
    %s19 = sadd.s32 %s12, 1
    %s20 = ssub.s32 %s12, %s19
    %p21 = scmp.eq.s32.totalorder %s20, 0
    %s23 = sadd.s32 %s22, 1
    %s24 = scalar_select %p21, %s22, %s23
    %p27 = pneg %p21
    %p28 = scmp.eq.s32.totalorder %s12, 1
    %p29 = por %p27, %p28
    %p30 = scmp.ne.s32.totalorder %s22, %s25
    %p31 = scmp.eq.s32.totalorder %s12, 0
    %p32 = por %p30, %p31
    %p33 = scmp.ne.s32.totalorder %s22, %s25
    %p34 = scmp.eq.s32.totalorder %s17, 1
    %p35 = por %p33, %p34
    %p36 = scmp.ne.s32.totalorder %s25, %s26
    %p37 = scmp.eq.s32.totalorder %s17, 0
    %p38 = por %p36, %p37
    %p39 = scmp.ne.s32.totalorder %s25, %s26
    %p40 = scmp.eq.s32.totalorder %s18, 1
    %p41 = por %p39, %p40
    %p43 = scmp.ne.s32.totalorder %s26, %s42
    %p44 = scmp.eq.s32.totalorder %s18, 0
    %p45 = por %p43, %p44
    %s46 = ssub.s32 %s12, %s19
    %p47 = scmp.eq.s32.totalorder %s46, 0
    %s49 = sadd.s32 %s48, 1
    %s50 = scalar_select %p47, %s48, %s49
    %p53 = pneg %p47
    %p54 = scmp.eq.s32.totalorder %s12, 1
    %p55 = por %p53, %p54
    %p56 = scmp.ne.s32.totalorder %s48, %s51
    %p57 = scmp.eq.s32.totalorder %s12, 0
    %p58 = por %p56, %p57
    %p59 = scmp.ne.s32.totalorder %s48, %s51
    %p60 = scmp.eq.s32.totalorder %s17, 1
    %p61 = por %p59, %p60
    %p62 = scmp.ne.s32.totalorder %s51, %s52
    %p63 = scmp.eq.s32.totalorder %s17, 0
    %p64 = por %p62, %p63
    %p65 = scmp.ne.s32.totalorder %s51, %s52
    %p66 = scmp.eq.s32.totalorder %s18, 1
    %p67 = por %p65, %p66
    %p69 = scmp.ne.s32.totalorder %s52, %s68
    %p70 = scmp.eq.s32.totalorder %s18, 0
    %p71 = por %p69, %p70
    %s73 = sadd.s32 %s72, 1
    %p76 = scmp.eq.s32.totalorder %s12, 1
    %p77 = scmp.ne.s32.totalorder %s72, %s74
    %p78 = scmp.eq.s32.totalorder %s12, 0
    %p79 = por %p77, %p78
    %p80 = scmp.ne.s32.totalorder %s72, %s74
    %p81 = scmp.eq.s32.totalorder %s17, 1
    %p82 = por %p80, %p81
    %p83 = scmp.ne.s32.totalorder %s74, %s75
    %p84 = scmp.eq.s32.totalorder %s17, 0
    %p85 = por %p83, %p84
    %p86 = scmp.ne.s32.totalorder %s74, %s75
    %p87 = scmp.eq.s32.totalorder %s18, 1
    %p88 = por %p86, %p87
    %p90 = scmp.ne.s32.totalorder %s75, %s89
    %p91 = scmp.eq.s32.totalorder %s18, 0
    %p92 = por %p90, %p91
    %s94 = sadd.s32 %s93, 1
    %p97 = scmp.eq.s32.totalorder %s12, 1
    %p98 = scmp.ne.s32.totalorder %s93, %s95
    %p99 = scmp.eq.s32.totalorder %s12, 0
    %p100 = por %p98, %p99
    %p101 = scmp.ne.s32.totalorder %s93, %s95
    %p102 = scmp.eq.s32.totalorder %s17, 1
    %p103 = por %p101, %p102
    %p104 = scmp.ne.s32.totalorder %s95, %s96
    %p105 = scmp.eq.s32.totalorder %s17, 0
    %p106 = por %p104, %p105
    %p107 = scmp.ne.s32.totalorder %s95, %s96
    %p108 = scmp.eq.s32.totalorder %s18, 1
    %p109 = por %p107, %p108
    %p111 = scmp.ne.s32.totalorder %s96, %s110
    %p112 = scmp.eq.s32.totalorder %s18, 0
    %p113 = por %p111, %p112
    %s115 = sadd.s32 %s114, 1
    %p118 = scmp.eq.s32.totalorder %s12, 1
    %p119 = scmp.ne.s32.totalorder %s114, %s116
    %p120 = scmp.eq.s32.totalorder %s12, 0
    %p121 = por %p119, %p120
    %p122 = scmp.ne.s32.totalorder %s114, %s116
    %p123 = scmp.eq.s32.totalorder %s17, 1
    %p124 = por %p122, %p123
    %p125 = scmp.ne.s32.totalorder %s116, %s117
    %p126 = scmp.eq.s32.totalorder %s17, 0
    %p127 = por %p125, %p126
    %p128 = scmp.ne.s32.totalorder %s116, %s117
    %p129 = scmp.eq.s32.totalorder %s18, 1
    %p130 = por %p128, %p129
    %p132 = scmp.ne.s32.totalorder %s117, %s131
    %p133 = scmp.eq.s32.totalorder %s18, 0
    %p134 = por %p132, %p133
    %s136 = sadd.s32 %s135, 1
    %p139 = scmp.eq.s32.totalorder %s12, 1
    %p140 = scmp.ne.s32.totalorder %s135, %s137
    %p141 = scmp.eq.s32.totalorder %s12, 0
    %p142 = por %p140, %p141
    %p143 = scmp.ne.s32.totalorder %s135, %s137
    %p144 = scmp.eq.s32.totalorder %s17, 1
    %p145 = por %p143, %p144
    %p146 = scmp.ne.s32.totalorder %s137, %s138
    %p147 = scmp.eq.s32.totalorder %s17, 0
    %p148 = por %p146, %p147
    %p149 = scmp.ne.s32.totalorder %s137, %s138
    %p150 = scmp.eq.s32.totalorder %s18, 1
    %p151 = por %p149, %p150
    %p153 = scmp.ne.s32.totalorder %s138, %s152
    %p154 = scmp.eq.s32.totalorder %s18, 0
    %p155 = por %p153, %p154
    %s156 = ssub.s32 %s12, %s19
    %p157 = scmp.eq.s32.totalorder %s156, 0
    %s159 = sadd.s32 %s158, 1
    %s160 = scalar_select %p157, %s158, %s159
    %p163 = pneg %p157
    %p164 = scmp.eq.s32.totalorder %s12, 1
    %p165 = por %p163, %p164
    %p166 = scmp.ne.s32.totalorder %s158, %s161
    %p167 = scmp.eq.s32.totalorder %s12, 0
    %p168 = por %p166, %p167
    %p169 = scmp.ne.s32.totalorder %s158, %s161
    %p170 = scmp.eq.s32.totalorder %s17, 1
    %p171 = por %p169, %p170
    %p172 = scmp.ne.s32.totalorder %s161, %s162
    %p173 = scmp.eq.s32.totalorder %s17, 0
    %p174 = por %p172, %p173
    %p175 = scmp.ne.s32.totalorder %s161, %s162
    %p176 = scmp.eq.s32.totalorder %s18, 1
    %p177 = por %p175, %p176
    %p179 = scmp.ne.s32.totalorder %s162, %s178
    %p180 = scmp.eq.s32.totalorder %s18, 0
    %p181 = por %p179, %p180
    %p182 = scmp.le.s32.totalorder 1, %s12
    %p183 = scmp.lt.s32.totalorder %s12, 3
    %p184 = pnand %p182, %p183
    %p185 = pneg %p184
    // Predicated region
    $region9: #{decoder_forward.11} parent=5 // pred_check
      _
    $region10: #{decoder_forward.11} parent=5 // pred_check_branch
      %187 = sbr.rel (%p184) target = $region12
    $region11: #{decoder_forward.11} parent=5 // pred_region
      %s188 = ssub.s32 %s12, 1
      // Predicated region
      $region13: #{decoder_forward.11} parent=11 // pred_check
        %p189 = pneg %p85
      $region14: #{decoder_forward.11} parent=11 // pred_check_branch
        %191 = sbr.rel (%p189) target = $region16
      $region15: #{decoder_forward.11} parent=11 // pred_region
        _
      $region16: #{decoder_forward.11} parent=11 // pred_fallthru
        _
      // Predicated region
      $region17: #{decoder_forward.11} parent=11 // pred_check
        %p192 = pneg %p106
      $region18: #{decoder_forward.11} parent=11 // pred_check_branch
        %194 = sbr.rel (%p192) target = $region20
      $region19: #{decoder_forward.11} parent=11 // pred_region
        _
      $region20: #{decoder_forward.11} parent=11 // pred_fallthru
        _
      // Predicated region
      $region21: #{decoder_forward.11} parent=11 // pred_check
        %p195 = pneg %p127
      $region22: #{decoder_forward.11} parent=11 // pred_check_branch
        %197 = sbr.rel (%p195) target = $region24
      $region23: #{decoder_forward.11} parent=11 // pred_region
        _
      $region24: #{decoder_forward.11} parent=11 // pred_fallthru
        _
      // Predicated region
      $region25: #{decoder_forward.11} parent=11 // pred_check
        %p198 = pneg %p148
      $region26: #{decoder_forward.11} parent=11 // pred_check_branch
        %200 = sbr.rel (%p198) target = $region28
      $region27: #{decoder_forward.11} parent=11 // pred_region
        _
      $region28: #{decoder_forward.11} parent=11 // pred_fallthru
        _
    $region12: #{decoder_forward.11} parent=5 // pred_fallthru
      _
    %p201 = scmp.lt.s32.totalorder %s12, 2
    // Predicated region
    $region29: #{decoder_forward.11} parent=5 // pred_check
      %p202 = pneg %p201
    $region30: #{decoder_forward.11} parent=5 // pred_check_branch
      %204 = sbr.rel (%p202) target = $region32
    $region31: #{decoder_forward.11} parent=5 // pred_region
      // Predicated region
      $region33: #{decoder_forward.11} parent=31 // pred_check
        %p205 = pneg %p32
      $region34: #{decoder_forward.11} parent=31 // pred_check_branch
        %207 = sbr.rel (%p205) target = $region36
      $region35: #{decoder_forward.11} parent=31 // pred_region
        %p208 = scmp.lt.s32.totalorder %s12, 1
        %s209 = scalar_select %p208, %s12, 1
        %s210 = smul.addr %s209, 4
        %s211 = scalar_lea.vmem %s0, %s210
      $region36: #{decoder_forward.11} parent=31 // pred_fallthru
        _
      // Predicated region
      $region37: #{decoder_forward.11} parent=31 // pred_check
        %p212 = pneg %p58
      $region38: #{decoder_forward.11} parent=31 // pred_check_branch
        %214 = sbr.rel (%p212) target = $region40
      $region39: #{decoder_forward.11} parent=31 // pred_region
        %p215 = scmp.lt.s32.totalorder %s12, 1
        %s216 = scalar_select %p215, %s12, 1
        %s217 = smul.addr %s216, 8
        %s218 = scalar_lea.vmem %s1, %s217
      $region40: #{decoder_forward.11} parent=31 // pred_fallthru
        _
    $region32: #{decoder_forward.11} parent=5 // pred_fallthru
      _
    %p219 = scmp.le.s32.totalorder 1, %s12
    %p220 = scmp.lt.s32.totalorder %s12, 3
    %p221 = pnand %p219, %p220
    %p222 = pneg %p221
    // Predicated region
    $region41: #{decoder_forward.11} parent=5 // pred_check
      _
    $region42: #{decoder_forward.11} parent=5 // pred_check_branch
      %224 = sbr.rel (%p221) target = $region44
    $region43: #{decoder_forward.11} parent=5 // pred_region
      %s225 = ssub.s32 %s12, 1
      %p226 = scmp.lt.s32.totalorder %s17, 1
      %s227 = scalar_select %p226, %s17, 1
      %s228 = smul.addr %s227, 4
      %s229 = scalar_lea.vmem %s0, %s228
      %p230 = pneg %p38
      %p231 = pneg %p35
      %p232 = scmp.lt.s32.totalorder %s17, 1
      %s233 = scalar_select %p232, %s17, 1
      %s234 = smul.addr %s233, 8
      %s235 = scalar_lea.vmem %s1, %s234
      %p236 = pneg %p64
      %p237 = pneg %p61
      %p238 = pneg %p85
      %p239 = pneg %p82
      %p240 = pneg %p106
      %p241 = pneg %p103
      %p242 = pneg %p127
      %p243 = pneg %p124
      %p244 = pneg %p148
      %p245 = pneg %p145
      %p246 = pneg %p174
      %p247 = pneg %p171
      %p248 = scmp.lt.s32.totalorder %s17, 1
      %s249 = scalar_select %p248, %s17, 1
      %s250 = smul.addr %s249, 8
      %s251 = scalar_lea.vmem %s6, %s250
      %p252 = scmp.lt.s32.totalorder %s17, 1
      %s253 = scalar_select %p252, %s17, 1
      %s254 = smul.addr %s253, 4
      %s255 = scalar_lea.vmem %s0, %s254
      %p256 = scmp.lt.s32.totalorder %s17, 1
      %s257 = scalar_select %p256, %s17, 1
      %s258 = smul.addr %s257, 8
      %s259 = scalar_lea.vmem %s1, %s258
      %p260 = scmp.lt.s32.totalorder %s17, 1
      %s261 = scalar_select %p260, %s17, 1
      %s262 = smul.addr %s261, 8
      %s263 = scalar_lea.vmem %s6, %s262
      %v265 = vld [vmem:[%s255] sm:$0xf]
      %v266 = vld [vmem:[%s2] sm:$0xf]
      %v267 = vld [vmem:[%s2 + $0x4] sm:$0xf]
      %v268 = vld [vmem:[%s2 + $0x8] sm:$0xf]
      %v269 = vld [vmem:[%s2 + $0xc] sm:$0xf]
      %v270 = vld [vmem:[%s3] sm:$0x1]
      %v272 = vlaneseq
      %v273 = vshrl.u32 %v272, 7
      %v274 = vsub.s32 0, %v273
      %v275 = vrot.slane %v270, %v274
      %v281 = vunpack.c.l.b16 %v266
      %v282 = vunpack.c.l.b16 %v267
      %v283 = vunpack.c.l.b16 %v268
      %v284 = vunpack.c.l.b16 %v269
      %v285 = vpack.c.b16 %v282, %v281
      %v286 = vpack.c.b16 %v284, %v283
      %vm289 = vcmask 261120
      %v291 = vsel %vm289, %v265, 0
      %293 = vmatprep.subr.bf16.mxu0 0
      %294 = vmatpush1.bf16.msra.mxu0 %v285
      %295 = vmatprep.subr.bf16.mxu0 0
      %296 = vmatpush1.bf16.msra.mxu0 %v286
      %297 = vmatprep.subr.bf16.mxu0 0
      %298 = vmatpush1.bf16.msra.mxu0 0
      %299 = vmatprep.subr.bf16.mxu0 0
      %300 = vmatpush1.bf16.msra.mxu0 0
      %301 = vmatprep.subr.bf16.mxu0 0
      %302 = vmatpush1.bf16.msra.mxu0 0
      %303 = vmatprep.subr.bf16.mxu0 0
      %304 = vmatpush1.bf16.msra.mxu0 0
      %305 = vmatprep.subr.bf16.mxu0 0
      %306 = vmatpush1.bf16.msra.mxu0 0
      %307 = vmatprep.subr.bf16.mxu0 0
      %308 = vmatpush1.bf16.msra.mxu0 0
      %309 = vmatprep.subr.bf16.mxu0 0
      %310 = vmatpush1.bf16.msra.mxu0 0
      %311 = vmatprep.subr.bf16.mxu0 0
      %312 = vmatpush1.bf16.msra.mxu0 0
      %313 = vmatprep.subr.bf16.mxu0 0
      %314 = vmatpush1.bf16.msra.mxu0 0
      %315 = vmatprep.subr.bf16.mxu0 0
      %316 = vmatpush1.bf16.msra.mxu0 0
      %317 = vmatprep.subr.bf16.mxu0 0
      %318 = vmatpush1.bf16.msra.mxu0 0
      %319 = vmatprep.subr.bf16.mxu0 0
      %320 = vmatpush1.bf16.msra.mxu0 0
      %321 = vmatprep.subr.bf16.mxu0 0
      %322 = vmatpush1.bf16.msra.mxu0 0
      %323 = vmatprep.subr.bf16.mxu0 0
      %324 = vmatpush1.bf16.msra.mxu0 0
      %325 = vmatprep.mubr.bf16.mxu0 0
      %326 = vmatmul.mubr.bf16.gmra.mrb[0].mxu0 %v291
      %v327 = vpop.f32.mrb[0].mxu0
      %v328 = vadd.f32 %v275, %v327
      %v329 = vpop.f32.mrb[0].mxu0
      %v330 = vpop.f32.mrb[0].mxu0
      %v331 = vpop.f32.mrb[0].mxu0
      %332 = vdwg.mxu0
      %v333 = vld [vmem:[%s259] sm:$0xff]
      %v334 = vadd.f32 %v328, %v333
      %v335 = vsel %vm289, %v334, 0.0
      %336 = vadd.xlane.f32.xlu0 %v335
      %v337 = vpop.xlane.xlu0 %336
      %v338 = vrcp.pop 32.0
      %v339 = vmul.f32 %v337, %v338
      %v340 = vsub.f32 %v334, %v339
      %v341 = vmul.f32 %v340, %v340
      %v342 = vsel %vm289, %v341, 0.0
      %343 = vadd.xlane.f32.xlu0 %v342
      %v344 = vpop.xlane.xlu0 %343
      %v345 = vmul.f32 %v344, %v338
      %v346 = vadd.f32 %v345, 1e-05
      %v347 = vrsqrt.pop %v346
      %v348 = vmul.f32 %v340, %v347
      %v349 = vld [vmem:[%s4] sm:$0x1]
      %v351 = vlaneseq
      %v352 = vshrl.u32 %v351, 7
      %v353 = vsub.s32 0, %v352
      %v354 = vrot.slane %v349, %v353
      %v356 = vmul.f32 %v354, %v348
      %v357 = vld [vmem:[%s5] sm:$0x1]
      %v359 = vlaneseq
      %v360 = vshrl.u32 %v359, 7
      %v361 = vsub.s32 0, %v360
      %v362 = vrot.slane %v357, %v361
      %v364 = vadd.f32 %v356, %v362
      %365 = vst.msk [vmem:[%s263] sm:$0xff] %vm289, %v364
      %p366 = scmp.lt.s32.totalorder %s17, 1
      %s367 = scalar_select %p366, %s17, 1
      %s368 = smul.addr %s367, 8
      %s369 = scalar_lea.vmem %s6, %s368
      // Predicated region
      $region45: #{decoder_forward.11} parent=43 // pred_check
        %p370 = pneg %p171
      $region46: #{decoder_forward.11} parent=43 // pred_check_branch
        %372 = sbr.rel (%p370) target = $region48
      $region47: #{decoder_forward.11} parent=43 // pred_region
        _
      $region48: #{decoder_forward.11} parent=43 // pred_fallthru
        _
    $region44: #{decoder_forward.11} parent=5 // pred_fallthru
      _
    %p373 = scmp.le.s32.totalorder 2, %s12
    // Predicated region
    $region49: #{decoder_forward.11} parent=5 // pred_check
      %p374 = pneg %p373
    $region50: #{decoder_forward.11} parent=5 // pred_check_branch
      %376 = sbr.rel (%p374) target = $region52
    $region51: #{decoder_forward.11} parent=5 // pred_region
      %s377 = ssub.s32 %s12, 2
      // Predicated region
      $region53: #{decoder_forward.11} parent=51 // pred_check
        %p378 = pneg %p177
      $region54: #{decoder_forward.11} parent=51 // pred_check_branch
        %380 = sbr.rel (%p378) target = $region56
      $region55: #{decoder_forward.11} parent=51 // pred_region
        %p381 = scmp.lt.s32.totalorder %s18, 1
        %s382 = scalar_select %p381, %s18, 1
        %s383 = smul.addr %s382, 8
        %s384 = scalar_lea.vmem %s6, %s383
      $region56: #{decoder_forward.11} parent=51 // pred_fallthru
        _
    $region52: #{decoder_forward.11} parent=5 // pred_fallthru
      _
  $region6: #{decoder_forward.11} parent=0 // loop_footer
    %s16 = sadd.s32 1, %s12
  $region7: #{decoder_forward.11} parent=0 // loop_footer_branch
    %11 = sbr.rel target = $region3
  $region8: #{decoder_forward.11} parent=0 // loop_exit
    _

// kernel: decoder_forward.10
$region0: #{decoder_forward.10}
  #allocation0 [shape = 'u32[]', space=smem, size = 0x4, offset = 0x4, fixed_abs, tag = 'smem constant byte address 0x4 - core index']
  #allocation1 [shape = 'u32[144,128]{1,0:T(1,128)}', space=vmem, size = 0x12000, scoped, tag = 'internal scratch']
  %s0 = inlined_call_operand.vmem [shape: f32[2,8,32], index: 0, kind: input, shape index: {}]
  %s1 = inlined_call_operand.vmem [shape: f32[8,8], index: 1, kind: input, shape index: {}]
  %s2 = inlined_call_operand.vmem [shape: bf16[32,96], index: 2, kind: input, shape index: {}]
  %s3 = inlined_call_operand.vmem [shape: f32[1,96], index: 3, kind: input, shape index: {}]
  %s4 = inlined_call_operand.vmem [shape: bf16[2,4,8,8], index: 4, kind: output, shape index: {}]
  %s5 = sld [smem:[#allocation0]]
  $region49: #{decoder_forward.10} parent=0
    _
  %s7 = ssub.s32 1, %s5
  %s8 = scalar_select 0, %s7, %s5
  loop: start=0, step=1, limit=4
  $region2: #{decoder_forward.10} parent=0 // loop_pre_header
    _
  $region3: #{decoder_forward.10} parent=0 // loop_header
    %s10 = sphi 0, %s14
    %p11 = scmp.ge.s32.totalorder %s10, 4
    %s20 = sphi 0, %s22
    %s23 = sphi 0, %s20
    %s24 = sphi 0, %s23
    %s40 = sphi 0, %s24
    %s44 = sphi 0, %s44
    %s46 = sphi 0, %s44
    %s47 = sphi 0, %s46
    %s61 = sphi 0, %s47
    %s65 = sphi 0, %s65
    %s67 = sphi 0, %s65
    %s68 = sphi 0, %s67
    %s82 = sphi 0, %s68
    %s86 = sphi 0, %s86
    %s88 = sphi 0, %s86
    %s89 = sphi 0, %s88
    %s103 = sphi 0, %s89
    %s109 = sphi 0, %s111
    %s112 = sphi 0, %s109
    %s113 = sphi 0, %s112
    %s129 = sphi 0, %s113
  $region4: #{decoder_forward.10} parent=0 // loop_header_branch
    %13 = sbr.rel (%p11) target = $region8
  $region5: #{decoder_forward.10} parent=0 // loop_body
    %s15 = ssub.s32 %s10, 1
    %s16 = ssub.s32 %s10, 2
    %s17 = sadd.s32 %s10, 1
    %s18 = ssub.s32 %s10, %s17
    %p19 = scmp.eq.s32.totalorder %s18, 0
    %s21 = sadd.s32 %s20, 1
    %s22 = scalar_select %p19, %s20, %s21
    %p25 = pneg %p19
    %p26 = scmp.eq.s32.totalorder %s10, 1
    %p27 = por %p25, %p26
    %p28 = scmp.ne.s32.totalorder %s20, %s23
    %p29 = scmp.eq.s32.totalorder %s10, 0
    %p30 = por %p28, %p29
    %p31 = scmp.ne.s32.totalorder %s20, %s23
    %p32 = scmp.eq.s32.totalorder %s15, 1
    %p33 = por %p31, %p32
    %p34 = scmp.ne.s32.totalorder %s23, %s24
    %p35 = scmp.eq.s32.totalorder %s15, 0
    %p36 = por %p34, %p35
    %p37 = scmp.ne.s32.totalorder %s23, %s24
    %p38 = scmp.eq.s32.totalorder %s16, 1
    %p39 = por %p37, %p38
    %p41 = scmp.ne.s32.totalorder %s24, %s40
    %p42 = scmp.eq.s32.totalorder %s16, 0
    %p43 = por %p41, %p42
    %s45 = sadd.s32 %s44, 1
    %p48 = scmp.eq.s32.totalorder %s10, 1
    %p49 = scmp.ne.s32.totalorder %s44, %s46
    %p50 = scmp.eq.s32.totalorder %s10, 0
    %p51 = por %p49, %p50
    %p52 = scmp.ne.s32.totalorder %s44, %s46
    %p53 = scmp.eq.s32.totalorder %s15, 1
    %p54 = por %p52, %p53
    %p55 = scmp.ne.s32.totalorder %s46, %s47
    %p56 = scmp.eq.s32.totalorder %s15, 0
    %p57 = por %p55, %p56
    %p58 = scmp.ne.s32.totalorder %s46, %s47
    %p59 = scmp.eq.s32.totalorder %s16, 1
    %p60 = por %p58, %p59
    %p62 = scmp.ne.s32.totalorder %s47, %s61
    %p63 = scmp.eq.s32.totalorder %s16, 0
    %p64 = por %p62, %p63
    %s66 = sadd.s32 %s65, 1
    %p69 = scmp.eq.s32.totalorder %s10, 1
    %p70 = scmp.ne.s32.totalorder %s65, %s67
    %p71 = scmp.eq.s32.totalorder %s10, 0
    %p72 = por %p70, %p71
    %p73 = scmp.ne.s32.totalorder %s65, %s67
    %p74 = scmp.eq.s32.totalorder %s15, 1
    %p75 = por %p73, %p74
    %p76 = scmp.ne.s32.totalorder %s67, %s68
    %p77 = scmp.eq.s32.totalorder %s15, 0
    %p78 = por %p76, %p77
    %p79 = scmp.ne.s32.totalorder %s67, %s68
    %p80 = scmp.eq.s32.totalorder %s16, 1
    %p81 = por %p79, %p80
    %p83 = scmp.ne.s32.totalorder %s68, %s82
    %p84 = scmp.eq.s32.totalorder %s16, 0
    %p85 = por %p83, %p84
    %s87 = sadd.s32 %s86, 1
    %p90 = scmp.eq.s32.totalorder %s10, 1
    %p91 = scmp.ne.s32.totalorder %s86, %s88
    %p92 = scmp.eq.s32.totalorder %s10, 0
    %p93 = por %p91, %p92
    %p94 = scmp.ne.s32.totalorder %s86, %s88
    %p95 = scmp.eq.s32.totalorder %s15, 1
    %p96 = por %p94, %p95
    %p97 = scmp.ne.s32.totalorder %s88, %s89
    %p98 = scmp.eq.s32.totalorder %s15, 0
    %p99 = por %p97, %p98
    %p100 = scmp.ne.s32.totalorder %s88, %s89
    %p101 = scmp.eq.s32.totalorder %s16, 1
    %p102 = por %p100, %p101
    %p104 = scmp.ne.s32.totalorder %s89, %s103
    %p105 = scmp.eq.s32.totalorder %s16, 0
    %p106 = por %p104, %p105
    %s107 = ssub.s32 %s10, %s17
    %p108 = scmp.eq.s32.totalorder %s107, 0
    %s110 = sadd.s32 %s109, 1
    %s111 = scalar_select %p108, %s109, %s110
    %p114 = pneg %p108
    %p115 = scmp.eq.s32.totalorder %s10, 1
    %p116 = por %p114, %p115
    %p117 = scmp.ne.s32.totalorder %s109, %s112
    %p118 = scmp.eq.s32.totalorder %s10, 0
    %p119 = por %p117, %p118
    %p120 = scmp.ne.s32.totalorder %s109, %s112
    %p121 = scmp.eq.s32.totalorder %s15, 1
    %p122 = por %p120, %p121
    %p123 = scmp.ne.s32.totalorder %s112, %s113
    %p124 = scmp.eq.s32.totalorder %s15, 0
    %p125 = por %p123, %p124
    %p126 = scmp.ne.s32.totalorder %s112, %s113
    %p127 = scmp.eq.s32.totalorder %s16, 1
    %p128 = por %p126, %p127
    %p130 = scmp.ne.s32.totalorder %s113, %s129
    %p131 = scmp.eq.s32.totalorder %s16, 0
    %p132 = por %p130, %p131
    %p133 = scmp.le.s32.totalorder 1, %s10
    %p134 = scmp.lt.s32.totalorder %s10, 3
    %p135 = pnand %p133, %p134
    %p136 = pneg %p135
    // Predicated region
    $region9: #{decoder_forward.10} parent=5 // pred_check
      _
    $region10: #{decoder_forward.10} parent=5 // pred_check_branch
      %138 = sbr.rel (%p135) target = $region12
    $region11: #{decoder_forward.10} parent=5 // pred_region
      %s139 = ssub.s32 %s10, 1
      // Predicated region
      $region13: #{decoder_forward.10} parent=11 // pred_check
        %p140 = pneg %p57
      $region14: #{decoder_forward.10} parent=11 // pred_check_branch
        %142 = sbr.rel (%p140) target = $region16
      $region15: #{decoder_forward.10} parent=11 // pred_region
        _
      $region16: #{decoder_forward.10} parent=11 // pred_fallthru
        _
      // Predicated region
      $region17: #{decoder_forward.10} parent=11 // pred_check
        %p143 = pneg %p78
      $region18: #{decoder_forward.10} parent=11 // pred_check_branch
        %145 = sbr.rel (%p143) target = $region20
      $region19: #{decoder_forward.10} parent=11 // pred_region
        _
      $region20: #{decoder_forward.10} parent=11 // pred_fallthru
        _
      // Predicated region
      $region21: #{decoder_forward.10} parent=11 // pred_check
        %p146 = pneg %p99
      $region22: #{decoder_forward.10} parent=11 // pred_check_branch
        %148 = sbr.rel (%p146) target = $region24
      $region23: #{decoder_forward.10} parent=11 // pred_region
        _
      $region24: #{decoder_forward.10} parent=11 // pred_fallthru
        _
    $region12: #{decoder_forward.10} parent=5 // pred_fallthru
      _
    %p149 = scmp.lt.s32.totalorder %s10, 2
    // Predicated region
    $region25: #{decoder_forward.10} parent=5 // pred_check
      %p150 = pneg %p149
    $region26: #{decoder_forward.10} parent=5 // pred_check_branch
      %152 = sbr.rel (%p150) target = $region28
    $region27: #{decoder_forward.10} parent=5 // pred_region
      // Predicated region
      $region29: #{decoder_forward.10} parent=27 // pred_check
        %p153 = pneg %p30
      $region30: #{decoder_forward.10} parent=27 // pred_check_branch
        %155 = sbr.rel (%p153) target = $region32
      $region31: #{decoder_forward.10} parent=27 // pred_region
        %p156 = scmp.lt.s32.totalorder %s10, 1
        %s157 = scalar_select %p156, %s10, 1
        %s158 = smul.addr %s157, 8
        %s159 = scalar_lea.vmem %s0, %s158
      $region32: #{decoder_forward.10} parent=27 // pred_fallthru
        _
    $region28: #{decoder_forward.10} parent=5 // pred_fallthru
      _
    %p160 = scmp.le.s32.totalorder 1, %s10
    %p161 = scmp.lt.s32.totalorder %s10, 3
    %p162 = pnand %p160, %p161
    %p163 = pneg %p162
    // Predicated region
    $region33: #{decoder_forward.10} parent=5 // pred_check
      _
    $region34: #{decoder_forward.10} parent=5 // pred_check_branch
      %165 = sbr.rel (%p162) target = $region36
    $region35: #{decoder_forward.10} parent=5 // pred_region
      %s166 = ssub.s32 %s10, 1
      %p167 = scmp.lt.s32.totalorder %s15, 1
      %s168 = scalar_select %p167, %s15, 1
      %s169 = smul.addr %s168, 8
      %s170 = scalar_lea.vmem %s0, %s169
      %p171 = pneg %p36
      %p172 = pneg %p33
      %p173 = pneg %p57
      %p174 = pneg %p54
      %p175 = pneg %p78
      %p176 = pneg %p75
      %p177 = pneg %p99
      %p178 = pneg %p96
      %p179 = pneg %p125
      %p180 = pneg %p122
      %p181 = scmp.lt.s32.totalorder %s15, 1
      %s182 = scalar_select %p181, %s15, 1
      %s183 = smul.addr %s182, 4
      %s184 = smul.addr %s183, 4
      %s185 = scalar_lea.vmem %s4, %s184
      %p186 = scmp.lt.s32.totalorder %s15, 1
      %s187 = scalar_select %p186, %s15, 1
      %s188 = smul.addr %s187, 8
      %s189 = scalar_lea.vmem %s0, %s188
      %p190 = scmp.lt.s32.totalorder %s15, 1
      %s191 = scalar_select %p190, %s15, 1
      %s192 = smul.addr %s191, 4
      %s193 = smul.addr %s192, 4
      %s194 = scalar_lea.vmem %s4, %s193
      %v196 = vld [vmem:[%s189] sm:$0xff]
      %v197 = vpack.c.bf16 %v196, %v196
      %v198 = vld [vmem:[%s2] sm:$0xf]
      %v199 = vld [vmem:[%s2 + $0x4] sm:$0xf]
      %v200 = vld [vmem:[%s2 + $0x8] sm:$0xf]
      %v201 = vld [vmem:[%s2 + $0xc] sm:$0xf]
      %v202 = vld [vmem:[%s3] sm:$0x1]
      %v204 = vlaneseq
      %v205 = vshrl.u32 %v204, 7
      %v206 = vsub.s32 0, %v205
      %v207 = vrot.slane %v202, %v206
      %v213 = vunpack.c.l.b16 %v198
      %v214 = vunpack.c.l.b16 %v199
      %v215 = vunpack.c.l.b16 %v200
      %v216 = vunpack.c.l.b16 %v201
      %v217 = vpack.c.b16 %v214, %v213
      %v218 = vpack.c.b16 %v216, %v215
      %vm221 = vcmask 261120
      %v223 = vsel %vm221, %v197, 0
      %225 = vmatprep.subr.bf16.mxu0 0
      %226 = vmatpush1.bf16.msra.mxu0 %v217
      %227 = vmatprep.subr.bf16.mxu0 0
      %228 = vmatpush1.bf16.msra.mxu0 %v218
      %229 = vmatprep.subr.bf16.mxu0 0
      %230 = vmatpush1.bf16.msra.mxu0 0
      %231 = vmatprep.subr.bf16.mxu0 0
      %232 = vmatpush1.bf16.msra.mxu0 0
      %233 = vmatprep.subr.bf16.mxu0 0
      %234 = vmatpush1.bf16.msra.mxu0 0
      %235 = vmatprep.subr.bf16.mxu0 0
      %236 = vmatpush1.bf16.msra.mxu0 0
      %237 = vmatprep.subr.bf16.mxu0 0
      %238 = vmatpush1.bf16.msra.mxu0 0
      %239 = vmatprep.subr.bf16.mxu0 0
      %240 = vmatpush1.bf16.msra.mxu0 0
      %241 = vmatprep.subr.bf16.mxu0 0
      %242 = vmatpush1.bf16.msra.mxu0 0
      %243 = vmatprep.subr.bf16.mxu0 0
      %244 = vmatpush1.bf16.msra.mxu0 0
      %245 = vmatprep.subr.bf16.mxu0 0
      %246 = vmatpush1.bf16.msra.mxu0 0
      %247 = vmatprep.subr.bf16.mxu0 0
      %248 = vmatpush1.bf16.msra.mxu0 0
      %249 = vmatprep.subr.bf16.mxu0 0
      %250 = vmatpush1.bf16.msra.mxu0 0
      %251 = vmatprep.subr.bf16.mxu0 0
      %252 = vmatpush1.bf16.msra.mxu0 0
      %253 = vmatprep.subr.bf16.mxu0 0
      %254 = vmatpush1.bf16.msra.mxu0 0
      %255 = vmatprep.subr.bf16.mxu0 0
      %256 = vmatpush1.bf16.msra.mxu0 0
      %257 = vmatprep.mubr.bf16.mxu0 0
      %258 = vmatmul.mubr.bf16.gmra.mrb[0].mxu0 %v223
      %v259 = vpop.f32.mrb[0].mxu0
      %v260 = vadd.f32 %v207, %v259
      %v261 = vpop.f32.mrb[0].mxu0
      %v262 = vpop.f32.mrb[0].mxu0
      %v263 = vpop.f32.mrb[0].mxu0
      %264 = vdwg.mxu0
      %v265 = vld [vmem:[%s1] sm:$0xff]
      %v266 = vmul.f32 %v260, 0.35355338
      %v267 = vpack.c.bf16 %v266, %v266
      %v268 = vpack.c.bf16 %v260, %v260
      %270 = vrot.lane.b32.xlu0 %v268, 120
      %v271 = vpop.permute.xlu0 %270
      %vm272 = vcmask 64512
      %v274 = vsel %vm272, %v267, 0
      %v277 = vsel %vm272, %v271, 0
      %279 = vmatprep.subr.bf16.mxu0 0
      %280 = vmatpush1.bf16.xpose.msra.mxu0 %v277
      %281 = vmatprep.subr.bf16.mxu0 0
      %282 = vmatpush1.bf16.xpose.msra.mxu0 0
      %283 = vmatprep.subr.bf16.mxu0 0
      %284 = vmatpush1.bf16.xpose.msra.mxu0 0
      %285 = vmatprep.subr.bf16.mxu0 0
      %286 = vmatpush1.bf16.xpose.msra.mxu0 0
      %287 = vmatprep.subr.bf16.mxu0 0
      %288 = vmatpush1.bf16.xpose.msra.mxu0 0
      %289 = vmatprep.subr.bf16.mxu0 0
      %290 = vmatpush1.bf16.xpose.msra.mxu0 0
      %291 = vmatprep.subr.bf16.mxu0 0
      %292 = vmatpush1.bf16.xpose.msra.mxu0 0
      %293 = vmatprep.subr.bf16.mxu0 0
      %294 = vmatpush1.bf16.xpose.msra.mxu0 0
      %295 = vmatprep.subr.bf16.mxu0 0
      %296 = vmatpush1.bf16.xpose.msra.mxu0 0
      %297 = vmatprep.subr.bf16.mxu0 0
      %298 = vmatpush1.bf16.xpose.msra.mxu0 0
      %299 = vmatprep.subr.bf16.mxu0 0
      %300 = vmatpush1.bf16.xpose.msra.mxu0 0
      %301 = vmatprep.subr.bf16.mxu0 0
      %302 = vmatpush1.bf16.xpose.msra.mxu0 0
      %303 = vmatprep.subr.bf16.mxu0 0
      %304 = vmatpush1.bf16.xpose.msra.mxu0 0
      %305 = vmatprep.subr.bf16.mxu0 0
      %306 = vmatpush1.bf16.xpose.msra.mxu0 0
      %307 = vmatprep.subr.bf16.mxu0 0
      %308 = vmatpush1.bf16.xpose.msra.mxu0 0
      %309 = vmatprep.subr.bf16.mxu0 0
      %310 = vmatpush1.bf16.xpose.msra.mxu0 0
      %311 = vmatprep.mubr.bf16.mxu0 0
      %312 = vmatmul.mubr.bf16.gmra.mrb[0].mxu0 %v274
      %v313 = vpop.f32.mrb[0].mxu0
      %v314 = vadd.f32 %v265, %v313
      %v315 = vpop.f32.mrb[0].mxu0
      %v316 = vpop.f32.mrb[0].mxu0
      %v317 = vpop.f32.mrb[0].mxu0
      %318 = vdwg.mxu0
      %320 = vrot.lane.b32.xlu0 %v267, 104
      %v321 = vpop.permute.xlu0 %320
      %322 = vrot.lane.b32.xlu0 %v268, 96
      %v323 = vpop.permute.xlu0 %322
      %v325 = vsel %vm272, %v321, 0
      %v328 = vsel %vm272, %v323, 0
      %330 = vmatprep.subr.bf16.mxu0 0
      %331 = vmatpush1.bf16.xpose.msra.mxu0 %v328
      %332 = vmatprep.subr.bf16.mxu0 0
      %333 = vmatpush1.bf16.xpose.msra.mxu0 0
      %334 = vmatprep.subr.bf16.mxu0 0
      %335 = vmatpush1.bf16.xpose.msra.mxu0 0
      %336 = vmatprep.subr.bf16.mxu0 0
      %337 = vmatpush1.bf16.xpose.msra.mxu0 0
      %338 = vmatprep.subr.bf16.mxu0 0
      %339 = vmatpush1.bf16.xpose.msra.mxu0 0
      %340 = vmatprep.subr.bf16.mxu0 0
      %341 = vmatpush1.bf16.xpose.msra.mxu0 0
      %342 = vmatprep.subr.bf16.mxu0 0
      %343 = vmatpush1.bf16.xpose.msra.mxu0 0
      %344 = vmatprep.subr.bf16.mxu0 0
      %345 = vmatpush1.bf16.xpose.msra.mxu0 0
      %346 = vmatprep.subr.bf16.mxu0 0
      %347 = vmatpush1.bf16.xpose.msra.mxu0 0
      %348 = vmatprep.subr.bf16.mxu0 0
      %349 = vmatpush1.bf16.xpose.msra.mxu0 0
      %350 = vmatprep.subr.bf16.mxu0 0
      %351 = vmatpush1.bf16.xpose.msra.mxu0 0
      %352 = vmatprep.subr.bf16.mxu0 0
      %353 = vmatpush1.bf16.xpose.msra.mxu0 0
      %354 = vmatprep.subr.bf16.mxu0 0
      %355 = vmatpush1.bf16.xpose.msra.mxu0 0
      %356 = vmatprep.subr.bf16.mxu0 0
      %357 = vmatpush1.bf16.xpose.msra.mxu0 0
      %358 = vmatprep.subr.bf16.mxu0 0
      %359 = vmatpush1.bf16.xpose.msra.mxu0 0
      %360 = vmatprep.subr.bf16.mxu0 0
      %361 = vmatpush1.bf16.xpose.msra.mxu0 0
      %362 = vmatprep.mubr.bf16.mxu0 0
      %363 = vmatmul.mubr.bf16.gmra.mrb[0].mxu0 %v325
      %v364 = vpop.f32.mrb[0].mxu0
      %v365 = vadd.f32 %v265, %v364
      %v366 = vpop.f32.mrb[0].mxu0
      %v367 = vpop.f32.mrb[0].mxu0
      %v368 = vpop.f32.mrb[0].mxu0
      %369 = vdwg.mxu0
      %370 = vrot.lane.b32.xlu0 %v267, 80
      %v371 = vpop.permute.xlu0 %370
      %372 = vrot.lane.b32.xlu0 %v268, 72
      %v373 = vpop.permute.xlu0 %372
      %v375 = vsel %vm272, %v371, 0
      %v378 = vsel %vm272, %v373, 0
      %380 = vmatprep.subr.bf16.mxu0 0
      %381 = vmatpush1.bf16.xpose.msra.mxu0 %v378
      %382 = vmatprep.subr.bf16.mxu0 0
      %383 = vmatpush1.bf16.xpose.msra.mxu0 0
      %384 = vmatprep.subr.bf16.mxu0 0
      %385 = vmatpush1.bf16.xpose.msra.mxu0 0
      %386 = vmatprep.subr.bf16.mxu0 0
      %387 = vmatpush1.bf16.xpose.msra.mxu0 0
      %388 = vmatprep.subr.bf16.mxu0 0
      %389 = vmatpush1.bf16.xpose.msra.mxu0 0
      %390 = vmatprep.subr.bf16.mxu0 0
      %391 = vmatpush1.bf16.xpose.msra.mxu0 0
      %392 = vmatprep.subr.bf16.mxu0 0
      %393 = vmatpush1.bf16.xpose.msra.mxu0 0
      %394 = vmatprep.subr.bf16.mxu0 0
      %395 = vmatpush1.bf16.xpose.msra.mxu0 0
      %396 = vmatprep.subr.bf16.mxu0 0
      %397 = vmatpush1.bf16.xpose.msra.mxu0 0
      %398 = vmatprep.subr.bf16.mxu0 0
      %399 = vmatpush1.bf16.xpose.msra.mxu0 0
      %400 = vmatprep.subr.bf16.mxu0 0
      %401 = vmatpush1.bf16.xpose.msra.mxu0 0
      %402 = vmatprep.subr.bf16.mxu0 0
      %403 = vmatpush1.bf16.xpose.msra.mxu0 0
      %404 = vmatprep.subr.bf16.mxu0 0
      %405 = vmatpush1.bf16.xpose.msra.mxu0 0
      %406 = vmatprep.subr.bf16.mxu0 0
      %407 = vmatpush1.bf16.xpose.msra.mxu0 0
      %408 = vmatprep.subr.bf16.mxu0 0
      %409 = vmatpush1.bf16.xpose.msra.mxu0 0
      %410 = vmatprep.subr.bf16.mxu0 0
      %411 = vmatpush1.bf16.xpose.msra.mxu0 0
      %412 = vmatprep.mubr.bf16.mxu0 0
      %413 = vmatmul.mubr.bf16.gmra.mrb[0].mxu0 %v375
      %v414 = vpop.f32.mrb[0].mxu0
      %v415 = vadd.f32 %v265, %v414
      %v416 = vpop.f32.mrb[0].mxu0
      %v417 = vpop.f32.mrb[0].mxu0
      %v418 = vpop.f32.mrb[0].mxu0
      %419 = vdwg.mxu0
      %420 = vrot.lane.b32.xlu0 %v267, 56
      %v421 = vpop.permute.xlu0 %420
      %422 = vrot.lane.b32.xlu0 %v268, 48
      %v423 = vpop.permute.xlu0 %422
      %v425 = vsel %vm272, %v421, 0
      %v428 = vsel %vm272, %v423, 0
      %430 = vmatprep.subr.bf16.mxu0 0
      %431 = vmatpush1.bf16.xpose.msra.mxu0 %v428
      %432 = vmatprep.subr.bf16.mxu0 0
      %433 = vmatpush1.bf16.xpose.msra.mxu0 0
      %434 = vmatprep.subr.bf16.mxu0 0
      %435 = vmatpush1.bf16.xpose.msra.mxu0 0
      %436 = vmatprep.subr.bf16.mxu0 0
      %437 = vmatpush1.bf16.xpose.msra.mxu0 0
      %438 = vmatprep.subr.bf16.mxu0 0
      %439 = vmatpush1.bf16.xpose.msra.mxu0 0
      %440 = vmatprep.subr.bf16.mxu0 0
      %441 = vmatpush1.bf16.xpose.msra.mxu0 0
      %442 = vmatprep.subr.bf16.mxu0 0
      %443 = vmatpush1.bf16.xpose.msra.mxu0 0
      %444 = vmatprep.subr.bf16.mxu0 0
      %445 = vmatpush1.bf16.xpose.msra.mxu0 0
      %446 = vmatprep.subr.bf16.mxu0 0
      %447 = vmatpush1.bf16.xpose.msra.mxu0 0
      %448 = vmatprep.subr.bf16.mxu0 0
      %449 = vmatpush1.bf16.xpose.msra.mxu0 0
      %450 = vmatprep.subr.bf16.mxu0 0
      %451 = vmatpush1.bf16.xpose.msra.mxu0 0
      %452 = vmatprep.subr.bf16.mxu0 0
      %453 = vmatpush1.bf16.xpose.msra.mxu0 0
      %454 = vmatprep.subr.bf16.mxu0 0
      %455 = vmatpush1.bf16.xpose.msra.mxu0 0
      %456 = vmatprep.subr.bf16.mxu0 0
      %457 = vmatpush1.bf16.xpose.msra.mxu0 0
      %458 = vmatprep.subr.bf16.mxu0 0
      %459 = vmatpush1.bf16.xpose.msra.mxu0 0
      %460 = vmatprep.subr.bf16.mxu0 0
      %461 = vmatpush1.bf16.xpose.msra.mxu0 0
      %462 = vmatprep.mubr.bf16.mxu0 0
      %463 = vmatmul.mubr.bf16.gmra.mrb[0].mxu0 %v425
      %v464 = vpop.f32.mrb[0].mxu0
      %v465 = vadd.f32 %v265, %v464
      %v466 = vpop.f32.mrb[0].mxu0
      %v467 = vpop.f32.mrb[0].mxu0
      %v468 = vpop.f32.mrb[0].mxu0
      %469 = vdwg.mxu0
      %v470 = vmax.f32 %v314, %v365
      %v471 = vmax.f32 %v470, %v415
      %v472 = vmax.f32 %v471, %v465
      %v473 = vsub.f32 %v314, %v472
      %v474 = vmul.f32 %v473, 1.442695
      %v475 = vpow.pop %v474
      %v476 = vsub.f32 %v365, %v472
      %v477 = vmul.f32 %v476, 1.442695
      %v478 = vpow.pop %v477
      %v479 = vsub.f32 %v415, %v472
      %v480 = vmul.f32 %v479, 1.442695
      %v481 = vpow.pop %v480
      %v482 = vsub.f32 %v465, %v472
      %v483 = vmul.f32 %v482, 1.442695
      %v484 = vpow.pop %v483
      %v485 = vadd.f32 %v475, %v478
      %v486 = vadd.f32 %v485, %v481
      %v487 = vadd.f32 %v486, %v484
      %v488 = vrcp.pop %v487
      %v489 = vmul.f32 %v475, %v488
      %v490 = vpack.c.bf16 %v489, %v489
      %491 = vrot.lane.b32.xlu0 %v268, 112
      %v492 = vpop.permute.xlu0 %491
      %v494 = vsel %vm272, %v490, 0
      %vm496 = vcmask 1043456
      %v498 = vsel %vm496, %v492, 0
      %500 = vmatprep.subr.bf16.mxu0 0
      %501 = vmatpush1.bf16.msra.mxu0 %v498
      %502 = vmatprep.subr.bf16.mxu0 0
      %503 = vmatpush1.bf16.msra.mxu0 0
      %504 = vmatprep.subr.bf16.mxu0 0
      %505 = vmatpush1.bf16.msra.mxu0 0
      %506 = vmatprep.subr.bf16.mxu0 0
      %507 = vmatpush1.bf16.msra.mxu0 0
      %508 = vmatprep.subr.bf16.mxu0 0
      %509 = vmatpush1.bf16.msra.mxu0 0
      %510 = vmatprep.subr.bf16.mxu0 0
      %511 = vmatpush1.bf16.msra.mxu0 0
      %512 = vmatprep.subr.bf16.mxu0 0
      %513 = vmatpush1.bf16.msra.mxu0 0
      %514 = vmatprep.subr.bf16.mxu0 0
      %515 = vmatpush1.bf16.msra.mxu0 0
      %516 = vmatprep.subr.bf16.mxu0 0
      %517 = vmatpush1.bf16.msra.mxu0 0
      %518 = vmatprep.subr.bf16.mxu0 0
      %519 = vmatpush1.bf16.msra.mxu0 0
      %520 = vmatprep.subr.bf16.mxu0 0
      %521 = vmatpush1.bf16.msra.mxu0 0
      %522 = vmatprep.subr.bf16.mxu0 0
      %523 = vmatpush1.bf16.msra.mxu0 0
      %524 = vmatprep.subr.bf16.mxu0 0
      %525 = vmatpush1.bf16.msra.mxu0 0
      %526 = vmatprep.subr.bf16.mxu0 0
      %527 = vmatpush1.bf16.msra.mxu0 0
      %528 = vmatprep.subr.bf16.mxu0 0
      %529 = vmatpush1.bf16.msra.mxu0 0
      %530 = vmatprep.subr.bf16.mxu0 0
      %531 = vmatpush1.bf16.msra.mxu0 0
      %532 = vmatprep.mubr.bf16.mxu0 0
      %533 = vmatmul.mubr.bf16.gmra.mrb[0].mxu0 %v494
      %v534 = vpop.f32.mrb[0].mxu0
      %v535 = vadd.f32 0.0, %v534
      %v536 = vpop.f32.mrb[0].mxu0
      %v537 = vpop.f32.mrb[0].mxu0
      %v538 = vpop.f32.mrb[0].mxu0
      %539 = vdwg.mxu0
      %v540 = vmul.f32 %v478, %v488
      %v541 = vpack.c.bf16 %v540, %v540
      %542 = vrot.lane.b32.xlu0 %v268, 88
      %v543 = vpop.permute.xlu0 %542
      %v545 = vsel %vm272, %v541, 0
      %v548 = vsel %vm496, %v543, 0
      %550 = vmatprep.subr.bf16.mxu0 0
      %551 = vmatpush1.bf16.msra.mxu0 %v548
      %552 = vmatprep.subr.bf16.mxu0 0
      %553 = vmatpush1.bf16.msra.mxu0 0
      %554 = vmatprep.subr.bf16.mxu0 0
      %555 = vmatpush1.bf16.msra.mxu0 0
      %556 = vmatprep.subr.bf16.mxu0 0
      %557 = vmatpush1.bf16.msra.mxu0 0
      %558 = vmatprep.subr.bf16.mxu0 0
      %559 = vmatpush1.bf16.msra.mxu0 0
      %560 = vmatprep.subr.bf16.mxu0 0
      %561 = vmatpush1.bf16.msra.mxu0 0
      %562 = vmatprep.subr.bf16.mxu0 0
      %563 = vmatpush1.bf16.msra.mxu0 0
      %564 = vmatprep.subr.bf16.mxu0 0
      %565 = vmatpush1.bf16.msra.mxu0 0
      %566 = vmatprep.subr.bf16.mxu0 0
      %567 = vmatpush1.bf16.msra.mxu0 0
      %568 = vmatprep.subr.bf16.mxu0 0
      %569 = vmatpush1.bf16.msra.mxu0 0
      %570 = vmatprep.subr.bf16.mxu0 0
      %571 = vmatpush1.bf16.msra.mxu0 0
      %572 = vmatprep.subr.bf16.mxu0 0
      %573 = vmatpush1.bf16.msra.mxu0 0
      %574 = vmatprep.subr.bf16.mxu0 0
      %575 = vmatpush1.bf16.msra.mxu0 0
      %576 = vmatprep.subr.bf16.mxu0 0
      %577 = vmatpush1.bf16.msra.mxu0 0
      %578 = vmatprep.subr.bf16.mxu0 0
      %579 = vmatpush1.bf16.msra.mxu0 0
      %580 = vmatprep.subr.bf16.mxu0 0
      %581 = vmatpush1.bf16.msra.mxu0 0
      %582 = vmatprep.mubr.bf16.mxu0 0
      %583 = vmatmul.mubr.bf16.gmra.mrb[0].mxu0 %v545
      %v584 = vpop.f32.mrb[0].mxu0
      %v585 = vadd.f32 0.0, %v584
      %v586 = vpop.f32.mrb[0].mxu0
      %v587 = vpop.f32.mrb[0].mxu0
      %v588 = vpop.f32.mrb[0].mxu0
      %589 = vdwg.mxu0
      %v590 = vmul.f32 %v481, %v488
      %v591 = vpack.c.bf16 %v590, %v590
      %592 = vrot.lane.b32.xlu0 %v268, 64
      %v593 = vpop.permute.xlu0 %592
      %v595 = vsel %vm272, %v591, 0
      %v598 = vsel %vm496, %v593, 0
      %600 = vmatprep.subr.bf16.mxu0 0
      %601 = vmatpush1.bf16.msra.mxu0 %v598
      %602 = vmatprep.subr.bf16.mxu0 0
      %603 = vmatpush1.bf16.msra.mxu0 0
      %604 = vmatprep.subr.bf16.mxu0 0
      %605 = vmatpush1.bf16.msra.mxu0 0
      %606 = vmatprep.subr.bf16.mxu0 0
      %607 = vmatpush1.bf16.msra.mxu0 0
      %608 = vmatprep.subr.bf16.mxu0 0
      %609 = vmatpush1.bf16.msra.mxu0 0
      %610 = vmatprep.subr.bf16.mxu0 0
      %611 = vmatpush1.bf16.msra.mxu0 0
      %612 = vmatprep.subr.bf16.mxu0 0
      %613 = vmatpush1.bf16.msra.mxu0 0
      %614 = vmatprep.subr.bf16.mxu0 0
      %615 = vmatpush1.bf16.msra.mxu0 0
      %616 = vmatprep.subr.bf16.mxu0 0
      %617 = vmatpush1.bf16.msra.mxu0 0
      %618 = vmatprep.subr.bf16.mxu0 0
      %619 = vmatpush1.bf16.msra.mxu0 0
      %620 = vmatprep.subr.bf16.mxu0 0
      %621 = vmatpush1.bf16.msra.mxu0 0
      %622 = vmatprep.subr.bf16.mxu0 0
      %623 = vmatpush1.bf16.msra.mxu0 0
      %624 = vmatprep.subr.bf16.mxu0 0
      %625 = vmatpush1.bf16.msra.mxu0 0
      %626 = vmatprep.subr.bf16.mxu0 0
      %627 = vmatpush1.bf16.msra.mxu0 0
      %628 = vmatprep.subr.bf16.mxu0 0
      %629 = vmatpush1.bf16.msra.mxu0 0
      %630 = vmatprep.subr.bf16.mxu0 0
      %631 = vmatpush1.bf16.msra.mxu0 0
      %632 = vmatprep.mubr.bf16.mxu0 0
      %633 = vmatmul.mubr.bf16.gmra.mrb[0].mxu0 %v595
      %v634 = vpop.f32.mrb[0].mxu0
      %v635 = vadd.f32 0.0, %v634
      %v636 = vpop.f32.mrb[0].mxu0
      %v637 = vpop.f32.mrb[0].mxu0
      %v638 = vpop.f32.mrb[0].mxu0
      %639 = vdwg.mxu0
      %v640 = vmul.f32 %v484, %v488
      %v641 = vpack.c.bf16 %v640, %v640
      %642 = vrot.lane.b32.xlu0 %v268, 40
      %v643 = vpop.permute.xlu0 %642
      %v645 = vsel %vm272, %v641, 0
      %v648 = vsel %vm496, %v643, 0
      %650 = vmatprep.subr.bf16.mxu0 0
      %651 = vmatpush1.bf16.msra.mxu0 %v648
      %652 = vmatprep.subr.bf16.mxu0 0
      %653 = vmatpush1.bf16.msra.mxu0 0
      %654 = vmatprep.subr.bf16.mxu0 0
      %655 = vmatpush1.bf16.msra.mxu0 0
      %656 = vmatprep.subr.bf16.mxu0 0
      %657 = vmatpush1.bf16.msra.mxu0 0
      %658 = vmatprep.subr.bf16.mxu0 0
      %659 = vmatpush1.bf16.msra.mxu0 0
      %660 = vmatprep.subr.bf16.mxu0 0
      %661 = vmatpush1.bf16.msra.mxu0 0
      %662 = vmatprep.subr.bf16.mxu0 0
      %663 = vmatpush1.bf16.msra.mxu0 0
      %664 = vmatprep.subr.bf16.mxu0 0
      %665 = vmatpush1.bf16.msra.mxu0 0
      %666 = vmatprep.subr.bf16.mxu0 0
      %667 = vmatpush1.bf16.msra.mxu0 0
      %668 = vmatprep.subr.bf16.mxu0 0
      %669 = vmatpush1.bf16.msra.mxu0 0
      %670 = vmatprep.subr.bf16.mxu0 0
      %671 = vmatpush1.bf16.msra.mxu0 0
      %672 = vmatprep.subr.bf16.mxu0 0
      %673 = vmatpush1.bf16.msra.mxu0 0
      %674 = vmatprep.subr.bf16.mxu0 0
      %675 = vmatpush1.bf16.msra.mxu0 0
      %676 = vmatprep.subr.bf16.mxu0 0
      %677 = vmatpush1.bf16.msra.mxu0 0
      %678 = vmatprep.subr.bf16.mxu0 0
      %679 = vmatpush1.bf16.msra.mxu0 0
      %680 = vmatprep.subr.bf16.mxu0 0
      %681 = vmatpush1.bf16.msra.mxu0 0
      %682 = vmatprep.mubr.bf16.mxu0 0
      %683 = vmatmul.mubr.bf16.gmra.mrb[0].mxu0 %v645
      %v684 = vpop.f32.mrb[0].mxu0
      %v685 = vadd.f32 0.0, %v684
      %v686 = vpop.f32.mrb[0].mxu0
      %v687 = vpop.f32.mrb[0].mxu0
      %v688 = vpop.f32.mrb[0].mxu0
      %689 = vdwg.mxu0
      %v690 = vpack.c.bf16 %v535, %v535
      %v691 = vpack.c.bf16 %v585, %v585
      %v692 = vpack.c.bf16 %v635, %v635
      %v693 = vpack.c.bf16 %v685, %v685
      %vm694 = vcmask 60416
      %695 = vst.msk [vmem:[%s194] sm:$0xf] %vm694, %v690
      %696 = vst.msk [vmem:[%s194 + $0x4] sm:$0xf] %vm694, %v691
      %697 = vst.msk [vmem:[%s194 + $0x8] sm:$0xf] %vm694, %v692
      %698 = vst.msk [vmem:[%s194 + $0xc] sm:$0xf] %vm694, %v693
      %p699 = scmp.lt.s32.totalorder %s15, 1
      %s700 = scalar_select %p699, %s15, 1
      %s701 = smul.addr %s700, 4
      %s702 = smul.addr %s701, 4
      %s703 = scalar_lea.vmem %s4, %s702
      // Predicated region
      $region37: #{decoder_forward.10} parent=35 // pred_check
        %p704 = pneg %p122
      $region38: #{decoder_forward.10} parent=35 // pred_check_branch
        %706 = sbr.rel (%p704) target = $region40
      $region39: #{decoder_forward.10} parent=35 // pred_region
        _
      $region40: #{decoder_forward.10} parent=35 // pred_fallthru
        _
    $region36: #{decoder_forward.10} parent=5 // pred_fallthru
      _
    %p707 = scmp.le.s32.totalorder 2, %s10
    // Predicated region
    $region41: #{decoder_forward.10} parent=5 // pred_check
      %p708 = pneg %p707
    $region42: #{decoder_forward.10} parent=5 // pred_check_branch
      %710 = sbr.rel (%p708) target = $region44
    $region43: #{decoder_forward.10} parent=5 // pred_region
      %s711 = ssub.s32 %s10, 2
      // Predicated region
      $region45: #{decoder_forward.10} parent=43 // pred_check
        %p712 = pneg %p128
      $region46: #{decoder_forward.10} parent=43 // pred_check_branch
        %714 = sbr.rel (%p712) target = $region48
      $region47: #{decoder_forward.10} parent=43 // pred_region
        %p715 = scmp.lt.s32.totalorder %s16, 1
        %s716 = scalar_select %p715, %s16, 1
        %s717 = smul.addr %s716, 4
        %s718 = smul.addr %s717, 4
        %s719 = scalar_lea.vmem %s4, %s718
      $region48: #{decoder_forward.10} parent=43 // pred_fallthru
        _
    $region44: #{decoder_forward.10} parent=5 // pred_fallthru
      _
  $region6: #{decoder_forward.10} parent=0 // loop_footer
    %s14 = sadd.s32 1, %s10
  $region7: #{decoder_forward.10} parent=0 // loop_footer_branch
    %9 = sbr.rel target = $region3
  $region8: #{decoder_forward.10} parent=0 // loop_exit
    _

// kernel: decoder_forward.12
$region0: #{decoder_forward.12}
  #allocation0 [shape = 'u32[]', space=smem, size = 0x4, offset = 0x4, fixed_abs, tag = 'smem constant byte address 0x4 - core index']
  #allocation1 [shape = 'u32[144,128]{1,0:T(1,128)}', space=vmem, size = 0x12000, scoped, tag = 'internal scratch']
  %s0 = inlined_call_operand.vmem [shape: f32[2,8,32], index: 0, kind: input, shape index: {}]
  %s1 = inlined_call_operand.vmem [shape: f32[2,8,32], index: 1, kind: input, shape index: {}]
  %s2 = inlined_call_operand.vmem [shape: bf16[32,64], index: 2, kind: input, shape index: {}]
  %s3 = inlined_call_operand.vmem [shape: f32[1,64], index: 3, kind: input, shape index: {}]
  %s4 = inlined_call_operand.vmem [shape: bf16[32,32], index: 4, kind: input, shape index: {}]
  %s5 = inlined_call_operand.vmem [shape: f32[1,32], index: 5, kind: input, shape index: {}]
  %s6 = inlined_call_operand.vmem [shape: bf16[2,4,8,8], index: 6, kind: output, shape index: {}]
  %s7 = sld [smem:[#allocation0]]
  $region57: #{decoder_forward.12} parent=0
    _
  %s9 = ssub.s32 1, %s7
  %s10 = scalar_select 0, %s9, %s7
  loop: start=0, step=1, limit=4
  $region2: #{decoder_forward.12} parent=0 // loop_pre_header
    _
  $region3: #{decoder_forward.12} parent=0 // loop_header
    %s12 = sphi 0, %s16
    %p13 = scmp.ge.s32.totalorder %s12, 4
    %s22 = sphi 0, %s24
    %s25 = sphi 0, %s22
    %s26 = sphi 0, %s25
    %s42 = sphi 0, %s26
    %s48 = sphi 0, %s50
    %s51 = sphi 0, %s48
    %s52 = sphi 0, %s51
    %s68 = sphi 0, %s52
    %s72 = sphi 0, %s72
    %s74 = sphi 0, %s72
    %s75 = sphi 0, %s74
    %s89 = sphi 0, %s75
    %s93 = sphi 0, %s93
    %s95 = sphi 0, %s93
    %s96 = sphi 0, %s95
    %s110 = sphi 0, %s96
    %s114 = sphi 0, %s114
    %s116 = sphi 0, %s114
    %s117 = sphi 0, %s116
    %s131 = sphi 0, %s117
    %s135 = sphi 0, %s135
    %s137 = sphi 0, %s135
    %s138 = sphi 0, %s137
    %s152 = sphi 0, %s138
    %s158 = sphi 0, %s160
    %s161 = sphi 0, %s158
    %s162 = sphi 0, %s161
    %s178 = sphi 0, %s162
  $region4: #{decoder_forward.12} parent=0 // loop_header_branch
    %15 = sbr.rel (%p13) target = $region8
  $region5: #{decoder_forward.12} parent=0 // loop_body
    %s17 = ssub.s32 %s12, 1
    %s18 = ssub.s32 %s12, 2
    %s19 = sadd.s32 %s12, 1
    %s20 = ssub.s32 %s12, %s19
    %p21 = scmp.eq.s32.totalorder %s20, 0
    %s23 = sadd.s32 %s22, 1
    %s24 = scalar_select %p21, %s22, %s23
    %p27 = pneg %p21
    %p28 = scmp.eq.s32.totalorder %s12, 1
    %p29 = por %p27, %p28
    %p30 = scmp.ne.s32.totalorder %s22, %s25
    %p31 = scmp.eq.s32.totalorder %s12, 0
    %p32 = por %p30, %p31
    %p33 = scmp.ne.s32.totalorder %s22, %s25
    %p34 = scmp.eq.s32.totalorder %s17, 1
    %p35 = por %p33, %p34
    %p36 = scmp.ne.s32.totalorder %s25, %s26
    %p37 = scmp.eq.s32.totalorder %s17, 0
    %p38 = por %p36, %p37
    %p39 = scmp.ne.s32.totalorder %s25, %s26
    %p40 = scmp.eq.s32.totalorder %s18, 1
    %p41 = por %p39, %p40
    %p43 = scmp.ne.s32.totalorder %s26, %s42
    %p44 = scmp.eq.s32.totalorder %s18, 0
    %p45 = por %p43, %p44
    %s46 = ssub.s32 %s12, %s19
    %p47 = scmp.eq.s32.totalorder %s46, 0
    %s49 = sadd.s32 %s48, 1
    %s50 = scalar_select %p47, %s48, %s49
    %p53 = pneg %p47
    %p54 = scmp.eq.s32.totalorder %s12, 1
    %p55 = por %p53, %p54
    %p56 = scmp.ne.s32.totalorder %s48, %s51
    %p57 = scmp.eq.s32.totalorder %s12, 0
    %p58 = por %p56, %p57
    %p59 = scmp.ne.s32.totalorder %s48, %s51
    %p60 = scmp.eq.s32.totalorder %s17, 1
    %p61 = por %p59, %p60
    %p62 = scmp.ne.s32.totalorder %s51, %s52
    %p63 = scmp.eq.s32.totalorder %s17, 0
    %p64 = por %p62, %p63
    %p65 = scmp.ne.s32.totalorder %s51, %s52
    %p66 = scmp.eq.s32.totalorder %s18, 1
    %p67 = por %p65, %p66
    %p69 = scmp.ne.s32.totalorder %s52, %s68
    %p70 = scmp.eq.s32.totalorder %s18, 0
    %p71 = por %p69, %p70
    %s73 = sadd.s32 %s72, 1
    %p76 = scmp.eq.s32.totalorder %s12, 1
    %p77 = scmp.ne.s32.totalorder %s72, %s74
    %p78 = scmp.eq.s32.totalorder %s12, 0
    %p79 = por %p77, %p78
    %p80 = scmp.ne.s32.totalorder %s72, %s74
    %p81 = scmp.eq.s32.totalorder %s17, 1
    %p82 = por %p80, %p81
    %p83 = scmp.ne.s32.totalorder %s74, %s75
    %p84 = scmp.eq.s32.totalorder %s17, 0
    %p85 = por %p83, %p84
    %p86 = scmp.ne.s32.totalorder %s74, %s75
    %p87 = scmp.eq.s32.totalorder %s18, 1
    %p88 = por %p86, %p87
    %p90 = scmp.ne.s32.totalorder %s75, %s89
    %p91 = scmp.eq.s32.totalorder %s18, 0
    %p92 = por %p90, %p91
    %s94 = sadd.s32 %s93, 1
    %p97 = scmp.eq.s32.totalorder %s12, 1
    %p98 = scmp.ne.s32.totalorder %s93, %s95
    %p99 = scmp.eq.s32.totalorder %s12, 0
    %p100 = por %p98, %p99
    %p101 = scmp.ne.s32.totalorder %s93, %s95
    %p102 = scmp.eq.s32.totalorder %s17, 1
    %p103 = por %p101, %p102
    %p104 = scmp.ne.s32.totalorder %s95, %s96
    %p105 = scmp.eq.s32.totalorder %s17, 0
    %p106 = por %p104, %p105
    %p107 = scmp.ne.s32.totalorder %s95, %s96
    %p108 = scmp.eq.s32.totalorder %s18, 1
    %p109 = por %p107, %p108
    %p111 = scmp.ne.s32.totalorder %s96, %s110
    %p112 = scmp.eq.s32.totalorder %s18, 0
    %p113 = por %p111, %p112
    %s115 = sadd.s32 %s114, 1
    %p118 = scmp.eq.s32.totalorder %s12, 1
    %p119 = scmp.ne.s32.totalorder %s114, %s116
    %p120 = scmp.eq.s32.totalorder %s12, 0
    %p121 = por %p119, %p120
    %p122 = scmp.ne.s32.totalorder %s114, %s116
    %p123 = scmp.eq.s32.totalorder %s17, 1
    %p124 = por %p122, %p123
    %p125 = scmp.ne.s32.totalorder %s116, %s117
    %p126 = scmp.eq.s32.totalorder %s17, 0
    %p127 = por %p125, %p126
    %p128 = scmp.ne.s32.totalorder %s116, %s117
    %p129 = scmp.eq.s32.totalorder %s18, 1
    %p130 = por %p128, %p129
    %p132 = scmp.ne.s32.totalorder %s117, %s131
    %p133 = scmp.eq.s32.totalorder %s18, 0
    %p134 = por %p132, %p133
    %s136 = sadd.s32 %s135, 1
    %p139 = scmp.eq.s32.totalorder %s12, 1
    %p140 = scmp.ne.s32.totalorder %s135, %s137
    %p141 = scmp.eq.s32.totalorder %s12, 0
    %p142 = por %p140, %p141
    %p143 = scmp.ne.s32.totalorder %s135, %s137
    %p144 = scmp.eq.s32.totalorder %s17, 1
    %p145 = por %p143, %p144
    %p146 = scmp.ne.s32.totalorder %s137, %s138
    %p147 = scmp.eq.s32.totalorder %s17, 0
    %p148 = por %p146, %p147
    %p149 = scmp.ne.s32.totalorder %s137, %s138
    %p150 = scmp.eq.s32.totalorder %s18, 1
    %p151 = por %p149, %p150
    %p153 = scmp.ne.s32.totalorder %s138, %s152
    %p154 = scmp.eq.s32.totalorder %s18, 0
    %p155 = por %p153, %p154
    %s156 = ssub.s32 %s12, %s19
    %p157 = scmp.eq.s32.totalorder %s156, 0
    %s159 = sadd.s32 %s158, 1
    %s160 = scalar_select %p157, %s158, %s159
    %p163 = pneg %p157
    %p164 = scmp.eq.s32.totalorder %s12, 1
    %p165 = por %p163, %p164
    %p166 = scmp.ne.s32.totalorder %s158, %s161
    %p167 = scmp.eq.s32.totalorder %s12, 0
    %p168 = por %p166, %p167
    %p169 = scmp.ne.s32.totalorder %s158, %s161
    %p170 = scmp.eq.s32.totalorder %s17, 1
    %p171 = por %p169, %p170
    %p172 = scmp.ne.s32.totalorder %s161, %s162
    %p173 = scmp.eq.s32.totalorder %s17, 0
    %p174 = por %p172, %p173
    %p175 = scmp.ne.s32.totalorder %s161, %s162
    %p176 = scmp.eq.s32.totalorder %s18, 1
    %p177 = por %p175, %p176
    %p179 = scmp.ne.s32.totalorder %s162, %s178
    %p180 = scmp.eq.s32.totalorder %s18, 0
    %p181 = por %p179, %p180
    %p182 = scmp.le.s32.totalorder 1, %s12
    %p183 = scmp.lt.s32.totalorder %s12, 3
    %p184 = pnand %p182, %p183
    %p185 = pneg %p184
    // Predicated region
    $region9: #{decoder_forward.12} parent=5 // pred_check
      _
    $region10: #{decoder_forward.12} parent=5 // pred_check_branch
      %187 = sbr.rel (%p184) target = $region12
    $region11: #{decoder_forward.12} parent=5 // pred_region
      %s188 = ssub.s32 %s12, 1
      // Predicated region
      $region13: #{decoder_forward.12} parent=11 // pred_check
        %p189 = pneg %p85
      $region14: #{decoder_forward.12} parent=11 // pred_check_branch
        %191 = sbr.rel (%p189) target = $region16
      $region15: #{decoder_forward.12} parent=11 // pred_region
        _
      $region16: #{decoder_forward.12} parent=11 // pred_fallthru
        _
      // Predicated region
      $region17: #{decoder_forward.12} parent=11 // pred_check
        %p192 = pneg %p106
      $region18: #{decoder_forward.12} parent=11 // pred_check_branch
        %194 = sbr.rel (%p192) target = $region20
      $region19: #{decoder_forward.12} parent=11 // pred_region
        _
      $region20: #{decoder_forward.12} parent=11 // pred_fallthru
        _
      // Predicated region
      $region21: #{decoder_forward.12} parent=11 // pred_check
        %p195 = pneg %p127
      $region22: #{decoder_forward.12} parent=11 // pred_check_branch
        %197 = sbr.rel (%p195) target = $region24
      $region23: #{decoder_forward.12} parent=11 // pred_region
        _
      $region24: #{decoder_forward.12} parent=11 // pred_fallthru
        _
      // Predicated region
      $region25: #{decoder_forward.12} parent=11 // pred_check
        %p198 = pneg %p148
      $region26: #{decoder_forward.12} parent=11 // pred_check_branch
        %200 = sbr.rel (%p198) target = $region28
      $region27: #{decoder_forward.12} parent=11 // pred_region
        _
      $region28: #{decoder_forward.12} parent=11 // pred_fallthru
        _
    $region12: #{decoder_forward.12} parent=5 // pred_fallthru
      _
    %p201 = scmp.lt.s32.totalorder %s12, 2
    // Predicated region
    $region29: #{decoder_forward.12} parent=5 // pred_check
      %p202 = pneg %p201
    $region30: #{decoder_forward.12} parent=5 // pred_check_branch
      %204 = sbr.rel (%p202) target = $region32
    $region31: #{decoder_forward.12} parent=5 // pred_region
      // Predicated region
      $region33: #{decoder_forward.12} parent=31 // pred_check
        %p205 = pneg %p32
      $region34: #{decoder_forward.12} parent=31 // pred_check_branch
        %207 = sbr.rel (%p205) target = $region36
      $region35: #{decoder_forward.12} parent=31 // pred_region
        %p208 = scmp.lt.s32.totalorder %s12, 1
        %s209 = scalar_select %p208, %s12, 1
        %s210 = smul.addr %s209, 8
        %s211 = scalar_lea.vmem %s0, %s210
      $region36: #{decoder_forward.12} parent=31 // pred_fallthru
        _
      // Predicated region
      $region37: #{decoder_forward.12} parent=31 // pred_check
        %p212 = pneg %p58
      $region38: #{decoder_forward.12} parent=31 // pred_check_branch
        %214 = sbr.rel (%p212) target = $region40
      $region39: #{decoder_forward.12} parent=31 // pred_region
        %p215 = scmp.lt.s32.totalorder %s12, 1
        %s216 = scalar_select %p215, %s12, 1
        %s217 = smul.addr %s216, 8
        %s218 = scalar_lea.vmem %s1, %s217
      $region40: #{decoder_forward.12} parent=31 // pred_fallthru
        _
    $region32: #{decoder_forward.12} parent=5 // pred_fallthru
      _
    %p219 = scmp.le.s32.totalorder 1, %s12
    %p220 = scmp.lt.s32.totalorder %s12, 3
    %p221 = pnand %p219, %p220
    %p222 = pneg %p221
    // Predicated region
    $region41: #{decoder_forward.12} parent=5 // pred_check
      _
    $region42: #{decoder_forward.12} parent=5 // pred_check_branch
      %224 = sbr.rel (%p221) target = $region44
    $region43: #{decoder_forward.12} parent=5 // pred_region
      %s225 = ssub.s32 %s12, 1
      %p226 = scmp.lt.s32.totalorder %s17, 1
      %s227 = scalar_select %p226, %s17, 1
      %s228 = smul.addr %s227, 8
      %s229 = scalar_lea.vmem %s0, %s228
      %p230 = pneg %p38
      %p231 = pneg %p35
      %p232 = scmp.lt.s32.totalorder %s17, 1
      %s233 = scalar_select %p232, %s17, 1
      %s234 = smul.addr %s233, 8
      %s235 = scalar_lea.vmem %s1, %s234
      %p236 = pneg %p64
      %p237 = pneg %p61
      %p238 = pneg %p85
      %p239 = pneg %p82
      %p240 = pneg %p106
      %p241 = pneg %p103
      %p242 = pneg %p127
      %p243 = pneg %p124
      %p244 = pneg %p148
      %p245 = pneg %p145
      %p246 = pneg %p174
      %p247 = pneg %p171
      %p248 = scmp.lt.s32.totalorder %s17, 1
      %s249 = scalar_select %p248, %s17, 1
      %s250 = smul.addr %s249, 4
      %s251 = smul.addr %s250, 4
      %s252 = scalar_lea.vmem %s6, %s251
      %p253 = scmp.lt.s32.totalorder %s17, 1
      %s254 = scalar_select %p253, %s17, 1
      %s255 = smul.addr %s254, 8
      %s256 = scalar_lea.vmem %s0, %s255
      %p257 = scmp.lt.s32.totalorder %s17, 1
      %s258 = scalar_select %p257, %s17, 1
      %s259 = smul.addr %s258, 8
      %s260 = scalar_lea.vmem %s1, %s259
      %p261 = scmp.lt.s32.totalorder %s17, 1
      %s262 = scalar_select %p261, %s17, 1
      %s263 = smul.addr %s262, 4
      %s264 = smul.addr %s263, 4
      %s265 = scalar_lea.vmem %s6, %s264
      %v267 = vld [vmem:[%s256] sm:$0xff]
      %v268 = vpack.c.bf16 %v267, %v267
      %v269 = vld [vmem:[%s260] sm:$0xff]
      %v270 = vpack.c.bf16 %v269, %v269
      %v271 = vld [vmem:[%s2] sm:$0xf]
      %v272 = vld [vmem:[%s2 + $0x4] sm:$0xf]
      %v273 = vld [vmem:[%s2 + $0x8] sm:$0xf]
      %v274 = vld [vmem:[%s2 + $0xc] sm:$0xf]
      %v275 = vld [vmem:[%s3] sm:$0x1]
      %v277 = vlaneseq
      %v278 = vshrl.u32 %v277, 7
      %v279 = vsub.s32 0, %v278
      %v280 = vrot.slane %v275, %v279
      %v286 = vunpack.c.l.b16 %v271
      %v287 = vunpack.c.l.b16 %v272
      %v288 = vunpack.c.l.b16 %v273
      %v289 = vunpack.c.l.b16 %v274
      %v290 = vpack.c.b16 %v287, %v286
      %v291 = vpack.c.b16 %v289, %v288
      %vm294 = vcmask 261120
      %v296 = vsel %vm294, %v268, 0
      %298 = vmatprep.subr.bf16.mxu0 0
      %299 = vmatpush1.bf16.msra.mxu0 %v290
      %300 = vmatprep.subr.bf16.mxu0 0
      %301 = vmatpush1.bf16.msra.mxu0 %v291
      %302 = vmatprep.subr.bf16.mxu0 0
      %303 = vmatpush1.bf16.msra.mxu0 0
      %304 = vmatprep.subr.bf16.mxu0 0
      %305 = vmatpush1.bf16.msra.mxu0 0
      %306 = vmatprep.subr.bf16.mxu0 0
      %307 = vmatpush1.bf16.msra.mxu0 0
      %308 = vmatprep.subr.bf16.mxu0 0
      %309 = vmatpush1.bf16.msra.mxu0 0
      %310 = vmatprep.subr.bf16.mxu0 0
      %311 = vmatpush1.bf16.msra.mxu0 0
      %312 = vmatprep.subr.bf16.mxu0 0
      %313 = vmatpush1.bf16.msra.mxu0 0
      %314 = vmatprep.subr.bf16.mxu0 0
      %315 = vmatpush1.bf16.msra.mxu0 0
      %316 = vmatprep.subr.bf16.mxu0 0
      %317 = vmatpush1.bf16.msra.mxu0 0
      %318 = vmatprep.subr.bf16.mxu0 0
      %319 = vmatpush1.bf16.msra.mxu0 0
      %320 = vmatprep.subr.bf16.mxu0 0
      %321 = vmatpush1.bf16.msra.mxu0 0
      %322 = vmatprep.subr.bf16.mxu0 0
      %323 = vmatpush1.bf16.msra.mxu0 0
      %324 = vmatprep.subr.bf16.mxu0 0
      %325 = vmatpush1.bf16.msra.mxu0 0
      %326 = vmatprep.subr.bf16.mxu0 0
      %327 = vmatpush1.bf16.msra.mxu0 0
      %328 = vmatprep.subr.bf16.mxu0 0
      %329 = vmatpush1.bf16.msra.mxu0 0
      %330 = vmatprep.mubr.bf16.mxu0 0
      %331 = vmatmul.mubr.bf16.gmra.mrb[0].mxu0 %v296
      %v332 = vpop.f32.mrb[0].mxu0
      %v333 = vadd.f32 %v280, %v332
      %v334 = vpop.f32.mrb[0].mxu0
      %v335 = vpop.f32.mrb[0].mxu0
      %v336 = vpop.f32.mrb[0].mxu0
      %337 = vdwg.mxu0
      %v338 = vld [vmem:[%s4] sm:$0xf]
      %v339 = vld [vmem:[%s4 + $0x4] sm:$0xf]
      %v340 = vld [vmem:[%s4 + $0x8] sm:$0xf]
      %v341 = vld [vmem:[%s4 + $0xc] sm:$0xf]
      %v342 = vld [vmem:[%s5] sm:$0x1]
      %v344 = vlaneseq
      %v345 = vshrl.u32 %v344, 7
      %v346 = vsub.s32 0, %v345
      %v347 = vrot.slane %v342, %v346
      %v353 = vunpack.c.l.b16 %v338
      %v354 = vunpack.c.l.b16 %v339
      %v355 = vunpack.c.l.b16 %v340
      %v356 = vunpack.c.l.b16 %v341
      %v357 = vpack.c.b16 %v354, %v353
      %v358 = vpack.c.b16 %v356, %v355
      %v362 = vsel %vm294, %v270, 0
      %364 = vmatprep.subr.bf16.mxu0 0
      %365 = vmatpush1.bf16.msra.mxu0 %v357
      %366 = vmatprep.subr.bf16.mxu0 0
      %367 = vmatpush1.bf16.msra.mxu0 %v358
      %368 = vmatprep.subr.bf16.mxu0 0
      %369 = vmatpush1.bf16.msra.mxu0 0
      %370 = vmatprep.subr.bf16.mxu0 0
      %371 = vmatpush1.bf16.msra.mxu0 0
      %372 = vmatprep.subr.bf16.mxu0 0
      %373 = vmatpush1.bf16.msra.mxu0 0
      %374 = vmatprep.subr.bf16.mxu0 0
      %375 = vmatpush1.bf16.msra.mxu0 0
      %376 = vmatprep.subr.bf16.mxu0 0
      %377 = vmatpush1.bf16.msra.mxu0 0
      %378 = vmatprep.subr.bf16.mxu0 0
      %379 = vmatpush1.bf16.msra.mxu0 0
      %380 = vmatprep.subr.bf16.mxu0 0
      %381 = vmatpush1.bf16.msra.mxu0 0
      %382 = vmatprep.subr.bf16.mxu0 0
      %383 = vmatpush1.bf16.msra.mxu0 0
      %384 = vmatprep.subr.bf16.mxu0 0
      %385 = vmatpush1.bf16.msra.mxu0 0
      %386 = vmatprep.subr.bf16.mxu0 0
      %387 = vmatpush1.bf16.msra.mxu0 0
      %388 = vmatprep.subr.bf16.mxu0 0
      %389 = vmatpush1.bf16.msra.mxu0 0
      %390 = vmatprep.subr.bf16.mxu0 0
      %391 = vmatpush1.bf16.msra.mxu0 0
      %392 = vmatprep.subr.bf16.mxu0 0
      %393 = vmatpush1.bf16.msra.mxu0 0
      %394 = vmatprep.subr.bf16.mxu0 0
      %395 = vmatpush1.bf16.msra.mxu0 0
      %396 = vmatprep.mubr.bf16.mxu0 0
      %397 = vmatmul.mubr.bf16.gmra.mrb[0].mxu0 %v362
      %v398 = vpop.f32.mrb[0].mxu0
      %v399 = vadd.f32 %v347, %v398
      %v400 = vpop.f32.mrb[0].mxu0
      %v401 = vpop.f32.mrb[0].mxu0
      %v402 = vpop.f32.mrb[0].mxu0
      %403 = vdwg.mxu0
      %v404 = vmul.f32 %v399, 0.35355338
      %v405 = vpack.c.bf16 %v404, %v404
      %v406 = vpack.c.bf16 %v333, %v333
      %vm407 = vcmask 64512
      %v409 = vsel %vm407, %v405, 0
      %v412 = vsel %vm407, %v406, 0
      %414 = vmatprep.subr.bf16.mxu0 0
      %415 = vmatpush1.bf16.xpose.msra.mxu0 %v412
      %416 = vmatprep.subr.bf16.mxu0 0
      %417 = vmatpush1.bf16.xpose.msra.mxu0 0
      %418 = vmatprep.subr.bf16.mxu0 0
      %419 = vmatpush1.bf16.xpose.msra.mxu0 0
      %420 = vmatprep.subr.bf16.mxu0 0
      %421 = vmatpush1.bf16.xpose.msra.mxu0 0
      %422 = vmatprep.subr.bf16.mxu0 0
      %423 = vmatpush1.bf16.xpose.msra.mxu0 0
      %424 = vmatprep.subr.bf16.mxu0 0
      %425 = vmatpush1.bf16.xpose.msra.mxu0 0
      %426 = vmatprep.subr.bf16.mxu0 0
      %427 = vmatpush1.bf16.xpose.msra.mxu0 0
      %428 = vmatprep.subr.bf16.mxu0 0
      %429 = vmatpush1.bf16.xpose.msra.mxu0 0
      %430 = vmatprep.subr.bf16.mxu0 0
      %431 = vmatpush1.bf16.xpose.msra.mxu0 0
      %432 = vmatprep.subr.bf16.mxu0 0
      %433 = vmatpush1.bf16.xpose.msra.mxu0 0
      %434 = vmatprep.subr.bf16.mxu0 0
      %435 = vmatpush1.bf16.xpose.msra.mxu0 0
      %436 = vmatprep.subr.bf16.mxu0 0
      %437 = vmatpush1.bf16.xpose.msra.mxu0 0
      %438 = vmatprep.subr.bf16.mxu0 0
      %439 = vmatpush1.bf16.xpose.msra.mxu0 0
      %440 = vmatprep.subr.bf16.mxu0 0
      %441 = vmatpush1.bf16.xpose.msra.mxu0 0
      %442 = vmatprep.subr.bf16.mxu0 0
      %443 = vmatpush1.bf16.xpose.msra.mxu0 0
      %444 = vmatprep.subr.bf16.mxu0 0
      %445 = vmatpush1.bf16.xpose.msra.mxu0 0
      %446 = vmatprep.mubr.bf16.mxu0 0
      %447 = vmatmul.mubr.bf16.gmra.mrb[0].mxu0 %v409
      %v448 = vpop.f32.mrb[0].mxu0
      %v449 = vadd.f32 0.0, %v448
      %v450 = vpop.f32.mrb[0].mxu0
      %v451 = vpop.f32.mrb[0].mxu0
      %v452 = vpop.f32.mrb[0].mxu0
      %453 = vdwg.mxu0
      %455 = vrot.lane.b32.xlu0 %v405, 120
      %v456 = vpop.permute.xlu0 %455
      %458 = vrot.lane.b32.xlu0 %v406, 112
      %v459 = vpop.permute.xlu0 %458
      %v461 = vsel %vm407, %v456, 0
      %v464 = vsel %vm407, %v459, 0
      %466 = vmatprep.subr.bf16.mxu0 0
      %467 = vmatpush1.bf16.xpose.msra.mxu0 %v464
      %468 = vmatprep.subr.bf16.mxu0 0
      %469 = vmatpush1.bf16.xpose.msra.mxu0 0
      %470 = vmatprep.subr.bf16.mxu0 0
      %471 = vmatpush1.bf16.xpose.msra.mxu0 0
      %472 = vmatprep.subr.bf16.mxu0 0
      %473 = vmatpush1.bf16.xpose.msra.mxu0 0
      %474 = vmatprep.subr.bf16.mxu0 0
      %475 = vmatpush1.bf16.xpose.msra.mxu0 0
      %476 = vmatprep.subr.bf16.mxu0 0
      %477 = vmatpush1.bf16.xpose.msra.mxu0 0
      %478 = vmatprep.subr.bf16.mxu0 0
      %479 = vmatpush1.bf16.xpose.msra.mxu0 0
      %480 = vmatprep.subr.bf16.mxu0 0
      %481 = vmatpush1.bf16.xpose.msra.mxu0 0
      %482 = vmatprep.subr.bf16.mxu0 0
      %483 = vmatpush1.bf16.xpose.msra.mxu0 0
      %484 = vmatprep.subr.bf16.mxu0 0
      %485 = vmatpush1.bf16.xpose.msra.mxu0 0
      %486 = vmatprep.subr.bf16.mxu0 0
      %487 = vmatpush1.bf16.xpose.msra.mxu0 0
      %488 = vmatprep.subr.bf16.mxu0 0
      %489 = vmatpush1.bf16.xpose.msra.mxu0 0
      %490 = vmatprep.subr.bf16.mxu0 0
      %491 = vmatpush1.bf16.xpose.msra.mxu0 0
      %492 = vmatprep.subr.bf16.mxu0 0
      %493 = vmatpush1.bf16.xpose.msra.mxu0 0
      %494 = vmatprep.subr.bf16.mxu0 0
      %495 = vmatpush1.bf16.xpose.msra.mxu0 0
      %496 = vmatprep.subr.bf16.mxu0 0
      %497 = vmatpush1.bf16.xpose.msra.mxu0 0
      %498 = vmatprep.mubr.bf16.mxu0 0
      %499 = vmatmul.mubr.bf16.gmra.mrb[0].mxu0 %v461
      %v500 = vpop.f32.mrb[0].mxu0
      %v501 = vadd.f32 0.0, %v500
      %v502 = vpop.f32.mrb[0].mxu0
      %v503 = vpop.f32.mrb[0].mxu0
      %v504 = vpop.f32.mrb[0].mxu0
      %505 = vdwg.mxu0
      %506 = vrot.lane.b32.xlu0 %v405, 112
      %v507 = vpop.permute.xlu0 %506
      %508 = vrot.lane.b32.xlu0 %v406, 96
      %v509 = vpop.permute.xlu0 %508
      %v511 = vsel %vm407, %v507, 0
      %v514 = vsel %vm407, %v509, 0
      %516 = vmatprep.subr.bf16.mxu0 0
      %517 = vmatpush1.bf16.xpose.msra.mxu0 %v514
      %518 = vmatprep.subr.bf16.mxu0 0
      %519 = vmatpush1.bf16.xpose.msra.mxu0 0
      %520 = vmatprep.subr.bf16.mxu0 0
      %521 = vmatpush1.bf16.xpose.msra.mxu0 0
      %522 = vmatprep.subr.bf16.mxu0 0
      %523 = vmatpush1.bf16.xpose.msra.mxu0 0
      %524 = vmatprep.subr.bf16.mxu0 0
      %525 = vmatpush1.bf16.xpose.msra.mxu0 0
      %526 = vmatprep.subr.bf16.mxu0 0
      %527 = vmatpush1.bf16.xpose.msra.mxu0 0
      %528 = vmatprep.subr.bf16.mxu0 0
      %529 = vmatpush1.bf16.xpose.msra.mxu0 0
      %530 = vmatprep.subr.bf16.mxu0 0
      %531 = vmatpush1.bf16.xpose.msra.mxu0 0
      %532 = vmatprep.subr.bf16.mxu0 0
      %533 = vmatpush1.bf16.xpose.msra.mxu0 0
      %534 = vmatprep.subr.bf16.mxu0 0
      %535 = vmatpush1.bf16.xpose.msra.mxu0 0
      %536 = vmatprep.subr.bf16.mxu0 0
      %537 = vmatpush1.bf16.xpose.msra.mxu0 0
      %538 = vmatprep.subr.bf16.mxu0 0
      %539 = vmatpush1.bf16.xpose.msra.mxu0 0
      %540 = vmatprep.subr.bf16.mxu0 0
      %541 = vmatpush1.bf16.xpose.msra.mxu0 0
      %542 = vmatprep.subr.bf16.mxu0 0
      %543 = vmatpush1.bf16.xpose.msra.mxu0 0
      %544 = vmatprep.subr.bf16.mxu0 0
      %545 = vmatpush1.bf16.xpose.msra.mxu0 0
      %546 = vmatprep.subr.bf16.mxu0 0
      %547 = vmatpush1.bf16.xpose.msra.mxu0 0
      %548 = vmatprep.mubr.bf16.mxu0 0
      %549 = vmatmul.mubr.bf16.gmra.mrb[0].mxu0 %v511
      %v550 = vpop.f32.mrb[0].mxu0
      %v551 = vadd.f32 0.0, %v550
      %v552 = vpop.f32.mrb[0].mxu0
      %v553 = vpop.f32.mrb[0].mxu0
      %v554 = vpop.f32.mrb[0].mxu0
      %555 = vdwg.mxu0
      %556 = vrot.lane.b32.xlu0 %v405, 104
      %v557 = vpop.permute.xlu0 %556
      %558 = vrot.lane.b32.xlu0 %v406, 80
      %v559 = vpop.permute.xlu0 %558
      %v561 = vsel %vm407, %v557, 0
      %v564 = vsel %vm407, %v559, 0
      %566 = vmatprep.subr.bf16.mxu0 0
      %567 = vmatpush1.bf16.xpose.msra.mxu0 %v564
      %568 = vmatprep.subr.bf16.mxu0 0
      %569 = vmatpush1.bf16.xpose.msra.mxu0 0
      %570 = vmatprep.subr.bf16.mxu0 0
      %571 = vmatpush1.bf16.xpose.msra.mxu0 0
      %572 = vmatprep.subr.bf16.mxu0 0
      %573 = vmatpush1.bf16.xpose.msra.mxu0 0
      %574 = vmatprep.subr.bf16.mxu0 0
      %575 = vmatpush1.bf16.xpose.msra.mxu0 0
      %576 = vmatprep.subr.bf16.mxu0 0
      %577 = vmatpush1.bf16.xpose.msra.mxu0 0
      %578 = vmatprep.subr.bf16.mxu0 0
      %579 = vmatpush1.bf16.xpose.msra.mxu0 0
      %580 = vmatprep.subr.bf16.mxu0 0
      %581 = vmatpush1.bf16.xpose.msra.mxu0 0
      %582 = vmatprep.subr.bf16.mxu0 0
      %583 = vmatpush1.bf16.xpose.msra.mxu0 0
      %584 = vmatprep.subr.bf16.mxu0 0
      %585 = vmatpush1.bf16.xpose.msra.mxu0 0
      %586 = vmatprep.subr.bf16.mxu0 0
      %587 = vmatpush1.bf16.xpose.msra.mxu0 0
      %588 = vmatprep.subr.bf16.mxu0 0
      %589 = vmatpush1.bf16.xpose.msra.mxu0 0
      %590 = vmatprep.subr.bf16.mxu0 0
      %591 = vmatpush1.bf16.xpose.msra.mxu0 0
      %592 = vmatprep.subr.bf16.mxu0 0
      %593 = vmatpush1.bf16.xpose.msra.mxu0 0
      %594 = vmatprep.subr.bf16.mxu0 0
      %595 = vmatpush1.bf16.xpose.msra.mxu0 0
      %596 = vmatprep.subr.bf16.mxu0 0
      %597 = vmatpush1.bf16.xpose.msra.mxu0 0
      %598 = vmatprep.mubr.bf16.mxu0 0
      %599 = vmatmul.mubr.bf16.gmra.mrb[0].mxu0 %v561
      %v600 = vpop.f32.mrb[0].mxu0
      %v601 = vadd.f32 0.0, %v600
      %v602 = vpop.f32.mrb[0].mxu0
      %v603 = vpop.f32.mrb[0].mxu0
      %v604 = vpop.f32.mrb[0].mxu0
      %605 = vdwg.mxu0
      %v606 = vmax.f32 %v449, %v501
      %v607 = vmax.f32 %v606, %v551
      %v608 = vmax.f32 %v607, %v601
      %v609 = vsub.f32 %v449, %v608
      %v610 = vmul.f32 %v609, 1.442695
      %v611 = vpow.pop %v610
      %v612 = vsub.f32 %v501, %v608
      %v613 = vmul.f32 %v612, 1.442695
      %v614 = vpow.pop %v613
      %v615 = vsub.f32 %v551, %v608
      %v616 = vmul.f32 %v615, 1.442695
      %v617 = vpow.pop %v616
      %v618 = vsub.f32 %v601, %v608
      %v619 = vmul.f32 %v618, 1.442695
      %v620 = vpow.pop %v619
      %v621 = vadd.f32 %v611, %v614
      %v622 = vadd.f32 %v621, %v617
      %v623 = vadd.f32 %v622, %v620
      %v624 = vrcp.pop %v623
      %v625 = vmul.f32 %v611, %v624
      %v626 = vpack.c.bf16 %v625, %v625
      %627 = vrot.lane.b32.xlu0 %v406, 120
      %v628 = vpop.permute.xlu0 %627
      %v630 = vsel %vm407, %v626, 0
      %vm632 = vcmask 1043456
      %v634 = vsel %vm632, %v628, 0
      %636 = vmatprep.subr.bf16.mxu0 0
      %637 = vmatpush1.bf16.msra.mxu0 %v634
      %638 = vmatprep.subr.bf16.mxu0 0
      %639 = vmatpush1.bf16.msra.mxu0 0
      %640 = vmatprep.subr.bf16.mxu0 0
      %641 = vmatpush1.bf16.msra.mxu0 0
      %642 = vmatprep.subr.bf16.mxu0 0
      %643 = vmatpush1.bf16.msra.mxu0 0
      %644 = vmatprep.subr.bf16.mxu0 0
      %645 = vmatpush1.bf16.msra.mxu0 0
      %646 = vmatprep.subr.bf16.mxu0 0
      %647 = vmatpush1.bf16.msra.mxu0 0
      %648 = vmatprep.subr.bf16.mxu0 0
      %649 = vmatpush1.bf16.msra.mxu0 0
      %650 = vmatprep.subr.bf16.mxu0 0
      %651 = vmatpush1.bf16.msra.mxu0 0
      %652 = vmatprep.subr.bf16.mxu0 0
      %653 = vmatpush1.bf16.msra.mxu0 0
      %654 = vmatprep.subr.bf16.mxu0 0
      %655 = vmatpush1.bf16.msra.mxu0 0
      %656 = vmatprep.subr.bf16.mxu0 0
      %657 = vmatpush1.bf16.msra.mxu0 0
      %658 = vmatprep.subr.bf16.mxu0 0
      %659 = vmatpush1.bf16.msra.mxu0 0
      %660 = vmatprep.subr.bf16.mxu0 0
      %661 = vmatpush1.bf16.msra.mxu0 0
      %662 = vmatprep.subr.bf16.mxu0 0
      %663 = vmatpush1.bf16.msra.mxu0 0
      %664 = vmatprep.subr.bf16.mxu0 0
      %665 = vmatpush1.bf16.msra.mxu0 0
      %666 = vmatprep.subr.bf16.mxu0 0
      %667 = vmatpush1.bf16.msra.mxu0 0
      %668 = vmatprep.mubr.bf16.mxu0 0
      %669 = vmatmul.mubr.bf16.gmra.mrb[0].mxu0 %v630
      %v670 = vpop.f32.mrb[0].mxu0
      %v671 = vadd.f32 0.0, %v670
      %v672 = vpop.f32.mrb[0].mxu0
      %v673 = vpop.f32.mrb[0].mxu0
      %v674 = vpop.f32.mrb[0].mxu0
      %675 = vdwg.mxu0
      %v676 = vmul.f32 %v614, %v624
      %v677 = vpack.c.bf16 %v676, %v676
      %678 = vrot.lane.b32.xlu0 %v406, 104
      %v679 = vpop.permute.xlu0 %678
      %v681 = vsel %vm407, %v677, 0
      %v684 = vsel %vm632, %v679, 0
      %686 = vmatprep.subr.bf16.mxu0 0
      %687 = vmatpush1.bf16.msra.mxu0 %v684
      %688 = vmatprep.subr.bf16.mxu0 0
      %689 = vmatpush1.bf16.msra.mxu0 0
      %690 = vmatprep.subr.bf16.mxu0 0
      %691 = vmatpush1.bf16.msra.mxu0 0
      %692 = vmatprep.subr.bf16.mxu0 0
      %693 = vmatpush1.bf16.msra.mxu0 0
      %694 = vmatprep.subr.bf16.mxu0 0
      %695 = vmatpush1.bf16.msra.mxu0 0
      %696 = vmatprep.subr.bf16.mxu0 0
      %697 = vmatpush1.bf16.msra.mxu0 0
      %698 = vmatprep.subr.bf16.mxu0 0
      %699 = vmatpush1.bf16.msra.mxu0 0
      %700 = vmatprep.subr.bf16.mxu0 0
      %701 = vmatpush1.bf16.msra.mxu0 0
      %702 = vmatprep.subr.bf16.mxu0 0
      %703 = vmatpush1.bf16.msra.mxu0 0
      %704 = vmatprep.subr.bf16.mxu0 0
      %705 = vmatpush1.bf16.msra.mxu0 0
      %706 = vmatprep.subr.bf16.mxu0 0
      %707 = vmatpush1.bf16.msra.mxu0 0
      %708 = vmatprep.subr.bf16.mxu0 0
      %709 = vmatpush1.bf16.msra.mxu0 0
      %710 = vmatprep.subr.bf16.mxu0 0
      %711 = vmatpush1.bf16.msra.mxu0 0
      %712 = vmatprep.subr.bf16.mxu0 0
      %713 = vmatpush1.bf16.msra.mxu0 0
      %714 = vmatprep.subr.bf16.mxu0 0
      %715 = vmatpush1.bf16.msra.mxu0 0
      %716 = vmatprep.subr.bf16.mxu0 0
      %717 = vmatpush1.bf16.msra.mxu0 0
      %718 = vmatprep.mubr.bf16.mxu0 0
      %719 = vmatmul.mubr.bf16.gmra.mrb[0].mxu0 %v681
      %v720 = vpop.f32.mrb[0].mxu0
      %v721 = vadd.f32 0.0, %v720
      %v722 = vpop.f32.mrb[0].mxu0
      %v723 = vpop.f32.mrb[0].mxu0
      %v724 = vpop.f32.mrb[0].mxu0
      %725 = vdwg.mxu0
      %v726 = vmul.f32 %v617, %v624
      %v727 = vpack.c.bf16 %v726, %v726
      %728 = vrot.lane.b32.xlu0 %v406, 88
      %v729 = vpop.permute.xlu0 %728
      %v731 = vsel %vm407, %v727, 0
      %v734 = vsel %vm632, %v729, 0
      %736 = vmatprep.subr.bf16.mxu0 0
      %737 = vmatpush1.bf16.msra.mxu0 %v734
      %738 = vmatprep.subr.bf16.mxu0 0
      %739 = vmatpush1.bf16.msra.mxu0 0
      %740 = vmatprep.subr.bf16.mxu0 0
      %741 = vmatpush1.bf16.msra.mxu0 0
      %742 = vmatprep.subr.bf16.mxu0 0
      %743 = vmatpush1.bf16.msra.mxu0 0
      %744 = vmatprep.subr.bf16.mxu0 0
      %745 = vmatpush1.bf16.msra.mxu0 0
      %746 = vmatprep.subr.bf16.mxu0 0
      %747 = vmatpush1.bf16.msra.mxu0 0
      %748 = vmatprep.subr.bf16.mxu0 0
      %749 = vmatpush1.bf16.msra.mxu0 0
      %750 = vmatprep.subr.bf16.mxu0 0
      %751 = vmatpush1.bf16.msra.mxu0 0
      %752 = vmatprep.subr.bf16.mxu0 0
      %753 = vmatpush1.bf16.msra.mxu0 0
      %754 = vmatprep.subr.bf16.mxu0 0
      %755 = vmatpush1.bf16.msra.mxu0 0
      %756 = vmatprep.subr.bf16.mxu0 0
      %757 = vmatpush1.bf16.msra.mxu0 0
      %758 = vmatprep.subr.bf16.mxu0 0
      %759 = vmatpush1.bf16.msra.mxu0 0
      %760 = vmatprep.subr.bf16.mxu0 0
      %761 = vmatpush1.bf16.msra.mxu0 0
      %762 = vmatprep.subr.bf16.mxu0 0
      %763 = vmatpush1.bf16.msra.mxu0 0
      %764 = vmatprep.subr.bf16.mxu0 0
      %765 = vmatpush1.bf16.msra.mxu0 0
      %766 = vmatprep.subr.bf16.mxu0 0
      %767 = vmatpush1.bf16.msra.mxu0 0
      %768 = vmatprep.mubr.bf16.mxu0 0
      %769 = vmatmul.mubr.bf16.gmra.mrb[0].mxu0 %v731
      %v770 = vpop.f32.mrb[0].mxu0
      %v771 = vadd.f32 0.0, %v770
      %v772 = vpop.f32.mrb[0].mxu0
      %v773 = vpop.f32.mrb[0].mxu0
      %v774 = vpop.f32.mrb[0].mxu0
      %775 = vdwg.mxu0
      %v776 = vmul.f32 %v620, %v624
      %v777 = vpack.c.bf16 %v776, %v776
      %778 = vrot.lane.b32.xlu0 %v406, 72
      %v779 = vpop.permute.xlu0 %778
      %v781 = vsel %vm407, %v777, 0
      %v784 = vsel %vm632, %v779, 0
      %786 = vmatprep.subr.bf16.mxu0 0
      %787 = vmatpush1.bf16.msra.mxu0 %v784
      %788 = vmatprep.subr.bf16.mxu0 0
      %789 = vmatpush1.bf16.msra.mxu0 0
      %790 = vmatprep.subr.bf16.mxu0 0
      %791 = vmatpush1.bf16.msra.mxu0 0
      %792 = vmatprep.subr.bf16.mxu0 0
      %793 = vmatpush1.bf16.msra.mxu0 0
      %794 = vmatprep.subr.bf16.mxu0 0
      %795 = vmatpush1.bf16.msra.mxu0 0
      %796 = vmatprep.subr.bf16.mxu0 0
      %797 = vmatpush1.bf16.msra.mxu0 0
      %798 = vmatprep.subr.bf16.mxu0 0
      %799 = vmatpush1.bf16.msra.mxu0 0
      %800 = vmatprep.subr.bf16.mxu0 0
      %801 = vmatpush1.bf16.msra.mxu0 0
      %802 = vmatprep.subr.bf16.mxu0 0
      %803 = vmatpush1.bf16.msra.mxu0 0
      %804 = vmatprep.subr.bf16.mxu0 0
      %805 = vmatpush1.bf16.msra.mxu0 0
      %806 = vmatprep.subr.bf16.mxu0 0
      %807 = vmatpush1.bf16.msra.mxu0 0
      %808 = vmatprep.subr.bf16.mxu0 0
      %809 = vmatpush1.bf16.msra.mxu0 0
      %810 = vmatprep.subr.bf16.mxu0 0
      %811 = vmatpush1.bf16.msra.mxu0 0
      %812 = vmatprep.subr.bf16.mxu0 0
      %813 = vmatpush1.bf16.msra.mxu0 0
      %814 = vmatprep.subr.bf16.mxu0 0
      %815 = vmatpush1.bf16.msra.mxu0 0
      %816 = vmatprep.subr.bf16.mxu0 0
      %817 = vmatpush1.bf16.msra.mxu0 0
      %818 = vmatprep.mubr.bf16.mxu0 0
      %819 = vmatmul.mubr.bf16.gmra.mrb[0].mxu0 %v781
      %v820 = vpop.f32.mrb[0].mxu0
      %v821 = vadd.f32 0.0, %v820
      %v822 = vpop.f32.mrb[0].mxu0
      %v823 = vpop.f32.mrb[0].mxu0
      %v824 = vpop.f32.mrb[0].mxu0
      %825 = vdwg.mxu0
      %v826 = vpack.c.bf16 %v671, %v671
      %v827 = vpack.c.bf16 %v721, %v721
      %v828 = vpack.c.bf16 %v771, %v771
      %v829 = vpack.c.bf16 %v821, %v821
      %vm830 = vcmask 60416
      %831 = vst.msk [vmem:[%s265] sm:$0xf] %vm830, %v826
      %832 = vst.msk [vmem:[%s265 + $0x4] sm:$0xf] %vm830, %v827
      %833 = vst.msk [vmem:[%s265 + $0x8] sm:$0xf] %vm830, %v828
      %834 = vst.msk [vmem:[%s265 + $0xc] sm:$0xf] %vm830, %v829
      %p835 = scmp.lt.s32.totalorder %s17, 1
      %s836 = scalar_select %p835, %s17, 1
      %s837 = smul.addr %s836, 4
      %s838 = smul.addr %s837, 4
      %s839 = scalar_lea.vmem %s6, %s838
      // Predicated region
      $region45: #{decoder_forward.12} parent=43 // pred_check
        %p840 = pneg %p171
      $region46: #{decoder_forward.12} parent=43 // pred_check_branch
        %842 = sbr.rel (%p840) target = $region48
      $region47: #{decoder_forward.12} parent=43 // pred_region
        _
      $region48: #{decoder_forward.12} parent=43 // pred_fallthru
        _
    $region44: #{decoder_forward.12} parent=5 // pred_fallthru
      _
    %p843 = scmp.le.s32.totalorder 2, %s12
    // Predicated region
    $region49: #{decoder_forward.12} parent=5 // pred_check
      %p844 = pneg %p843
    $region50: #{decoder_forward.12} parent=5 // pred_check_branch
      %846 = sbr.rel (%p844) target = $region52
    $region51: #{decoder_forward.12} parent=5 // pred_region
      %s847 = ssub.s32 %s12, 2
      // Predicated region
      $region53: #{decoder_forward.12} parent=51 // pred_check
        %p848 = pneg %p177
      $region54: #{decoder_forward.12} parent=51 // pred_check_branch
        %850 = sbr.rel (%p848) target = $region56
      $region55: #{decoder_forward.12} parent=51 // pred_region
        %p851 = scmp.lt.s32.totalorder %s18, 1
        %s852 = scalar_select %p851, %s18, 1
        %s853 = smul.addr %s852, 4
        %s854 = smul.addr %s853, 4
        %s855 = scalar_lea.vmem %s6, %s854
      $region56: #{decoder_forward.12} parent=51 // pred_fallthru
        _
    $region52: #{decoder_forward.12} parent=5 // pred_fallthru
      _
  $region6: #{decoder_forward.12} parent=0 // loop_footer
    %s16 = sadd.s32 1, %s12
  $region7: #{decoder_forward.12} parent=0 // loop_footer_branch
    %11 = sbr.rel target = $region3
  $region8: #{decoder_forward.12} parent=0 // loop_exit
    _

// kernel: decoder_forward.19
$region0: #{decoder_forward.19}
  #allocation0 [shape = 'u32[]', space=smem, size = 0x4, offset = 0x4, fixed_abs, tag = 'smem constant byte address 0x4 - core index']
  #allocation1 [shape = 'u32[144,128]{1,0:T(1,128)}', space=vmem, size = 0x12000, scoped, tag = 'internal scratch']
  #allocation2 [shape = 'f32[8,32]{1,0:T(8,128)}', space=vmem, size = 0x1000, scoped, tag = 'scratch operand']
  %s0 = inlined_call_operand.vmem [shape: f32[16,32], index: 0, kind: input, shape index: {}]
  %s1 = inlined_call_operand.vmem [shape: bf16[32,64], index: 1, kind: input, shape index: {}]
  %s2 = inlined_call_operand.vmem [shape: f32[1,64], index: 2, kind: input, shape index: {}]
  %s3 = inlined_call_operand.vmem [shape: bf16[64,32], index: 3, kind: input, shape index: {}]
  %s4 = inlined_call_operand.vmem [shape: f32[1,32], index: 4, kind: input, shape index: {}]
  %s5 = inlined_call_operand.vmem [shape: f32[1,32], index: 5, kind: input, shape index: {}]
  %s6 = inlined_call_operand.vmem [shape: f32[1,32], index: 6, kind: input, shape index: {}]
  %s7 = inlined_call_operand.hbm [shape: f32[16,32], index: 7, kind: output, shape index: {}]
  %s8 = sld [smem:[#allocation0]]
  $region69: #{decoder_forward.19} parent=0
    _
  %s10 = ssub.s32 1, %s8
  %s11 = scalar_select 0, %s10, %s8
  $region1: #{decoder_forward.19} parent=0
    #allocation3 [shape = 'u8[8192]{0}', space=vmem, size = 0x2000, scoped, tag = 'output window, operand 0']
    #allocation4 [shape = 's32[2]{0}', space=sflag, size = 0x8, scoped, tag = 'scoped memory for decoder_forward.19']
    %12 = vsyncpa [#allocation4], 0
    %s13 = scalar_lea.sflag [#allocation4], 1
    %14 = vsyncpa %s13, 0
    loop: start=0, step=1, limit=4
    $region2: #{decoder_forward.19} parent=1 // loop_pre_header
      _
    $region3: #{decoder_forward.19} parent=1 // loop_header
      %s16 = sphi 0, %s20
      %p17 = scmp.ge.s32.totalorder %s16, 4
      %s23 = sphi 0, %s35
      %s24 = sphi 0, %s31
      %s25 = sphi 0, %s23
      %s26 = sphi 0, %s24
      %s27 = sphi 0, %s25
      %s28 = sphi 0, %s26
      %s38 = sphi 0, %s40
      %s41 = sphi 0, %s38
      %s42 = sphi 0, %s41
      %s58 = sphi 0, %s42
      %s64 = sphi 0, %s66
      %s67 = sphi 0, %s64
      %s68 = sphi 0, %s67
      %s84 = sphi 0, %s68
      %s90 = sphi 0, %s92
      %s93 = sphi 0, %s90
      %s94 = sphi 0, %s93
      %s110 = sphi 0, %s94
      %s116 = sphi 0, %s118
      %s119 = sphi 0, %s116
      %s120 = sphi 0, %s119
      %s136 = sphi 0, %s120
      %s140 = sphi 0, %s140
      %s142 = sphi 0, %s140
      %s143 = sphi 0, %s142
      %s157 = sphi 0, %s143
      %s161 = sphi 0, %s161
      %s163 = sphi 0, %s161
      %s164 = sphi 0, %s163
      %s178 = sphi 0, %s164
      %s182 = sphi 0, %s182
      %s184 = sphi 0, %s182
      %s185 = sphi 0, %s184
      %s199 = sphi 0, %s185
      %s205 = sphi 0, %s207
      %s208 = sphi 0, %s205
      %s209 = sphi 0, %s208
      %s225 = sphi 0, %s209
    $region4: #{decoder_forward.19} parent=1 // loop_header_branch
      %19 = sbr.rel (%p17) target = $region8
    $region5: #{decoder_forward.19} parent=1 // loop_body
      %s21 = ssub.s32 %s16, 1
      %s22 = ssub.s32 %s16, 2
      %s29 = sadd.s32 1, %s24
      %p30 = scmp.ge.s32.totalorder %s29, 1
      %s31 = scalar_select %p30, 0, %s29
      %s32 = sadd.s32 1, %s23
      %s33 = scalar_select %p30, %s32, %s23
      %p34 = scmp.ge.s32.totalorder %s33, 2
      %s35 = scalar_select %p34, 0, %s33
      %s36 = ssub.s32 %s23, %s35
      %p37 = scmp.eq.s32.totalorder %s36, 0
      %s39 = sadd.s32 %s38, 1
      %s40 = scalar_select %p37, %s38, %s39
      %p43 = pneg %p37
      %p44 = scmp.eq.s32.totalorder %s16, 1
      %p45 = por %p43, %p44
      %p46 = scmp.ne.s32.totalorder %s38, %s41
      %p47 = scmp.eq.s32.totalorder %s16, 0
      %p48 = por %p46, %p47
      %p49 = scmp.ne.s32.totalorder %s38, %s41
      %p50 = scmp.eq.s32.totalorder %s21, 1
      %p51 = por %p49, %p50
      %p52 = scmp.ne.s32.totalorder %s41, %s42
      %p53 = scmp.eq.s32.totalorder %s21, 0
      %p54 = por %p52, %p53
      %p55 = scmp.ne.s32.totalorder %s41, %s42
      %p56 = scmp.eq.s32.totalorder %s22, 1
      %p57 = por %p55, %p56
      %p59 = scmp.ne.s32.totalorder %s42, %s58
      %p60 = scmp.eq.s32.totalorder %s22, 0
      %p61 = por %p59, %p60
      %s62 = ssub.s32 %s24, %s31
      %p63 = scmp.eq.s32.totalorder %s62, 0
      %s65 = sadd.s32 %s64, 1
      %s66 = scalar_select %p63, %s64, %s65
      %p69 = pneg %p63
      %p70 = scmp.eq.s32.totalorder %s16, 1
      %p71 = por %p69, %p70
      %p72 = scmp.ne.s32.totalorder %s64, %s67
      %p73 = scmp.eq.s32.totalorder %s16, 0
      %p74 = por %p72, %p73
      %p75 = scmp.ne.s32.totalorder %s64, %s67
      %p76 = scmp.eq.s32.totalorder %s21, 1
      %p77 = por %p75, %p76
      %p78 = scmp.ne.s32.totalorder %s67, %s68
      %p79 = scmp.eq.s32.totalorder %s21, 0
      %p80 = por %p78, %p79
      %p81 = scmp.ne.s32.totalorder %s67, %s68
      %p82 = scmp.eq.s32.totalorder %s22, 1
      %p83 = por %p81, %p82
      %p85 = scmp.ne.s32.totalorder %s68, %s84
      %p86 = scmp.eq.s32.totalorder %s22, 0
      %p87 = por %p85, %p86
      %s88 = ssub.s32 %s24, %s31
      %p89 = scmp.eq.s32.totalorder %s88, 0
      %s91 = sadd.s32 %s90, 1
      %s92 = scalar_select %p89, %s90, %s91
      %p95 = pneg %p89
      %p96 = scmp.eq.s32.totalorder %s16, 1
      %p97 = por %p95, %p96
      %p98 = scmp.ne.s32.totalorder %s90, %s93
      %p99 = scmp.eq.s32.totalorder %s16, 0
      %p100 = por %p98, %p99
      %p101 = scmp.ne.s32.totalorder %s90, %s93
      %p102 = scmp.eq.s32.totalorder %s21, 1
      %p103 = por %p101, %p102
      %p104 = scmp.ne.s32.totalorder %s93, %s94
      %p105 = scmp.eq.s32.totalorder %s21, 0
      %p106 = por %p104, %p105
      %p107 = scmp.ne.s32.totalorder %s93, %s94
      %p108 = scmp.eq.s32.totalorder %s22, 1
      %p109 = por %p107, %p108
      %p111 = scmp.ne.s32.totalorder %s94, %s110
      %p112 = scmp.eq.s32.totalorder %s22, 0
      %p113 = por %p111, %p112
      %s114 = ssub.s32 %s24, %s31
      %p115 = scmp.eq.s32.totalorder %s114, 0
      %s117 = sadd.s32 %s116, 1
      %s118 = scalar_select %p115, %s116, %s117
      %p121 = pneg %p115
      %p122 = scmp.eq.s32.totalorder %s16, 1
      %p123 = por %p121, %p122
      %p124 = scmp.ne.s32.totalorder %s116, %s119
      %p125 = scmp.eq.s32.totalorder %s16, 0
      %p126 = por %p124, %p125
      %p127 = scmp.ne.s32.totalorder %s116, %s119
      %p128 = scmp.eq.s32.totalorder %s21, 1
      %p129 = por %p127, %p128
      %p130 = scmp.ne.s32.totalorder %s119, %s120
      %p131 = scmp.eq.s32.totalorder %s21, 0
      %p132 = por %p130, %p131
      %p133 = scmp.ne.s32.totalorder %s119, %s120
      %p134 = scmp.eq.s32.totalorder %s22, 1
      %p135 = por %p133, %p134
      %p137 = scmp.ne.s32.totalorder %s120, %s136
      %p138 = scmp.eq.s32.totalorder %s22, 0
      %p139 = por %p137, %p138
      %s141 = sadd.s32 %s140, 1
      %p144 = scmp.eq.s32.totalorder %s16, 1
      %p145 = scmp.ne.s32.totalorder %s140, %s142
      %p146 = scmp.eq.s32.totalorder %s16, 0
      %p147 = por %p145, %p146
      %p148 = scmp.ne.s32.totalorder %s140, %s142
      %p149 = scmp.eq.s32.totalorder %s21, 1
      %p150 = por %p148, %p149
      %p151 = scmp.ne.s32.totalorder %s142, %s143
      %p152 = scmp.eq.s32.totalorder %s21, 0
      %p153 = por %p151, %p152
      %p154 = scmp.ne.s32.totalorder %s142, %s143
      %p155 = scmp.eq.s32.totalorder %s22, 1
      %p156 = por %p154, %p155
      %p158 = scmp.ne.s32.totalorder %s143, %s157
      %p159 = scmp.eq.s32.totalorder %s22, 0
      %p160 = por %p158, %p159
      %s162 = sadd.s32 %s161, 1
      %p165 = scmp.eq.s32.totalorder %s16, 1
      %p166 = scmp.ne.s32.totalorder %s161, %s163
      %p167 = scmp.eq.s32.totalorder %s16, 0
      %p168 = por %p166, %p167
      %p169 = scmp.ne.s32.totalorder %s161, %s163
      %p170 = scmp.eq.s32.totalorder %s21, 1
      %p171 = por %p169, %p170
      %p172 = scmp.ne.s32.totalorder %s163, %s164
      %p173 = scmp.eq.s32.totalorder %s21, 0
      %p174 = por %p172, %p173
      %p175 = scmp.ne.s32.totalorder %s163, %s164
      %p176 = scmp.eq.s32.totalorder %s22, 1
      %p177 = por %p175, %p176
      %p179 = scmp.ne.s32.totalorder %s164, %s178
      %p180 = scmp.eq.s32.totalorder %s22, 0
      %p181 = por %p179, %p180
      %s183 = sadd.s32 %s182, 1
      %p186 = scmp.eq.s32.totalorder %s16, 1
      %p187 = scmp.ne.s32.totalorder %s182, %s184
      %p188 = scmp.eq.s32.totalorder %s16, 0
      %p189 = por %p187, %p188
      %p190 = scmp.ne.s32.totalorder %s182, %s184
      %p191 = scmp.eq.s32.totalorder %s21, 1
      %p192 = por %p190, %p191
      %p193 = scmp.ne.s32.totalorder %s184, %s185
      %p194 = scmp.eq.s32.totalorder %s21, 0
      %p195 = por %p193, %p194
      %p196 = scmp.ne.s32.totalorder %s184, %s185
      %p197 = scmp.eq.s32.totalorder %s22, 1
      %p198 = por %p196, %p197
      %p200 = scmp.ne.s32.totalorder %s185, %s199
      %p201 = scmp.eq.s32.totalorder %s22, 0
      %p202 = por %p200, %p201
      %s203 = ssub.s32 %s23, %s35
      %p204 = scmp.eq.s32.totalorder %s203, 0
      %s206 = sadd.s32 %s205, 1
      %s207 = scalar_select %p204, %s205, %s206
      %p210 = pneg %p204
      %p211 = scmp.eq.s32.totalorder %s16, 1
      %p212 = por %p210, %p211
      %p213 = scmp.ne.s32.totalorder %s205, %s208
      %p214 = scmp.eq.s32.totalorder %s16, 0
      %p215 = por %p213, %p214
      %p216 = scmp.ne.s32.totalorder %s205, %s208
      %p217 = scmp.eq.s32.totalorder %s21, 1
      %p218 = por %p216, %p217
      %p219 = scmp.ne.s32.totalorder %s208, %s209
      %p220 = scmp.eq.s32.totalorder %s21, 0
      %p221 = por %p219, %p220
      %p222 = scmp.ne.s32.totalorder %s208, %s209
      %p223 = scmp.eq.s32.totalorder %s22, 1
      %p224 = por %p222, %p223
      %p226 = scmp.ne.s32.totalorder %s209, %s225
      %p227 = scmp.eq.s32.totalorder %s22, 0
      %p228 = por %p226, %p227
      %p229 = scmp.le.s32.totalorder 1, %s16
      %p230 = scmp.lt.s32.totalorder %s16, 3
      %p231 = pnand %p229, %p230
      %p232 = pneg %p231
      // Predicated region
      $region9: #{decoder_forward.19} parent=5 // pred_check
        _
      $region10: #{decoder_forward.19} parent=5 // pred_check_branch
        %234 = sbr.rel (%p231) target = $region12
      $region11: #{decoder_forward.19} parent=5 // pred_region
        %s235 = ssub.s32 %s16, 1
        // Predicated region
        $region13: #{decoder_forward.19} parent=11 // pred_check
          %p236 = pneg %p80
        $region14: #{decoder_forward.19} parent=11 // pred_check_branch
          %238 = sbr.rel (%p236) target = $region16
        $region15: #{decoder_forward.19} parent=11 // pred_region
          %p239 = scmp.lt.s32.totalorder %s26, 0
          %s240 = scalar_select %p239, %s26, 0
          %s241 = smul.addr %s240, 4
          %s242 = scalar_lea.vmem %s1, %s241
        $region16: #{decoder_forward.19} parent=11 // pred_fallthru
          _
        // Predicated region
        $region17: #{decoder_forward.19} parent=11 // pred_check
          %p243 = pneg %p106
        $region18: #{decoder_forward.19} parent=11 // pred_check_branch
          %245 = sbr.rel (%p243) target = $region20
        $region19: #{decoder_forward.19} parent=11 // pred_region
          %p246 = scmp.lt.s32.totalorder %s26, 0
          %s247 = scalar_select %p246, %s26, 0
          %s248 = scalar_lea.vmem %s2, %s247
        $region20: #{decoder_forward.19} parent=11 // pred_fallthru
          _
        // Predicated region
        $region21: #{decoder_forward.19} parent=11 // pred_check
          %p249 = pneg %p132
        $region22: #{decoder_forward.19} parent=11 // pred_check_branch
          %251 = sbr.rel (%p249) target = $region24
        $region23: #{decoder_forward.19} parent=11 // pred_region
          %s252 = smul.u32 8, %s26
          %p253 = scmp.lt.s32.totalorder %s252, 7
          %s254 = scalar_select %p253, %s252, 7
          %s255 = smul.addr %s254, 4
          %s256 = scalar_lea.vmem %s3, %s255
          %s257 = smul.u32 8, %s26
        $region24: #{decoder_forward.19} parent=11 // pred_fallthru
          _
        // Predicated region
        $region25: #{decoder_forward.19} parent=11 // pred_check
          %p258 = pneg %p153
        $region26: #{decoder_forward.19} parent=11 // pred_check_branch
          %260 = sbr.rel (%p258) target = $region28
        $region27: #{decoder_forward.19} parent=11 // pred_region
          _
        $region28: #{decoder_forward.19} parent=11 // pred_fallthru
          _
        // Predicated region
        $region29: #{decoder_forward.19} parent=11 // pred_check
          %p261 = pneg %p174
        $region30: #{decoder_forward.19} parent=11 // pred_check_branch
          %263 = sbr.rel (%p261) target = $region32
        $region31: #{decoder_forward.19} parent=11 // pred_region
          _
        $region32: #{decoder_forward.19} parent=11 // pred_fallthru
          _
        // Predicated region
        $region33: #{decoder_forward.19} parent=11 // pred_check
          %p264 = pneg %p195
        $region34: #{decoder_forward.19} parent=11 // pred_check_branch
          %266 = sbr.rel (%p264) target = $region36
        $region35: #{decoder_forward.19} parent=11 // pred_region
          _
        $region36: #{decoder_forward.19} parent=11 // pred_fallthru
          _
      $region12: #{decoder_forward.19} parent=5 // pred_fallthru
        _
      %p267 = scmp.lt.s32.totalorder %s16, 2
      // Predicated region
      $region37: #{decoder_forward.19} parent=5 // pred_check
        %p268 = pneg %p267
      $region38: #{decoder_forward.19} parent=5 // pred_check_branch
        %270 = sbr.rel (%p268) target = $region40
      $region39: #{decoder_forward.19} parent=5 // pred_region
        // Predicated region
        $region41: #{decoder_forward.19} parent=39 // pred_check
          %p271 = pneg %p48
        $region42: #{decoder_forward.19} parent=39 // pred_check_branch
          %273 = sbr.rel (%p271) target = $region44
        $region43: #{decoder_forward.19} parent=39 // pred_region
          %p274 = scmp.lt.s32.totalorder %s23, 1
          %s275 = scalar_select %p274, %s23, 1
          %s276 = smul.addr %s275, 8
          %s277 = scalar_lea.vmem %s0, %s276
        $region44: #{decoder_forward.19} parent=39 // pred_fallthru
          _
      $region40: #{decoder_forward.19} parent=5 // pred_fallthru
        _
      %p278 = scmp.le.s32.totalorder 1, %s16
      %p279 = scmp.lt.s32.totalorder %s16, 3
      %p280 = pnand %p278, %p279
      %p281 = pneg %p280
      // Predicated region
      $region45: #{decoder_forward.19} parent=5 // pred_check
        _
      $region46: #{decoder_forward.19} parent=5 // pred_check_branch
        %283 = sbr.rel (%p280) target = $region48
      $region47: #{decoder_forward.19} parent=5 // pred_region
        %s284 = ssub.s32 %s16, 1
        %p285 = scmp.lt.s32.totalorder %s25, 1
        %s286 = scalar_select %p285, %s25, 1
        %s287 = smul.addr %s286, 8
        %s288 = scalar_lea.vmem %s0, %s287
        %p289 = pneg %p54
        %p290 = pneg %p51
        %p291 = scmp.lt.s32.totalorder %s26, 0
        %s292 = scalar_select %p291, %s26, 0
        %s293 = smul.addr %s292, 4
        %s294 = scalar_lea.vmem %s1, %s293
        %p295 = pneg %p80
        %p296 = pneg %p77
        %p297 = scmp.lt.s32.totalorder %s26, 0
        %s298 = scalar_select %p297, %s26, 0
        %s299 = scalar_lea.vmem %s2, %s298
        %p300 = pneg %p106
        %p301 = pneg %p103
        %s302 = smul.u32 8, %s26
        %p303 = scmp.lt.s32.totalorder %s302, 7
        %s304 = scalar_select %p303, %s302, 7
        %s305 = smul.addr %s304, 4
        %s306 = scalar_lea.vmem %s3, %s305
        %p307 = pneg %p132
        %p308 = pneg %p129
        %p309 = pneg %p153
        %p310 = pneg %p150
        %p311 = pneg %p174
        %p312 = pneg %p171
        %p313 = pneg %p195
        %p314 = pneg %p192
        %p315 = pneg %p221
        %p316 = pneg %p218
        %s317 = sand.u32 %s208, 1
        %s318 = scalar_lea.sflag [#allocation4], %s317
        %s319 = sand.u32 %s208, 1
        %s320 = smul.addr %s319, 8
        %s321 = scalar_lea.vmem [#allocation3], %s320
        %p322 = scmp.lt.s32.totalorder %s25, 1
        %s323 = scalar_select %p322, %s25, 1
        %s324 = smul.addr %s323, 8
        %s325 = scalar_lea.vmem %s0, %s324
        %p326 = scmp.lt.s32.totalorder %s26, 0
        %s327 = scalar_select %p326, %s26, 0
        %s328 = smul.addr %s327, 4
        %s329 = scalar_lea.vmem %s1, %s328
        %p330 = scmp.lt.s32.totalorder %s26, 0
        %s331 = scalar_select %p330, %s26, 0
        %s332 = scalar_lea.vmem %s2, %s331
        %s333 = smul.u32 8, %s26
        %p334 = scmp.lt.s32.totalorder %s333, 7
        %s335 = scalar_select %p334, %s333, 7
        %s336 = smul.addr %s335, 4
        %s337 = scalar_lea.vmem %s3, %s336
        %s338 = smul.u32 8, %s26
        %p340 = scmp.eq.s32.totalorder %s26, 0
        // Predicated region
        $region49: #{decoder_forward.19} parent=47 // pred_check
          %p341 = pneg %p340
        $region50: #{decoder_forward.19} parent=47 // pred_check_branch
          %343 = sbr.rel (%p341) target = $region52
        $region51: #{decoder_forward.19} parent=47 // pred_region
          %vm344 = vcmask 261120
          %345 = vst.msk [vmem:[#allocation2] sm:$0xff] %vm344, 0.0
        $region52: #{decoder_forward.19} parent=47 // pred_fallthru
          _
        %v346 = vld [vmem:[%s325] sm:$0xff]
        %v347 = vpack.c.bf16 %v346, %v346
        %v348 = vld [vmem:[%s329] sm:$0xf]
        %v349 = vld [vmem:[%s329 + $0x4] sm:$0xf]
        %v350 = vld [vmem:[%s329 + $0x8] sm:$0xf]
        %v351 = vld [vmem:[%s329 + $0xc] sm:$0xf]
        %v352 = vld [vmem:[%s332] sm:$0x1]
        %v354 = vlaneseq
        %v355 = vshrl.u32 %v354, 7
        %v356 = vsub.s32 0, %v355
        %v357 = vrot.slane %v352, %v356
        %v363 = vunpack.c.l.b16 %v348
        %v364 = vunpack.c.l.b16 %v349
        %v365 = vunpack.c.l.b16 %v350
        %v366 = vunpack.c.l.b16 %v351
        %v367 = vpack.c.b16 %v364, %v363
        %v368 = vpack.c.b16 %v366, %v365
        %vm371 = vcmask 261120
        %v373 = vsel %vm371, %v347, 0
        %375 = vmatprep.subr.bf16.mxu0 0
        %376 = vmatpush1.bf16.msra.mxu0 %v367
        %377 = vmatprep.subr.bf16.mxu0 0
        %378 = vmatpush1.bf16.msra.mxu0 %v368
        %379 = vmatprep.subr.bf16.mxu0 0
        %380 = vmatpush1.bf16.msra.mxu0 0
        %381 = vmatprep.subr.bf16.mxu0 0
        %382 = vmatpush1.bf16.msra.mxu0 0
        %383 = vmatprep.subr.bf16.mxu0 0
        %384 = vmatpush1.bf16.msra.mxu0 0
        %385 = vmatprep.subr.bf16.mxu0 0
        %386 = vmatpush1.bf16.msra.mxu0 0
        %387 = vmatprep.subr.bf16.mxu0 0
        %388 = vmatpush1.bf16.msra.mxu0 0
        %389 = vmatprep.subr.bf16.mxu0 0
        %390 = vmatpush1.bf16.msra.mxu0 0
        %391 = vmatprep.subr.bf16.mxu0 0
        %392 = vmatpush1.bf16.msra.mxu0 0
        %393 = vmatprep.subr.bf16.mxu0 0
        %394 = vmatpush1.bf16.msra.mxu0 0
        %395 = vmatprep.subr.bf16.mxu0 0
        %396 = vmatpush1.bf16.msra.mxu0 0
        %397 = vmatprep.subr.bf16.mxu0 0
        %398 = vmatpush1.bf16.msra.mxu0 0
        %399 = vmatprep.subr.bf16.mxu0 0
        %400 = vmatpush1.bf16.msra.mxu0 0
        %401 = vmatprep.subr.bf16.mxu0 0
        %402 = vmatpush1.bf16.msra.mxu0 0
        %403 = vmatprep.subr.bf16.mxu0 0
        %404 = vmatpush1.bf16.msra.mxu0 0
        %405 = vmatprep.subr.bf16.mxu0 0
        %406 = vmatpush1.bf16.msra.mxu0 0
        %407 = vmatprep.mubr.bf16.mxu0 0
        %408 = vmatmul.mubr.bf16.gmra.mrb[0].mxu0 %v373
        %v409 = vpop.f32.mrb[0].mxu0
        %v410 = vadd.f32 %v357, %v409
        %v411 = vpop.f32.mrb[0].mxu0
        %v412 = vpop.f32.mrb[0].mxu0
        %v413 = vpop.f32.mrb[0].mxu0
        %414 = vdwg.mxu0
        %v415 = vmax.f32 %v410, 0.0
        %v416 = vld [vmem:[#allocation2] sm:$0xff]
        %v417 = vpack.c.bf16 %v415, %v415
        %v418 = vld [vmem:[%s337] sm:$0xf]
        %v419 = vld [vmem:[%s337 + $0x4] sm:$0xf]
        %v420 = vld [vmem:[%s337 + $0x8] sm:$0xf]
        %v421 = vld [vmem:[%s337 + $0xc] sm:$0xf]
        %v422 = vld [vmem:[%s337 + $0x10] sm:$0xf]
        %v423 = vld [vmem:[%s337 + $0x14] sm:$0xf]
        %v424 = vld [vmem:[%s337 + $0x18] sm:$0xf]
        %v425 = vld [vmem:[%s337 + $0x1c] sm:$0xf]
        %v434 = vunpack.c.l.b16 %v418
        %v435 = vunpack.c.l.b16 %v419
        %v436 = vunpack.c.l.b16 %v420
        %v437 = vunpack.c.l.b16 %v421
        %v438 = vunpack.c.l.b16 %v422
        %v439 = vunpack.c.l.b16 %v423
        %v440 = vunpack.c.l.b16 %v424
        %v441 = vunpack.c.l.b16 %v425
        %v442 = vpack.c.b16 %v435, %v434
        %v443 = vpack.c.b16 %v437, %v436
        %v444 = vpack.c.b16 %v439, %v438
        %v445 = vpack.c.b16 %v441, %v440
        %vm450 = vcmask 523264
        %v452 = vsel %vm450, %v417, 0
        %454 = vmatprep.subr.bf16.mxu0 0
        %455 = vmatpush1.bf16.msra.mxu0 %v442
        %456 = vmatprep.subr.bf16.mxu0 0
        %457 = vmatpush1.bf16.msra.mxu0 %v443
        %458 = vmatprep.subr.bf16.mxu0 0
        %459 = vmatpush1.bf16.msra.mxu0 %v444
        %460 = vmatprep.subr.bf16.mxu0 0
        %461 = vmatpush1.bf16.msra.mxu0 %v445
        %462 = vmatprep.subr.bf16.mxu0 0
        %463 = vmatpush1.bf16.msra.mxu0 0
        %464 = vmatprep.subr.bf16.mxu0 0
        %465 = vmatpush1.bf16.msra.mxu0 0
        %466 = vmatprep.subr.bf16.mxu0 0
        %467 = vmatpush1.bf16.msra.mxu0 0
        %468 = vmatprep.subr.bf16.mxu0 0
        %469 = vmatpush1.bf16.msra.mxu0 0
        %470 = vmatprep.subr.bf16.mxu0 0
        %471 = vmatpush1.bf16.msra.mxu0 0
        %472 = vmatprep.subr.bf16.mxu0 0
        %473 = vmatpush1.bf16.msra.mxu0 0
        %474 = vmatprep.subr.bf16.mxu0 0
        %475 = vmatpush1.bf16.msra.mxu0 0
        %476 = vmatprep.subr.bf16.mxu0 0
        %477 = vmatpush1.bf16.msra.mxu0 0
        %478 = vmatprep.subr.bf16.mxu0 0
        %479 = vmatpush1.bf16.msra.mxu0 0
        %480 = vmatprep.subr.bf16.mxu0 0
        %481 = vmatpush1.bf16.msra.mxu0 0
        %482 = vmatprep.subr.bf16.mxu0 0
        %483 = vmatpush1.bf16.msra.mxu0 0
        %484 = vmatprep.subr.bf16.mxu0 0
        %485 = vmatpush1.bf16.msra.mxu0 0
        %486 = vmatprep.mubr.bf16.mxu0 0
        %487 = vmatmul.mubr.bf16.gmra.mrb[0].mxu0 %v452
        %v488 = vpop.f32.mrb[0].mxu0
        %v489 = vadd.f32 0.0, %v488
        %v490 = vpop.f32.mrb[0].mxu0
        %v491 = vpop.f32.mrb[0].mxu0
        %v492 = vpop.f32.mrb[0].mxu0
        %493 = vdwg.mxu0
        %v494 = vadd.f32 %v416, %v489
        %495 = vst.msk [vmem:[#allocation2] sm:$0xff] %vm371, %v494
        // Predicated region
        $region53: #{decoder_forward.19} parent=47 // pred_check
          %p496 = pneg %p340
        $region54: #{decoder_forward.19} parent=47 // pred_check_branch
          %498 = sbr.rel (%p496) target = $region56
        $region55: #{decoder_forward.19} parent=47 // pred_region
          %v499 = vld [vmem:[#allocation2] sm:$0xff]
          %v500 = vld [vmem:[%s4] sm:$0x1]
          %v502 = vlaneseq
          %v503 = vshrl.u32 %v502, 7
          %v504 = vsub.s32 0, %v503
          %v505 = vrot.slane %v500, %v504
          %v507 = vadd.f32 %v499, %v505
          %v508 = vld [vmem:[%s325] sm:$0xff]
          %v509 = vadd.f32 %v507, %v508
          %v510 = vsel %vm371, %v509, 0.0
          %511 = vadd.xlane.f32.xlu0 %v510
          %v512 = vpop.xlane.xlu0 %511
          %v513 = vrcp.pop 32.0
          %v514 = vmul.f32 %v512, %v513
          %v515 = vsub.f32 %v509, %v514
          %v516 = vmul.f32 %v515, %v515
          %v517 = vsel %vm371, %v516, 0.0
          %518 = vadd.xlane.f32.xlu0 %v517
          %v519 = vpop.xlane.xlu0 %518
          %v520 = vmul.f32 %v519, %v513
          %v521 = vadd.f32 %v520, 1e-05
          %v522 = vrsqrt.pop %v521
          %v523 = vmul.f32 %v515, %v522
          %v524 = vld [vmem:[%s5] sm:$0x1]
          %v526 = vlaneseq
          %v527 = vshrl.u32 %v526, 7
          %v528 = vsub.s32 0, %v527
          %v529 = vrot.slane %v524, %v528
          %v531 = vmul.f32 %v529, %v523
          %v532 = vld [vmem:[%s6] sm:$0x1]
          %v534 = vlaneseq
          %v535 = vshrl.u32 %v534, 7
          %v536 = vsub.s32 0, %v535
          %v537 = vrot.slane %v532, %v536
          %v539 = vadd.f32 %v531, %v537
          %540 = vst.msk [vmem:[%s321] sm:$0xff] %vm371, %v539
        $region56: #{decoder_forward.19} parent=47 // pred_fallthru
          _
        %s541 = sand.u32 %s208, 1
        %s542 = scalar_lea.sflag [#allocation4], %s541
        %s543 = sand.u32 %s208, 1
        %s544 = smul.addr %s543, 8
        %s545 = scalar_lea.vmem [#allocation3], %s544
        // Predicated region
        $region57: #{decoder_forward.19} parent=47 // pred_check
          %p546 = pneg %p218
        $region58: #{decoder_forward.19} parent=47 // pred_check_branch
          %548 = sbr.rel (%p546) target = $region60
        $region59: #{decoder_forward.19} parent=47 // pred_region
          %s550 = ssub.s32 128, 128
          %551 = vsyncadd %s542, %s550
          %s552 = smul.addr %s25, 128
          %s553 = scalar_lea.hbm %s7, %s552
          %s555 = sshll.u32 %s545, 4
          %s556 = int_to_ptr.vmem [resolvable:$true] %s555
          %558 = dma.vmem_to_hbm [thread:$0]  %s556, 128, %s553, %s542
        $region60: #{decoder_forward.19} parent=47 // pred_fallthru
          _
      $region48: #{decoder_forward.19} parent=5 // pred_fallthru
        _
      %p559 = scmp.le.s32.totalorder 2, %s16
      // Predicated region
      $region61: #{decoder_forward.19} parent=5 // pred_check
        %p560 = pneg %p559
      $region62: #{decoder_forward.19} parent=5 // pred_check_branch
        %562 = sbr.rel (%p560) target = $region64
      $region63: #{decoder_forward.19} parent=5 // pred_region
        %s563 = ssub.s32 %s16, 2
        // Predicated region
        $region65: #{decoder_forward.19} parent=63 // pred_check
          %p564 = pneg %p224
        $region66: #{decoder_forward.19} parent=63 // pred_check_branch
          %566 = sbr.rel (%p564) target = $region68
        $region67: #{decoder_forward.19} parent=63 // pred_region
          %s567 = sand.u32 %s209, 1
          %s568 = scalar_lea.sflag [#allocation4], %s567
          %s569 = sand.u32 %s209, 1
          %s570 = smul.addr %s569, 8
          %s571 = scalar_lea.vmem [#allocation3], %s570
          %572 = dma.done %s568, 128
        $region68: #{decoder_forward.19} parent=63 // pred_fallthru
          _
      $region64: #{decoder_forward.19} parent=5 // pred_fallthru
        _
    $region6: #{decoder_forward.19} parent=1 // loop_footer
      %s20 = sadd.s32 1, %s16
    $region7: #{decoder_forward.19} parent=1 // loop_footer_branch
      %15 = sbr.rel target = $region3
    $region8: #{decoder_forward.19} parent=1 // loop_exit
      _
    %573 = vsyncpa [#allocation4], 1
    %s574 = scalar_lea.sflag [#allocation4], 1
    %575 = vsyncpa %s574, 1

// kernel: decoder_forward.14
$region0: #{decoder_forward.14}
  #allocation0 [shape = 'u32[]', space=smem, size = 0x4, offset = 0x4, fixed_abs, tag = 'smem constant byte address 0x4 - core index']
  #allocation1 [shape = 'u32[144,128]{1,0:T(1,128)}', space=vmem, size = 0x12000, scoped, tag = 'internal scratch']
  #allocation2 [shape = 'f32[8,32]{1,0:T(8,128)}', space=vmem, size = 0x1000, scoped, tag = 'scratch operand']
  %s0 = inlined_call_operand.vmem [shape: f32[16,32], index: 0, kind: input, shape index: {}]
  %s1 = inlined_call_operand.vmem [shape: bf16[32,64], index: 1, kind: input, shape index: {}]
  %s2 = inlined_call_operand.vmem [shape: f32[1,64], index: 2, kind: input, shape index: {}]
  %s3 = inlined_call_operand.vmem [shape: bf16[64,32], index: 3, kind: input, shape index: {}]
  %s4 = inlined_call_operand.vmem [shape: f32[1,32], index: 4, kind: input, shape index: {}]
  %s5 = inlined_call_operand.vmem [shape: f32[1,32], index: 5, kind: input, shape index: {}]
  %s6 = inlined_call_operand.vmem [shape: f32[1,32], index: 6, kind: input, shape index: {}]
  %s7 = inlined_call_operand.vmem [shape: f32[16,32], index: 7, kind: output, shape index: {}]
  %s8 = sld [smem:[#allocation0]]
  $region69: #{decoder_forward.14} parent=0
    _
  %s10 = ssub.s32 1, %s8
  %s11 = scalar_select 0, %s10, %s8
  loop: start=0, step=1, limit=4
  $region2: #{decoder_forward.14} parent=0 // loop_pre_header
    _
  $region3: #{decoder_forward.14} parent=0 // loop_header
    %s13 = sphi 0, %s17
    %p14 = scmp.ge.s32.totalorder %s13, 4
    %s20 = sphi 0, %s32
    %s21 = sphi 0, %s28
    %s22 = sphi 0, %s20
    %s23 = sphi 0, %s21
    %s24 = sphi 0, %s22
    %s25 = sphi 0, %s23
    %s35 = sphi 0, %s37
    %s38 = sphi 0, %s35
    %s39 = sphi 0, %s38
    %s55 = sphi 0, %s39
    %s61 = sphi 0, %s63
    %s64 = sphi 0, %s61
    %s65 = sphi 0, %s64
    %s81 = sphi 0, %s65
    %s87 = sphi 0, %s89
    %s90 = sphi 0, %s87
    %s91 = sphi 0, %s90
    %s107 = sphi 0, %s91
    %s113 = sphi 0, %s115
    %s116 = sphi 0, %s113
    %s117 = sphi 0, %s116
    %s133 = sphi 0, %s117
    %s137 = sphi 0, %s137
    %s139 = sphi 0, %s137
    %s140 = sphi 0, %s139
    %s154 = sphi 0, %s140
    %s158 = sphi 0, %s158
    %s160 = sphi 0, %s158
    %s161 = sphi 0, %s160
    %s175 = sphi 0, %s161
    %s179 = sphi 0, %s179
    %s181 = sphi 0, %s179
    %s182 = sphi 0, %s181
    %s196 = sphi 0, %s182
    %s202 = sphi 0, %s204
    %s205 = sphi 0, %s202
    %s206 = sphi 0, %s205
    %s222 = sphi 0, %s206
  $region4: #{decoder_forward.14} parent=0 // loop_header_branch
    %16 = sbr.rel (%p14) target = $region8
  $region5: #{decoder_forward.14} parent=0 // loop_body
    %s18 = ssub.s32 %s13, 1
    %s19 = ssub.s32 %s13, 2
    %s26 = sadd.s32 1, %s21
    %p27 = scmp.ge.s32.totalorder %s26, 1
    %s28 = scalar_select %p27, 0, %s26
    %s29 = sadd.s32 1, %s20
    %s30 = scalar_select %p27, %s29, %s20
    %p31 = scmp.ge.s32.totalorder %s30, 2
    %s32 = scalar_select %p31, 0, %s30
    %s33 = ssub.s32 %s20, %s32
    %p34 = scmp.eq.s32.totalorder %s33, 0
    %s36 = sadd.s32 %s35, 1
    %s37 = scalar_select %p34, %s35, %s36
    %p40 = pneg %p34
    %p41 = scmp.eq.s32.totalorder %s13, 1
    %p42 = por %p40, %p41
    %p43 = scmp.ne.s32.totalorder %s35, %s38
    %p44 = scmp.eq.s32.totalorder %s13, 0
    %p45 = por %p43, %p44
    %p46 = scmp.ne.s32.totalorder %s35, %s38
    %p47 = scmp.eq.s32.totalorder %s18, 1
    %p48 = por %p46, %p47
    %p49 = scmp.ne.s32.totalorder %s38, %s39
    %p50 = scmp.eq.s32.totalorder %s18, 0
    %p51 = por %p49, %p50
    %p52 = scmp.ne.s32.totalorder %s38, %s39
    %p53 = scmp.eq.s32.totalorder %s19, 1
    %p54 = por %p52, %p53
    %p56 = scmp.ne.s32.totalorder %s39, %s55
    %p57 = scmp.eq.s32.totalorder %s19, 0
    %p58 = por %p56, %p57
    %s59 = ssub.s32 %s21, %s28
    %p60 = scmp.eq.s32.totalorder %s59, 0
    %s62 = sadd.s32 %s61, 1
    %s63 = scalar_select %p60, %s61, %s62
    %p66 = pneg %p60
    %p67 = scmp.eq.s32.totalorder %s13, 1
    %p68 = por %p66, %p67
    %p69 = scmp.ne.s32.totalorder %s61, %s64
    %p70 = scmp.eq.s32.totalorder %s13, 0
    %p71 = por %p69, %p70
    %p72 = scmp.ne.s32.totalorder %s61, %s64
    %p73 = scmp.eq.s32.totalorder %s18, 1
    %p74 = por %p72, %p73
    %p75 = scmp.ne.s32.totalorder %s64, %s65
    %p76 = scmp.eq.s32.totalorder %s18, 0
    %p77 = por %p75, %p76
    %p78 = scmp.ne.s32.totalorder %s64, %s65
    %p79 = scmp.eq.s32.totalorder %s19, 1
    %p80 = por %p78, %p79
    %p82 = scmp.ne.s32.totalorder %s65, %s81
    %p83 = scmp.eq.s32.totalorder %s19, 0
    %p84 = por %p82, %p83
    %s85 = ssub.s32 %s21, %s28
    %p86 = scmp.eq.s32.totalorder %s85, 0
    %s88 = sadd.s32 %s87, 1
    %s89 = scalar_select %p86, %s87, %s88
    %p92 = pneg %p86
    %p93 = scmp.eq.s32.totalorder %s13, 1
    %p94 = por %p92, %p93
    %p95 = scmp.ne.s32.totalorder %s87, %s90
    %p96 = scmp.eq.s32.totalorder %s13, 0
    %p97 = por %p95, %p96
    %p98 = scmp.ne.s32.totalorder %s87, %s90
    %p99 = scmp.eq.s32.totalorder %s18, 1
    %p100 = por %p98, %p99
    %p101 = scmp.ne.s32.totalorder %s90, %s91
    %p102 = scmp.eq.s32.totalorder %s18, 0
    %p103 = por %p101, %p102
    %p104 = scmp.ne.s32.totalorder %s90, %s91
    %p105 = scmp.eq.s32.totalorder %s19, 1
    %p106 = por %p104, %p105
    %p108 = scmp.ne.s32.totalorder %s91, %s107
    %p109 = scmp.eq.s32.totalorder %s19, 0
    %p110 = por %p108, %p109
    %s111 = ssub.s32 %s21, %s28
    %p112 = scmp.eq.s32.totalorder %s111, 0
    %s114 = sadd.s32 %s113, 1
    %s115 = scalar_select %p112, %s113, %s114
    %p118 = pneg %p112
    %p119 = scmp.eq.s32.totalorder %s13, 1
    %p120 = por %p118, %p119
    %p121 = scmp.ne.s32.totalorder %s113, %s116
    %p122 = scmp.eq.s32.totalorder %s13, 0
    %p123 = por %p121, %p122
    %p124 = scmp.ne.s32.totalorder %s113, %s116
    %p125 = scmp.eq.s32.totalorder %s18, 1
    %p126 = por %p124, %p125
    %p127 = scmp.ne.s32.totalorder %s116, %s117
    %p128 = scmp.eq.s32.totalorder %s18, 0
    %p129 = por %p127, %p128
    %p130 = scmp.ne.s32.totalorder %s116, %s117
    %p131 = scmp.eq.s32.totalorder %s19, 1
    %p132 = por %p130, %p131
    %p134 = scmp.ne.s32.totalorder %s117, %s133
    %p135 = scmp.eq.s32.totalorder %s19, 0
    %p136 = por %p134, %p135
    %s138 = sadd.s32 %s137, 1
    %p141 = scmp.eq.s32.totalorder %s13, 1
    %p142 = scmp.ne.s32.totalorder %s137, %s139
    %p143 = scmp.eq.s32.totalorder %s13, 0
    %p144 = por %p142, %p143
    %p145 = scmp.ne.s32.totalorder %s137, %s139
    %p146 = scmp.eq.s32.totalorder %s18, 1
    %p147 = por %p145, %p146
    %p148 = scmp.ne.s32.totalorder %s139, %s140
    %p149 = scmp.eq.s32.totalorder %s18, 0
    %p150 = por %p148, %p149
    %p151 = scmp.ne.s32.totalorder %s139, %s140
    %p152 = scmp.eq.s32.totalorder %s19, 1
    %p153 = por %p151, %p152
    %p155 = scmp.ne.s32.totalorder %s140, %s154
    %p156 = scmp.eq.s32.totalorder %s19, 0
    %p157 = por %p155, %p156
    %s159 = sadd.s32 %s158, 1
    %p162 = scmp.eq.s32.totalorder %s13, 1
    %p163 = scmp.ne.s32.totalorder %s158, %s160
    %p164 = scmp.eq.s32.totalorder %s13, 0
    %p165 = por %p163, %p164
    %p166 = scmp.ne.s32.totalorder %s158, %s160
    %p167 = scmp.eq.s32.totalorder %s18, 1
    %p168 = por %p166, %p167
    %p169 = scmp.ne.s32.totalorder %s160, %s161
    %p170 = scmp.eq.s32.totalorder %s18, 0
    %p171 = por %p169, %p170
    %p172 = scmp.ne.s32.totalorder %s160, %s161
    %p173 = scmp.eq.s32.totalorder %s19, 1
    %p174 = por %p172, %p173
    %p176 = scmp.ne.s32.totalorder %s161, %s175
    %p177 = scmp.eq.s32.totalorder %s19, 0
    %p178 = por %p176, %p177
    %s180 = sadd.s32 %s179, 1
    %p183 = scmp.eq.s32.totalorder %s13, 1
    %p184 = scmp.ne.s32.totalorder %s179, %s181
    %p185 = scmp.eq.s32.totalorder %s13, 0
    %p186 = por %p184, %p185
    %p187 = scmp.ne.s32.totalorder %s179, %s181
    %p188 = scmp.eq.s32.totalorder %s18, 1
    %p189 = por %p187, %p188
    %p190 = scmp.ne.s32.totalorder %s181, %s182
    %p191 = scmp.eq.s32.totalorder %s18, 0
    %p192 = por %p190, %p191
    %p193 = scmp.ne.s32.totalorder %s181, %s182
    %p194 = scmp.eq.s32.totalorder %s19, 1
    %p195 = por %p193, %p194
    %p197 = scmp.ne.s32.totalorder %s182, %s196
    %p198 = scmp.eq.s32.totalorder %s19, 0
    %p199 = por %p197, %p198
    %s200 = ssub.s32 %s20, %s32
    %p201 = scmp.eq.s32.totalorder %s200, 0
    %s203 = sadd.s32 %s202, 1
    %s204 = scalar_select %p201, %s202, %s203
    %p207 = pneg %p201
    %p208 = scmp.eq.s32.totalorder %s13, 1
    %p209 = por %p207, %p208
    %p210 = scmp.ne.s32.totalorder %s202, %s205
    %p211 = scmp.eq.s32.totalorder %s13, 0
    %p212 = por %p210, %p211
    %p213 = scmp.ne.s32.totalorder %s202, %s205
    %p214 = scmp.eq.s32.totalorder %s18, 1
    %p215 = por %p213, %p214
    %p216 = scmp.ne.s32.totalorder %s205, %s206
    %p217 = scmp.eq.s32.totalorder %s18, 0
    %p218 = por %p216, %p217
    %p219 = scmp.ne.s32.totalorder %s205, %s206
    %p220 = scmp.eq.s32.totalorder %s19, 1
    %p221 = por %p219, %p220
    %p223 = scmp.ne.s32.totalorder %s206, %s222
    %p224 = scmp.eq.s32.totalorder %s19, 0
    %p225 = por %p223, %p224
    %p226 = scmp.le.s32.totalorder 1, %s13
    %p227 = scmp.lt.s32.totalorder %s13, 3
    %p228 = pnand %p226, %p227
    %p229 = pneg %p228
    // Predicated region
    $region9: #{decoder_forward.14} parent=5 // pred_check
      _
    $region10: #{decoder_forward.14} parent=5 // pred_check_branch
      %231 = sbr.rel (%p228) target = $region12
    $region11: #{decoder_forward.14} parent=5 // pred_region
      %s232 = ssub.s32 %s13, 1
      // Predicated region
      $region13: #{decoder_forward.14} parent=11 // pred_check
        %p233 = pneg %p77
      $region14: #{decoder_forward.14} parent=11 // pred_check_branch
        %235 = sbr.rel (%p233) target = $region16
      $region15: #{decoder_forward.14} parent=11 // pred_region
        %p236 = scmp.lt.s32.totalorder %s23, 0
        %s237 = scalar_select %p236, %s23, 0
        %s238 = smul.addr %s237, 4
        %s239 = scalar_lea.vmem %s1, %s238
      $region16: #{decoder_forward.14} parent=11 // pred_fallthru
        _
      // Predicated region
      $region17: #{decoder_forward.14} parent=11 // pred_check
        %p240 = pneg %p103
      $region18: #{decoder_forward.14} parent=11 // pred_check_branch
        %242 = sbr.rel (%p240) target = $region20
      $region19: #{decoder_forward.14} parent=11 // pred_region
        %p243 = scmp.lt.s32.totalorder %s23, 0
        %s244 = scalar_select %p243, %s23, 0
        %s245 = scalar_lea.vmem %s2, %s244
      $region20: #{decoder_forward.14} parent=11 // pred_fallthru
        _
      // Predicated region
      $region21: #{decoder_forward.14} parent=11 // pred_check
        %p246 = pneg %p129
      $region22: #{decoder_forward.14} parent=11 // pred_check_branch
        %248 = sbr.rel (%p246) target = $region24
      $region23: #{decoder_forward.14} parent=11 // pred_region
        %s249 = smul.u32 8, %s23
        %p250 = scmp.lt.s32.totalorder %s249, 7
        %s251 = scalar_select %p250, %s249, 7
        %s252 = smul.addr %s251, 4
        %s253 = scalar_lea.vmem %s3, %s252
        %s254 = smul.u32 8, %s23
      $region24: #{decoder_forward.14} parent=11 // pred_fallthru
        _
      // Predicated region
      $region25: #{decoder_forward.14} parent=11 // pred_check
        %p255 = pneg %p150
      $region26: #{decoder_forward.14} parent=11 // pred_check_branch
        %257 = sbr.rel (%p255) target = $region28
      $region27: #{decoder_forward.14} parent=11 // pred_region
        _
      $region28: #{decoder_forward.14} parent=11 // pred_fallthru
        _
      // Predicated region
      $region29: #{decoder_forward.14} parent=11 // pred_check
        %p258 = pneg %p171
      $region30: #{decoder_forward.14} parent=11 // pred_check_branch
        %260 = sbr.rel (%p258) target = $region32
      $region31: #{decoder_forward.14} parent=11 // pred_region
        _
      $region32: #{decoder_forward.14} parent=11 // pred_fallthru
        _
      // Predicated region
      $region33: #{decoder_forward.14} parent=11 // pred_check
        %p261 = pneg %p192
      $region34: #{decoder_forward.14} parent=11 // pred_check_branch
        %263 = sbr.rel (%p261) target = $region36
      $region35: #{decoder_forward.14} parent=11 // pred_region
        _
      $region36: #{decoder_forward.14} parent=11 // pred_fallthru
        _
    $region12: #{decoder_forward.14} parent=5 // pred_fallthru
      _
    %p264 = scmp.lt.s32.totalorder %s13, 2
    // Predicated region
    $region37: #{decoder_forward.14} parent=5 // pred_check
      %p265 = pneg %p264
    $region38: #{decoder_forward.14} parent=5 // pred_check_branch
      %267 = sbr.rel (%p265) target = $region40
    $region39: #{decoder_forward.14} parent=5 // pred_region
      // Predicated region
      $region41: #{decoder_forward.14} parent=39 // pred_check
        %p268 = pneg %p45
      $region42: #{decoder_forward.14} parent=39 // pred_check_branch
        %270 = sbr.rel (%p268) target = $region44
      $region43: #{decoder_forward.14} parent=39 // pred_region
        %p271 = scmp.lt.s32.totalorder %s20, 1
        %s272 = scalar_select %p271, %s20, 1
        %s273 = smul.addr %s272, 8
        %s274 = scalar_lea.vmem %s0, %s273
      $region44: #{decoder_forward.14} parent=39 // pred_fallthru
        _
    $region40: #{decoder_forward.14} parent=5 // pred_fallthru
      _
    %p275 = scmp.le.s32.totalorder 1, %s13
    %p276 = scmp.lt.s32.totalorder %s13, 3
    %p277 = pnand %p275, %p276
    %p278 = pneg %p277
    // Predicated region
    $region45: #{decoder_forward.14} parent=5 // pred_check
      _
    $region46: #{decoder_forward.14} parent=5 // pred_check_branch
      %280 = sbr.rel (%p277) target = $region48
    $region47: #{decoder_forward.14} parent=5 // pred_region
      %s281 = ssub.s32 %s13, 1
      %p282 = scmp.lt.s32.totalorder %s22, 1
      %s283 = scalar_select %p282, %s22, 1
      %s284 = smul.addr %s283, 8
      %s285 = scalar_lea.vmem %s0, %s284
      %p286 = pneg %p51
      %p287 = pneg %p48
      %p288 = scmp.lt.s32.totalorder %s23, 0
      %s289 = scalar_select %p288, %s23, 0
      %s290 = smul.addr %s289, 4
      %s291 = scalar_lea.vmem %s1, %s290
      %p292 = pneg %p77
      %p293 = pneg %p74
      %p294 = scmp.lt.s32.totalorder %s23, 0
      %s295 = scalar_select %p294, %s23, 0
      %s296 = scalar_lea.vmem %s2, %s295
      %p297 = pneg %p103
      %p298 = pneg %p100
      %s299 = smul.u32 8, %s23
      %p300 = scmp.lt.s32.totalorder %s299, 7
      %s301 = scalar_select %p300, %s299, 7
      %s302 = smul.addr %s301, 4
      %s303 = scalar_lea.vmem %s3, %s302
      %p304 = pneg %p129
      %p305 = pneg %p126
      %p306 = pneg %p150
      %p307 = pneg %p147
      %p308 = pneg %p171
      %p309 = pneg %p168
      %p310 = pneg %p192
      %p311 = pneg %p189
      %p312 = pneg %p218
      %p313 = pneg %p215
      %p314 = scmp.lt.s32.totalorder %s22, 1
      %s315 = scalar_select %p314, %s22, 1
      %s316 = smul.addr %s315, 8
      %s317 = scalar_lea.vmem %s7, %s316
      %p318 = scmp.lt.s32.totalorder %s22, 1
      %s319 = scalar_select %p318, %s22, 1
      %s320 = smul.addr %s319, 8
      %s321 = scalar_lea.vmem %s0, %s320
      %p322 = scmp.lt.s32.totalorder %s23, 0
      %s323 = scalar_select %p322, %s23, 0
      %s324 = smul.addr %s323, 4
      %s325 = scalar_lea.vmem %s1, %s324
      %p326 = scmp.lt.s32.totalorder %s23, 0
      %s327 = scalar_select %p326, %s23, 0
      %s328 = scalar_lea.vmem %s2, %s327
      %s329 = smul.u32 8, %s23
      %p330 = scmp.lt.s32.totalorder %s329, 7
      %s331 = scalar_select %p330, %s329, 7
      %s332 = smul.addr %s331, 4
      %s333 = scalar_lea.vmem %s3, %s332
      %s334 = smul.u32 8, %s23
      %p335 = scmp.lt.s32.totalorder %s22, 1
      %s336 = scalar_select %p335, %s22, 1
      %s337 = smul.addr %s336, 8
      %s338 = scalar_lea.vmem %s7, %s337
      %p340 = scmp.eq.s32.totalorder %s23, 0
      // Predicated region
      $region49: #{decoder_forward.14} parent=47 // pred_check
        %p341 = pneg %p340
      $region50: #{decoder_forward.14} parent=47 // pred_check_branch
        %343 = sbr.rel (%p341) target = $region52
      $region51: #{decoder_forward.14} parent=47 // pred_region
        %vm344 = vcmask 261120
        %345 = vst.msk [vmem:[#allocation2] sm:$0xff] %vm344, 0.0
      $region52: #{decoder_forward.14} parent=47 // pred_fallthru
        _
      %v346 = vld [vmem:[%s321] sm:$0xff]
      %v347 = vpack.c.bf16 %v346, %v346
      %v348 = vld [vmem:[%s325] sm:$0xf]
      %v349 = vld [vmem:[%s325 + $0x4] sm:$0xf]
      %v350 = vld [vmem:[%s325 + $0x8] sm:$0xf]
      %v351 = vld [vmem:[%s325 + $0xc] sm:$0xf]
      %v352 = vld [vmem:[%s328] sm:$0x1]
      %v354 = vlaneseq
      %v355 = vshrl.u32 %v354, 7
      %v356 = vsub.s32 0, %v355
      %v357 = vrot.slane %v352, %v356
      %v363 = vunpack.c.l.b16 %v348
      %v364 = vunpack.c.l.b16 %v349
      %v365 = vunpack.c.l.b16 %v350
      %v366 = vunpack.c.l.b16 %v351
      %v367 = vpack.c.b16 %v364, %v363
      %v368 = vpack.c.b16 %v366, %v365
      %vm371 = vcmask 261120
      %v373 = vsel %vm371, %v347, 0
      %375 = vmatprep.subr.bf16.mxu0 0
      %376 = vmatpush1.bf16.msra.mxu0 %v367
      %377 = vmatprep.subr.bf16.mxu0 0
      %378 = vmatpush1.bf16.msra.mxu0 %v368
      %379 = vmatprep.subr.bf16.mxu0 0
      %380 = vmatpush1.bf16.msra.mxu0 0
      %381 = vmatprep.subr.bf16.mxu0 0
      %382 = vmatpush1.bf16.msra.mxu0 0
      %383 = vmatprep.subr.bf16.mxu0 0
      %384 = vmatpush1.bf16.msra.mxu0 0
      %385 = vmatprep.subr.bf16.mxu0 0
      %386 = vmatpush1.bf16.msra.mxu0 0
      %387 = vmatprep.subr.bf16.mxu0 0
      %388 = vmatpush1.bf16.msra.mxu0 0
      %389 = vmatprep.subr.bf16.mxu0 0
      %390 = vmatpush1.bf16.msra.mxu0 0
      %391 = vmatprep.subr.bf16.mxu0 0
      %392 = vmatpush1.bf16.msra.mxu0 0
      %393 = vmatprep.subr.bf16.mxu0 0
      %394 = vmatpush1.bf16.msra.mxu0 0
      %395 = vmatprep.subr.bf16.mxu0 0
      %396 = vmatpush1.bf16.msra.mxu0 0
      %397 = vmatprep.subr.bf16.mxu0 0
      %398 = vmatpush1.bf16.msra.mxu0 0
      %399 = vmatprep.subr.bf16.mxu0 0
      %400 = vmatpush1.bf16.msra.mxu0 0
      %401 = vmatprep.subr.bf16.mxu0 0
      %402 = vmatpush1.bf16.msra.mxu0 0
      %403 = vmatprep.subr.bf16.mxu0 0
      %404 = vmatpush1.bf16.msra.mxu0 0
      %405 = vmatprep.subr.bf16.mxu0 0
      %406 = vmatpush1.bf16.msra.mxu0 0
      %407 = vmatprep.mubr.bf16.mxu0 0
      %408 = vmatmul.mubr.bf16.gmra.mrb[0].mxu0 %v373
      %v409 = vpop.f32.mrb[0].mxu0
      %v410 = vadd.f32 %v357, %v409
      %v411 = vpop.f32.mrb[0].mxu0
      %v412 = vpop.f32.mrb[0].mxu0
      %v413 = vpop.f32.mrb[0].mxu0
      %414 = vdwg.mxu0
      %v415 = vmax.f32 %v410, 0.0
      %v416 = vld [vmem:[#allocation2] sm:$0xff]
      %v417 = vpack.c.bf16 %v415, %v415
      %v418 = vld [vmem:[%s333] sm:$0xf]
      %v419 = vld [vmem:[%s333 + $0x4] sm:$0xf]
      %v420 = vld [vmem:[%s333 + $0x8] sm:$0xf]
      %v421 = vld [vmem:[%s333 + $0xc] sm:$0xf]
      %v422 = vld [vmem:[%s333 + $0x10] sm:$0xf]
      %v423 = vld [vmem:[%s333 + $0x14] sm:$0xf]
      %v424 = vld [vmem:[%s333 + $0x18] sm:$0xf]
      %v425 = vld [vmem:[%s333 + $0x1c] sm:$0xf]
      %v434 = vunpack.c.l.b16 %v418
      %v435 = vunpack.c.l.b16 %v419
      %v436 = vunpack.c.l.b16 %v420
      %v437 = vunpack.c.l.b16 %v421
      %v438 = vunpack.c.l.b16 %v422
      %v439 = vunpack.c.l.b16 %v423
      %v440 = vunpack.c.l.b16 %v424
      %v441 = vunpack.c.l.b16 %v425
      %v442 = vpack.c.b16 %v435, %v434
      %v443 = vpack.c.b16 %v437, %v436
      %v444 = vpack.c.b16 %v439, %v438
      %v445 = vpack.c.b16 %v441, %v440
      %vm450 = vcmask 523264
      %v452 = vsel %vm450, %v417, 0
      %454 = vmatprep.subr.bf16.mxu0 0
      %455 = vmatpush1.bf16.msra.mxu0 %v442
      %456 = vmatprep.subr.bf16.mxu0 0
      %457 = vmatpush1.bf16.msra.mxu0 %v443
      %458 = vmatprep.subr.bf16.mxu0 0
      %459 = vmatpush1.bf16.msra.mxu0 %v444
      %460 = vmatprep.subr.bf16.mxu0 0
      %461 = vmatpush1.bf16.msra.mxu0 %v445
      %462 = vmatprep.subr.bf16.mxu0 0
      %463 = vmatpush1.bf16.msra.mxu0 0
      %464 = vmatprep.subr.bf16.mxu0 0
      %465 = vmatpush1.bf16.msra.mxu0 0
      %466 = vmatprep.subr.bf16.mxu0 0
      %467 = vmatpush1.bf16.msra.mxu0 0
      %468 = vmatprep.subr.bf16.mxu0 0
      %469 = vmatpush1.bf16.msra.mxu0 0
      %470 = vmatprep.subr.bf16.mxu0 0
      %471 = vmatpush1.bf16.msra.mxu0 0
      %472 = vmatprep.subr.bf16.mxu0 0
      %473 = vmatpush1.bf16.msra.mxu0 0
      %474 = vmatprep.subr.bf16.mxu0 0
      %475 = vmatpush1.bf16.msra.mxu0 0
      %476 = vmatprep.subr.bf16.mxu0 0
      %477 = vmatpush1.bf16.msra.mxu0 0
      %478 = vmatprep.subr.bf16.mxu0 0
      %479 = vmatpush1.bf16.msra.mxu0 0
      %480 = vmatprep.subr.bf16.mxu0 0
      %481 = vmatpush1.bf16.msra.mxu0 0
      %482 = vmatprep.subr.bf16.mxu0 0
      %483 = vmatpush1.bf16.msra.mxu0 0
      %484 = vmatprep.subr.bf16.mxu0 0
      %485 = vmatpush1.bf16.msra.mxu0 0
      %486 = vmatprep.mubr.bf16.mxu0 0
      %487 = vmatmul.mubr.bf16.gmra.mrb[0].mxu0 %v452
      %v488 = vpop.f32.mrb[0].mxu0
      %v489 = vadd.f32 0.0, %v488
      %v490 = vpop.f32.mrb[0].mxu0
      %v491 = vpop.f32.mrb[0].mxu0
      %v492 = vpop.f32.mrb[0].mxu0
      %493 = vdwg.mxu0
      %v494 = vadd.f32 %v416, %v489
      %495 = vst.msk [vmem:[#allocation2] sm:$0xff] %vm371, %v494
      // Predicated region
      $region53: #{decoder_forward.14} parent=47 // pred_check
        %p496 = pneg %p340
      $region54: #{decoder_forward.14} parent=47 // pred_check_branch
        %498 = sbr.rel (%p496) target = $region56
      $region55: #{decoder_forward.14} parent=47 // pred_region
        %v499 = vld [vmem:[#allocation2] sm:$0xff]
        %v500 = vld [vmem:[%s4] sm:$0x1]
        %v502 = vlaneseq
        %v503 = vshrl.u32 %v502, 7
        %v504 = vsub.s32 0, %v503
        %v505 = vrot.slane %v500, %v504
        %v507 = vadd.f32 %v499, %v505
        %v508 = vld [vmem:[%s321] sm:$0xff]
        %v509 = vadd.f32 %v507, %v508
        %v510 = vsel %vm371, %v509, 0.0
        %511 = vadd.xlane.f32.xlu0 %v510
        %v512 = vpop.xlane.xlu0 %511
        %v513 = vrcp.pop 32.0
        %v514 = vmul.f32 %v512, %v513
        %v515 = vsub.f32 %v509, %v514
        %v516 = vmul.f32 %v515, %v515
        %v517 = vsel %vm371, %v516, 0.0
        %518 = vadd.xlane.f32.xlu0 %v517
        %v519 = vpop.xlane.xlu0 %518
        %v520 = vmul.f32 %v519, %v513
        %v521 = vadd.f32 %v520, 1e-05
        %v522 = vrsqrt.pop %v521
        %v523 = vmul.f32 %v515, %v522
        %v524 = vld [vmem:[%s5] sm:$0x1]
        %v526 = vlaneseq
        %v527 = vshrl.u32 %v526, 7
        %v528 = vsub.s32 0, %v527
        %v529 = vrot.slane %v524, %v528
        %v531 = vmul.f32 %v529, %v523
        %v532 = vld [vmem:[%s6] sm:$0x1]
        %v534 = vlaneseq
        %v535 = vshrl.u32 %v534, 7
        %v536 = vsub.s32 0, %v535
        %v537 = vrot.slane %v532, %v536
        %v539 = vadd.f32 %v531, %v537
        %540 = vst.msk [vmem:[%s338] sm:$0xff] %vm371, %v539
      $region56: #{decoder_forward.14} parent=47 // pred_fallthru
        _
      %p541 = scmp.lt.s32.totalorder %s22, 1
      %s542 = scalar_select %p541, %s22, 1
      %s543 = smul.addr %s542, 8
      %s544 = scalar_lea.vmem %s7, %s543
      // Predicated region
      $region57: #{decoder_forward.14} parent=47 // pred_check
        %p545 = pneg %p215
      $region58: #{decoder_forward.14} parent=47 // pred_check_branch
        %547 = sbr.rel (%p545) target = $region60
      $region59: #{decoder_forward.14} parent=47 // pred_region
        _
      $region60: #{decoder_forward.14} parent=47 // pred_fallthru
        _
    $region48: #{decoder_forward.14} parent=5 // pred_fallthru
      _
    %p548 = scmp.le.s32.totalorder 2, %s13
    // Predicated region
    $region61: #{decoder_forward.14} parent=5 // pred_check
      %p549 = pneg %p548
    $region62: #{decoder_forward.14} parent=5 // pred_check_branch
      %551 = sbr.rel (%p549) target = $region64
    $region63: #{decoder_forward.14} parent=5 // pred_region
      %s552 = ssub.s32 %s13, 2
      // Predicated region
      $region65: #{decoder_forward.14} parent=63 // pred_check
        %p553 = pneg %p221
      $region66: #{decoder_forward.14} parent=63 // pred_check_branch
        %555 = sbr.rel (%p553) target = $region68
      $region67: #{decoder_forward.14} parent=63 // pred_region
        %p556 = scmp.lt.s32.totalorder %s24, 1
        %s557 = scalar_select %p556, %s24, 1
        %s558 = smul.addr %s557, 8
        %s559 = scalar_lea.vmem %s7, %s558
      $region68: #{decoder_forward.14} parent=63 // pred_fallthru
        _
    $region64: #{decoder_forward.14} parent=5 // pred_fallthru
      _
  $region6: #{decoder_forward.14} parent=0 // loop_footer
    %s17 = sadd.s32 1, %s13
  $region7: #{decoder_forward.14} parent=0 // loop_footer_branch
    %12 = sbr.rel target = $region3
  $region8: #{decoder_forward.14} parent=0 // loop_exit
    _

</llo_original>
